<compile_context>
chip_gen: v5e
topology: v5e:2x2
jax: 0.10.0
libtpu: 0.0.40
codegen_flags: <defaults>
</compile_context>

<pallas_src>
import numpy as np

import jax
import jax.numpy as jnp
from jax import lax
from jax.experimental import pallas as pl
from jax.experimental.pallas import tpu as pltpu


CHUNK = 8  # token-scan chunk size (sublane aligned)


# ----------------------------------------------------------------------------
# In-kernel helpers (only exp/log/rsqrt/maximum -> safe Mosaic lowerings)
# ----------------------------------------------------------------------------
def _sigmoid(x):
    return 1.0 / (1.0 + jnp.exp(-x))


def _softplus(x):
    return jnp.maximum(x, 0.0) + jnp.log(1.0 + jnp.exp(-jnp.abs(x)))


def _layernorm(v, w, b):
    mu = jnp.mean(v, axis=-1, keepdims=True)
    var = jnp.mean((v - mu) ** 2, axis=-1, keepdims=True)
    return (v - mu) * lax.rsqrt(var + 1e-5) * w + b


# ----------------------------------------------------------------------------
# Fused kernel: one grid step == (one batch tile, one S3UM block)
# ----------------------------------------------------------------------------
def masking_net_kernel(
    x_ref,                       # (TB, N, D)  f32   patch tokens
    cls_ref,                     # (1, 1, D)   f32
    pos_ref,                     # (1, L, D)   f32
    ln_w_ref, ln_b_ref,          # (1, 1, D)   f32   per-depth block
    w_uz_ref, b_uz_ref,          # (1, D, 2D) bf16 / (1, 1, 2D) f32
    w_dt_ref, b_dt_ref,          # (1, D, D)  bf16 / (1, 1, D)  f32
    w_bc_ref,                    # (1, D, 2S) bf16
    a_log_ref, d_skip_ref,       # (1, S, D)  f32  / (1, 1, D)  f32
    w_out_ref, b_out_ref,        # (1, D, D)  bf16 / (1, 1, D)  f32
    norm_w_ref, norm_b_ref,      # (1, D) f32
    w_head_ref, b_head_ref,      # (D, Np) bf16 / (1, Np) f32
    o_ref,                       # (TB, 1, Np) f32 out (same block across depth)
    h_ref,                       # (TB, Lp, D) f32 scratch: residual stream
    dd_s, du_s,                  # (TB, Lp, D) f32 scratch: delta, delta*u
    bc_s,                        # (TB, Lp, 2S) f32 scratch: B|C
    y_s,                         # (TB, Lp, D) f32 scratch: scan output
):
    d = pl.program_id(1)
    n_depth = pl.num_programs(1)
    tb, n_pat, dim = x_ref.shape
    seq = pos_ref.shape[1]        # L = N + 1
    l_pad = h_ref.shape[1]
    n_state = a_log_ref.shape[1]
    m_rows = tb * l_pad

    # ---- build token stream (cls ++ patches) + pos embed at the first step ----
    @pl.when(d == 0)
    def _init():
        cls_row = cls_ref[...] + pos_ref[:, 0:1, :]                  # (1, 1, D)
        patches = x_ref[...] + pos_ref[:, 1:, :]                     # (TB, N, D)
        parts = [jnp.broadcast_to(cls_row, (tb, 1, dim)), patches]
        if l_pad > seq:                                              # zero pad rows
            parts.append(jnp.zeros((tb, l_pad - seq, dim), jnp.float32))
        h_ref[...] = jnp.concatenate(parts, axis=1)

    h = h_ref[...].reshape(m_rows, dim)                              # (M, D) f32

    def mm(a_bf16, w_bf16):
        return jnp.dot(a_bf16, w_bf16, preferred_element_type=jnp.float32)

    # ---- S3UM block for this depth step ----
    hn = _layernorm(h, ln_w_ref[0], ln_b_ref[0])
    hn_b = hn.astype(jnp.bfloat16)

    uz = mm(hn_b, w_uz_ref[0]) + b_uz_ref[0]                         # fused u|z
    u = uz[:, :dim]
    z = uz[:, dim:]
    u = u * _sigmoid(u)                                              # SiLU

    delta = _softplus(mm(u.astype(jnp.bfloat16), w_dt_ref[0]) + b_dt_ref[0])  # (M, D)
    bc = mm(hn_b, w_bc_ref[0])                                       # fused B|C (M, 2S)
    a_t = -jnp.exp(a_log_ref[0])                                     # (S, D)

    dd_s[...] = delta.reshape(tb, l_pad, dim)
    du_s[...] = (delta * u).reshape(tb, l_pad, dim)
    bc_s[...] = bc.reshape(tb, l_pad, 2 * n_state)

    # ---- chunked selective scan over tokens (state vectorized over TB) ----
    n_chunks = l_pad // CHUNK

    def chunk_body(c, state):                                        # state (TB, S, D)
        t0 = pl.multiple_of(c * CHUNK, CHUNK)
        dch = dd_s[:, pl.ds(t0, CHUNK), :]                           # (TB, CH, D)
        duch = du_s[:, pl.ds(t0, CHUNK), :]                          # (TB, CH, D)
        bcch = bc_s[:, pl.ds(t0, CHUNK), :]                          # (TB, CH, 2S)
        # per-chunk exp / input term (no (L,S,D) materialization)
        da = jnp.exp(dch[:, :, None, :] * a_t[None, None, :, :])     # (TB, CH, S, D)
        dbu = duch[:, :, None, :] * bcch[:, :, :n_state, None]       # (TB, CH, S, D)
        ys = []
        for i in range(CHUNK):                                       # 8-step recurrence
            state = da[:, i] * state + dbu[:, i]                     # (TB, S, D)
            c_i = bcch[:, i, n_state:]                               # (TB, S)
            ys.append(jnp.sum(state * c_i[:, :, None], axis=1))      # (TB, D)
        y_s[:, pl.ds(t0, CHUNK), :] = jnp.stack(ys, axis=1)          # aligned 8-row store
        return state

    state0 = jnp.zeros((tb, n_state, dim), jnp.float32)
    _ = lax.fori_loop(0, n_chunks, chunk_body, state0)

    # ---- skip, gate, output projection, residual ----
    y = y_s[...].reshape(m_rows, dim)
    y = y + u * d_skip_ref[0]
    y = y * (z * _sigmoid(z))
    h_new = h + mm(y.astype(jnp.bfloat16), w_out_ref[0]) + b_out_ref[0]
    h_ref[...] = h_new.reshape(tb, l_pad, dim)

    # ---- final norm + mean over patch tokens + head, last depth step only ----
    @pl.when(d == n_depth - 1)
    def _head():
        xn = _layernorm(h_new, norm_w_ref[...], norm_b_ref[...])
        xn3 = xn.reshape(tb, l_pad, dim)
        row = lax.broadcasted_iota(jnp.int32, (l_pad, 1), 0)
        keep = ((row >= 1) & (row < seq)).astype(jnp.float32)        # drop CLS + pad rows
        pooled = jnp.sum(xn3 * keep, axis=1) / float(seq - 1)        # (TB, D)
        logits = mm(pooled.astype(jnp.bfloat16), w_head_ref[...]) + b_head_ref[...]
        o_ref[...] = _sigmoid(logits)[:, None, :]                    # lane-dense store


# ----------------------------------------------------------------------------
# pallas_call wrapper
# ----------------------------------------------------------------------------
def masking_net_forward(x, p, *, batch_tile=None):
    """x: [B, N, D] patch tokens -> [B, N] mask probabilities."""
    bsz, n_tok, dim = x.shape
    seq = n_tok + 1
    l_pad = ((seq + CHUNK - 1) // CHUNK) * CHUNK
    n_pad = ((n_tok + 127) // 128) * 128
    depth = p["ln_w"].shape[0]
    d_state = p["A_log_t"].shape[1]

    if batch_tile is None:
        batch_tile = 2 if bsz % 2 == 0 else 1
    assert bsz % batch_tile == 0
    nbt = bsz // batch_tile

    # lane-dense (padded) head so the output store is unmasked
    w_head = jnp.pad(p["w_head"], ((0, 0), (0, n_pad - n_tok)))
    b_head = jnp.pad(p["b_head"], ((0, 0), (0, n_pad - n_tok)))

    per_depth = (
        p["ln_w"], p["ln_b"], p["w_uz"], p["b_uz"], p["w_dt"], p["b_dt"],
        p["w_bc"], p["A_log_t"], p["D_skip"], p["w_out"], p["b_out"],
    )
    consts = (p["norm_w"], p["norm_b"], w_head, b_head)

    def depth_spec(a):
        nd = a.ndim
        return pl.BlockSpec((1,) + a.shape[1:],
                            lambda b, d, _n=nd: (d,) + (0,) * (_n - 1))

    def const_spec(a):
        nd = a.ndim
        return pl.BlockSpec(a.shape, lambda b, d, _n=nd: (0,) * _n)

    in_specs = (
        [pl.BlockSpec((batch_tile, n_tok, dim), lambda b, d: (b, 0, 0)),
         const_spec(p["cls_token"]), const_spec(p["pos_embed"])]
        + [depth_spec(a) for a in per_depth]
        + [const_spec(a) for a in consts]
    )

    # --- explicit VMEM budget (sized against v7x's 64 MiB physical VMEM) ---
    def nbytes(a):
        return int(np.prod(a.shape)) * a.dtype.itemsize

    per_step_in = (batch_tile * n_tok * dim * 4
                   + nbytes(p["cls_token"]) + nbytes(p["pos_embed"])
                   + sum(nbytes(a) // depth for a in per_depth)
                   + sum(nbytes(a) for a in consts))
    scratch_bytes = batch_tile * l_pad * (4 * dim + 2 * d_state) * 4
    act_bytes = 12 * batch_tile * l_pad * max(dim, 2 * d_state) * 4
    out_bytes = batch_tile * n_pad * 4
    est = 2 * (per_step_in + out_bytes) + scratch_bytes + act_bytes
    vmem_limit = int(min(64 << 20, max(32 << 20, 2 * est)))

    out = pl.pallas_call(
        masking_net_kernel,
        out_shape=jax.ShapeDtypeStruct((bsz, 1, n_pad), jnp.float32),
        grid=(nbt, depth),
        in_specs=in_specs,
        out_specs=pl.BlockSpec((batch_tile, 1, n_pad), lambda b, d: (b, 0, 0)),
        scratch_shapes=[
            pltpu.VMEM((batch_tile, l_pad, dim), jnp.float32),            # h (residual)
            pltpu.VMEM((batch_tile, l_pad, dim), jnp.float32),            # delta
            pltpu.VMEM((batch_tile, l_pad, dim), jnp.float32),            # delta*u
            pltpu.VMEM((batch_tile, l_pad, 2 * d_state), jnp.float32),    # B|C
            pltpu.VMEM((batch_tile, l_pad, dim), jnp.float32),            # y
        ],
        compiler_params=pltpu.CompilerParams(
            dimension_semantics=("parallel", "arbitrary"),
            vmem_limit_bytes=vmem_limit,
        ),
    )(x, p["cls_token"], p["pos_embed"], *per_depth, *consts)

    return out[:, 0, :n_tok]


# ----------------------------------------------------------------------------
# Deterministic parameter construction (matches the module's init strategy).
# Per-block weights are stacked along a leading depth axis; weights that share
# the same matmul LHS are pre-fused (w_u|w_z and w_B|w_C).
# ----------------------------------------------------------------------------
def _get_1d_sincos_pos_embed_from_grid(embed_dim, pos):
    omega = np.arange(embed_dim // 2, dtype=np.float64)
    omega /= embed_dim / 2.0
    omega = 1.0 / 10000 ** omega
    pos = pos.reshape(-1)
    out = np.einsum("m,d->md", pos, omega)
    return np.concatenate([np.sin(out), np.cos(out)], axis=1)


def get_2d_sincos_pos_embed(embed_dim, grid_size, cls_token=False):
    grid_h = np.arange(grid_size, dtype=np.float32)
    grid_w = np.arange(grid_size, dtype=np.float32)
    grid = np.meshgrid(grid_w, grid_h)
    grid = np.stack(grid, axis=0).reshape([2, 1, grid_size, grid_size])
    emb_h = _get_1d_sincos_pos_embed_from_grid(embed_dim // 2, grid[0])
    emb_w = _get_1d_sincos_pos_embed_from_grid(embed_dim // 2, grid[1])
    pos_embed = np.concatenate([emb_h, emb_w], axis=1)
    if cls_token:
        pos_embed = np.concatenate([np.zeros([1, embed_dim]), pos_embed], axis=0)
    return pos_embed


def _xavier_uniform(key, shape, dtype=jnp.bfloat16):
    fan_in, fan_out = shape[-2], shape[-1]
    limit = float(np.sqrt(6.0 / (fan_in + fan_out)))
    return jax.random.uniform(key, shape, jnp.float32, -limit, limit).astype(dtype)


def init_params(key, num_tokens, embed_dim, d_state, depth):
    ks = jax.random.split(key, 8)
    D, S = embed_dim, d_state
    params = {}

    params["cls_token"] = 0.02 * jax.random.normal(ks[0], (1, 1, D), jnp.float32)
    grid_size = int(np.sqrt(num_tokens))
    assert grid_size * grid_size == num_tokens, "num_tokens must be a perfect square"
    pe = get_2d_sincos_pos_embed(D, grid_size, cls_token=True)
    params["pos_embed"] = jnp.asarray(pe, jnp.float32)[None, :, :]   # (1, N+1, D)

    # per-block parameters, stacked over depth
    params["ln_w"] = jnp.ones((depth, 1, D), jnp.float32)
    params["ln_b"] = jnp.zeros((depth, 1, D), jnp.float32)
    w_u = _xavier_uniform(ks[1], (depth, D, D))
    w_z = _xavier_uniform(ks[2], (depth, D, D))
    params["w_uz"] = jnp.concatenate([w_u, w_z], axis=-1)            # (depth, D, 2D)
    params["b_uz"] = jnp.zeros((depth, 1, 2 * D), jnp.float32)
    params["w_dt"] = _xavier_uniform(ks[3], (depth, D, D))
    params["b_dt"] = jnp.zeros((depth, 1, D), jnp.float32)
    w_B = _xavier_uniform(ks[4], (depth, D, S))
    w_C = _xavier_uniform(ks[5], (depth, D, S))
    params["w_bc"] = jnp.concatenate([w_B, w_C], axis=-1)            # (depth, D, 2S)
    # Mamba S4D-real init, stored transposed (S, D) so the scan keeps D on lanes
    a_log_t = np.tile(np.log(np.arange(1, S + 1, dtype=np.float32))[:, None], (1, D))
    params["A_log_t"] = jnp.asarray(np.tile(a_log_t[None], (depth, 1, 1)), jnp.float32)
    params["D_skip"] = jnp.ones((depth, 1, D), jnp.float32)
    params["w_out"] = _xavier_uniform(ks[6], (depth, D, D))
    params["b_out"] = jnp.zeros((depth, 1, D), jnp.float32)

    # head (padded to a lane-dense width inside the wrapper)
    params["norm_w"] = jnp.ones((1, D), jnp.float32)
    params["norm_b"] = jnp.zeros((1, D), jnp.float32)
    params["w_head"] = _xavier_uniform(ks[7], (D, num_tokens))
    params["b_head"] = jnp.zeros((1, num_tokens), jnp.float32)
    return params


# TODO(synk): get_binary_mask (torch.topk selection) is host-side glue and is
#             not implemented as a Pallas kernel here.

if __name__ == "__main__":
    B, N, D, D_STATE, DEPTH = 4, 16, 32, 8, 3   # N must be a perfect square (4x4 grid)
    x = jax.random.normal(jax.random.PRNGKey(0), (B, N, D), jnp.float32)
    params = init_params(jax.random.PRNGKey(1), N, D, D_STATE, DEPTH)

    fwd = jax.jit(masking_net_forward)
    out = jax.block_until_ready(fwd(x, params))

    assert out.shape == (B, N), out.shape
    assert bool(jnp.all(jnp.isfinite(out)))
    assert bool(jnp.all((out >= 0.0) & (out <= 1.0)))
    print("KERNEL_OK")
</pallas_src>

<mosaic_0001>
module attributes {stable_mosaic.version = 11 : i64} {
  func.func @masking_net_kernel(%arg0: i32, %arg1: i32, %arg2: memref<2x16x32xf32, #tpu.memory_space<vmem>>, %arg3: memref<1x1x32xf32, #tpu.memory_space<vmem>>, %arg4: memref<1x17x32xf32, #tpu.memory_space<vmem>>, %arg5: memref<1x1x32xf32, #tpu.memory_space<vmem>>, %arg6: memref<1x1x32xf32, #tpu.memory_space<vmem>>, %arg7: memref<1x32x64xbf16, #tpu.memory_space<vmem>>, %arg8: memref<1x1x64xf32, #tpu.memory_space<vmem>>, %arg9: memref<1x32x32xbf16, #tpu.memory_space<vmem>>, %arg10: memref<1x1x32xf32, #tpu.memory_space<vmem>>, %arg11: memref<1x32x16xbf16, #tpu.memory_space<vmem>>, %arg12: memref<1x8x32xf32, #tpu.memory_space<vmem>>, %arg13: memref<1x1x32xf32, #tpu.memory_space<vmem>>, %arg14: memref<1x32x32xbf16, #tpu.memory_space<vmem>>, %arg15: memref<1x1x32xf32, #tpu.memory_space<vmem>>, %arg16: memref<1x32xf32, #tpu.memory_space<vmem>>, %arg17: memref<1x32xf32, #tpu.memory_space<vmem>>, %arg18: memref<32x128xbf16, #tpu.memory_space<vmem>>, %arg19: memref<1x128xf32, #tpu.memory_space<vmem>>, %arg20: memref<2x1x128xf32, #tpu.memory_space<vmem>>, %arg21: memref<2x24x32xf32, #tpu.memory_space<vmem>>, %arg22: memref<2x24x32xf32, #tpu.memory_space<vmem>>, %arg23: memref<2x24x32xf32, #tpu.memory_space<vmem>>, %arg24: memref<2x24x16xf32, #tpu.memory_space<vmem>>, %arg25: memref<2x24x32xf32, #tpu.memory_space<vmem>>) attributes {dimension_semantics = [#tpu.dimension_semantics<parallel>, #tpu.dimension_semantics<arbitrary>], iteration_bounds = array<i64: 2, 3>, scalar_prefetch = 0 : i64, scratch_operands = 5 : i64, tpu.core_type = #tpu.core_type<tc>, window_params = [{transform_indices = @transform_0, window_bounds = array<i64: 2, 16, 32>}, {pipeline_mode = #tpu.pipeline_mode<synchronous>, transform_indices = @transform_1, window_bounds = array<i64: 1, 1, 32>}, {pipeline_mode = #tpu.pipeline_mode<synchronous>, transform_indices = @transform_2, window_bounds = array<i64: 1, 17, 32>}, {transform_indices = @transform_3, window_bounds = array<i64: 1, 1, 32>}, {transform_indices = @transform_4, window_bounds = array<i64: 1, 1, 32>}, {transform_indices = @transform_5, window_bounds = array<i64: 1, 32, 64>}, {transform_indices = @transform_6, window_bounds = array<i64: 1, 1, 64>}, {transform_indices = @transform_7, window_bounds = array<i64: 1, 32, 32>}, {transform_indices = @transform_8, window_bounds = array<i64: 1, 1, 32>}, {transform_indices = @transform_9, window_bounds = array<i64: 1, 32, 16>}, {transform_indices = @transform_10, window_bounds = array<i64: 1, 8, 32>}, {transform_indices = @transform_11, window_bounds = array<i64: 1, 1, 32>}, {transform_indices = @transform_12, window_bounds = array<i64: 1, 32, 32>}, {transform_indices = @transform_13, window_bounds = array<i64: 1, 1, 32>}, {pipeline_mode = #tpu.pipeline_mode<synchronous>, transform_indices = @transform_14, window_bounds = array<i64: 1, 32>}, {pipeline_mode = #tpu.pipeline_mode<synchronous>, transform_indices = @transform_15, window_bounds = array<i64: 1, 32>}, {pipeline_mode = #tpu.pipeline_mode<synchronous>, transform_indices = @transform_16, window_bounds = array<i64: 32, 128>}, {pipeline_mode = #tpu.pipeline_mode<synchronous>, transform_indices = @transform_17, window_bounds = array<i64: 1, 128>}, {transform_indices = @transform_18, window_bounds = array<i64: 2, 1, 128>}]} {
    %c0_i32 = arith.constant 0 : i32
    %0 = arith.cmpi eq, %arg1, %c0_i32 : i32
    %1 = arith.extui %0 : i1 to i32
    %c0_i32_0 = arith.constant 0 : i32
    %2 = arith.cmpi ne, %1, %c0_i32_0 : i32
    scf.if %2 {
      %c0_73 = arith.constant 0 : index
      %c0_74 = arith.constant 0 : index
      %c0_75 = arith.constant 0 : index
      %115 = vector.load %arg3[%c0_73, %c0_74, %c0_75] : memref<1x1x32xf32, #tpu.memory_space<vmem>>, vector<1x1x32xf32>
      %c0_76 = arith.constant 0 : index
      %c0_77 = arith.constant 0 : index
      %c0_78 = arith.constant 0 : index
      %116 = vector.load %arg4[%c0_76, %c0_77, %c0_78] : memref<1x17x32xf32, #tpu.memory_space<vmem>>, vector<1x1x32xf32>
      %117 = arith.addf %115, %116 : vector<1x1x32xf32>
      %c0_79 = arith.constant 0 : index
      %c0_80 = arith.constant 0 : index
      %c0_81 = arith.constant 0 : index
      %118 = vector.load %arg2[%c0_79, %c0_80, %c0_81] : memref<2x16x32xf32, #tpu.memory_space<vmem>>, vector<2x16x32xf32>
      %c0_82 = arith.constant 0 : index
      %c1 = arith.constant 1 : index
      %c0_83 = arith.constant 0 : index
      %119 = vector.load %arg4[%c0_82, %c1, %c0_83] : memref<1x17x32xf32, #tpu.memory_space<vmem>>, vector<1x16x32xf32>
      %120 = vector.broadcast %119 : vector<1x16x32xf32> to vector<2x16x32xf32>
      %121 = arith.addf %118, %120 : vector<2x16x32xf32>
      %122 = vector.shape_cast %117 : vector<1x1x32xf32> to vector<1x1x32xf32>
      %123 = vector.broadcast %122 : vector<1x1x32xf32> to vector<2x1x32xf32>
      %cst_84 = arith.constant 0.000000e+00 : f32
      %124 = vector.broadcast %cst_84 : f32 to vector<2x7x32xf32>
      %125 = tpu.concatenate %123, %121, %124 in 1 : vector<2x1x32xf32>, vector<2x16x32xf32>, vector<2x7x32xf32> -> vector<2x24x32xf32>
      %c0_85 = arith.constant 0 : index
      %c0_86 = arith.constant 0 : index
      %c0_87 = arith.constant 0 : index
      %126 = vector.load %arg21[%c0_85, %c0_86, %c0_87] : memref<2x24x32xf32, #tpu.memory_space<vmem>>, vector<2x24x32xf32>
      tpu.vector_store %arg21[%c0_85, %c0_86, %c0_87], %125 {strides = array<i32>} : memref<2x24x32xf32, #tpu.memory_space<vmem>>, vector<2x24x32xf32>,
    } else {
    }
    %c0 = arith.constant 0 : index
    %c0_1 = arith.constant 0 : index
    %c0_2 = arith.constant 0 : index
    %3 = vector.load %arg21[%c0, %c0_1, %c0_2] : memref<2x24x32xf32, #tpu.memory_space<vmem>>, vector<2x24x32xf32>
    %4 = vector.shape_cast %3 : vector<2x24x32xf32> to vector<48x32xf32>
    %c0_3 = arith.constant 0 : index
    %c0_4 = arith.constant 0 : index
    %c0_5 = arith.constant 0 : index
    %5 = vector.load %arg5[%c0_3, %c0_4, %c0_5] : memref<1x1x32xf32, #tpu.memory_space<vmem>>, vector<1x1x32xf32>
    %6 = vector.shape_cast %5 : vector<1x1x32xf32> to vector<1x32xf32>
    %c0_6 = arith.constant 0 : index
    %c0_7 = arith.constant 0 : index
    %c0_8 = arith.constant 0 : index
    %7 = vector.load %arg6[%c0_6, %c0_7, %c0_8] : memref<1x1x32xf32, #tpu.memory_space<vmem>>, vector<1x1x32xf32>
    %8 = vector.shape_cast %7 : vector<1x1x32xf32> to vector<1x32xf32>
    %cst = arith.constant dense<0.000000e+00> : vector<48xf32>
    %9 = vector.multi_reduction <add>, %4, %cst [1] : vector<48x32xf32> to vector<48xf32>
    %10 = vector.shape_cast %9 : vector<48xf32> to vector<48x1xf32>
    %cst_9 = arith.constant 3.200000e+01 : f32
    %11 = vector.broadcast %cst_9 : f32 to vector<48x1xf32>
    %12 = arith.divf %10, %11 : vector<48x1xf32>
    %13 = vector.broadcast %12 : vector<48x1xf32> to vector<48x32xf32>
    %14 = arith.subf %4, %13 : vector<48x32xf32>
    %15 = arith.mulf %14, %14 : vector<48x32xf32>
    %cst_10 = arith.constant dense<0.000000e+00> : vector<48xf32>
    %16 = vector.multi_reduction <add>, %15, %cst_10 [1] : vector<48x32xf32> to vector<48xf32>
    %17 = vector.shape_cast %16 : vector<48xf32> to vector<48x1xf32>
    %cst_11 = arith.constant 3.200000e+01 : f32
    %18 = vector.broadcast %cst_11 : f32 to vector<48x1xf32>
    %19 = arith.divf %17, %18 : vector<48x1xf32>
    %20 = vector.broadcast %12 : vector<48x1xf32> to vector<48x32xf32>
    %21 = arith.subf %4, %20 : vector<48x32xf32>
    %cst_12 = arith.constant 9.99999974E-6 : f32
    %22 = vector.broadcast %cst_12 : f32 to vector<48x1xf32>
    %23 = arith.addf %19, %22 : vector<48x1xf32>
    %24 = math.rsqrt %23 : vector<48x1xf32>
    %25 = vector.broadcast %24 : vector<48x1xf32> to vector<48x32xf32>
    %26 = arith.mulf %21, %25 : vector<48x32xf32>
    %27 = vector.broadcast %6 : vector<1x32xf32> to vector<48x32xf32>
    %28 = arith.mulf %26, %27 : vector<48x32xf32>
    %29 = vector.broadcast %8 : vector<1x32xf32> to vector<48x32xf32>
    %30 = arith.addf %28, %29 : vector<48x32xf32>
    %31 = arith.truncf %30 : vector<48x32xf32> to vector<48x32xbf16>
    %c0_13 = arith.constant 0 : index
    %c0_14 = arith.constant 0 : index
    %c0_15 = arith.constant 0 : index
    %32 = vector.load %arg7[%c0_13, %c0_14, %c0_15] : memref<1x32x64xbf16, #tpu.memory_space<vmem>>, vector<1x32x64xbf16>
    %33 = vector.shape_cast %32 : vector<1x32x64xbf16> to vector<32x64xbf16>
    %cst_16 = arith.constant dense<0.000000e+00> : vector<48x64xf32>
    %34 = tpu.matmul %31, %33, %cst_16 {dimension_numbers = #tpu.dot_dimension_numbers<[1], [0], [0], [1], [0, 0, 1, 1], [], []>} : vector<48x32xbf16>, vector<32x64xbf16>, vector<48x64xf32> -> vector<48x64xf32>
    %c0_17 = arith.constant 0 : index
    %c0_18 = arith.constant 0 : index
    %c0_19 = arith.constant 0 : index
    %35 = vector.load %arg8[%c0_17, %c0_18, %c0_19] : memref<1x1x64xf32, #tpu.memory_space<vmem>>, vector<1x1x64xf32>
    %36 = vector.shape_cast %35 : vector<1x1x64xf32> to vector<1x64xf32>
    %37 = vector.broadcast %36 : vector<1x64xf32> to vector<48x64xf32>
    %38 = arith.addf %34, %37 : vector<48x64xf32>
    %39 = vector.extract_strided_slice %38 {offsets = [0, 0], sizes = [48, 32], strides = [1, 1]} : vector<48x64xf32> to vector<48x32xf32>
    %40 = vector.extract_strided_slice %38 {offsets = [0, 32], sizes = [48, 32], strides = [1, 1]} : vector<48x64xf32> to vector<48x32xf32>
    %cst_20 = arith.constant 0.000000e+00 : f32
    %41 = vector.broadcast %cst_20 : f32 to vector<48x32xf32>
    %42 = arith.subf %41, %39 : vector<48x32xf32>
    %43 = math.exp %42 : vector<48x32xf32>
    %cst_21 = arith.constant 1.000000e+00 : f32
    %44 = vector.broadcast %cst_21 : f32 to vector<48x32xf32>
    %45 = arith.addf %44, %43 : vector<48x32xf32>
    %cst_22 = arith.constant 1.000000e+00 : f32
    %46 = vector.broadcast %cst_22 : f32 to vector<48x32xf32>
    %47 = arith.divf %46, %45 : vector<48x32xf32>
    %48 = arith.mulf %39, %47 : vector<48x32xf32>
    %49 = arith.truncf %48 : vector<48x32xf32> to vector<48x32xbf16>
    %c0_23 = arith.constant 0 : index
    %c0_24 = arith.constant 0 : index
    %c0_25 = arith.constant 0 : index
    %50 = vector.load %arg9[%c0_23, %c0_24, %c0_25] : memref<1x32x32xbf16, #tpu.memory_space<vmem>>, vector<1x32x32xbf16>
    %51 = vector.shape_cast %50 : vector<1x32x32xbf16> to vector<32x32xbf16>
    %cst_26 = arith.constant dense<0.000000e+00> : vector<48x32xf32>
    %52 = tpu.matmul %49, %51, %cst_26 {dimension_numbers = #tpu.dot_dimension_numbers<[1], [0], [0], [1], [0, 0, 1, 1], [], []>} : vector<48x32xbf16>, vector<32x32xbf16>, vector<48x32xf32> -> vector<48x32xf32>
    %c0_27 = arith.constant 0 : index
    %c0_28 = arith.constant 0 : index
    %c0_29 = arith.constant 0 : index
    %53 = vector.load %arg10[%c0_27, %c0_28, %c0_29] : memref<1x1x32xf32, #tpu.memory_space<vmem>>, vector<1x1x32xf32>
    %54 = vector.shape_cast %53 : vector<1x1x32xf32> to vector<1x32xf32>
    %55 = vector.broadcast %54 : vector<1x32xf32> to vector<48x32xf32>
    %56 = arith.addf %52, %55 : vector<48x32xf32>
    %cst_30 = arith.constant 0.000000e+00 : f32
    %57 = vector.broadcast %cst_30 : f32 to vector<48x32xf32>
    %58 = arith.maximumf %56, %57 : vector<48x32xf32>
    %59 = math.absf %56 : vector<48x32xf32>
    %cst_31 = arith.constant 0.000000e+00 : f32
    %60 = vector.broadcast %cst_31 : f32 to vector<48x32xf32>
    %61 = arith.subf %60, %59 : vector<48x32xf32>
    %62 = math.exp %61 : vector<48x32xf32>
    %cst_32 = arith.constant 1.000000e+00 : f32
    %63 = vector.broadcast %cst_32 : f32 to vector<48x32xf32>
    %64 = arith.addf %63, %62 : vector<48x32xf32>
    %65 = math.log %64 : vector<48x32xf32>
    %66 = arith.addf %58, %65 : vector<48x32xf32>
    %c0_33 = arith.constant 0 : index
    %c0_34 = arith.constant 0 : index
    %c0_35 = arith.constant 0 : index
    %67 = vector.load %arg11[%c0_33, %c0_34, %c0_35] : memref<1x32x16xbf16, #tpu.memory_space<vmem>>, vector<1x32x16xbf16>
    %68 = vector.shape_cast %67 : vector<1x32x16xbf16> to vector<32x16xbf16>
    %cst_36 = arith.constant dense<0.000000e+00> : vector<48x16xf32>
    %69 = tpu.matmul %31, %68, %cst_36 {dimension_numbers = #tpu.dot_dimension_numbers<[1], [0], [0], [1], [0, 0, 1, 1], [], []>} : vector<48x32xbf16>, vector<32x16xbf16>, vector<48x16xf32> -> vector<48x16xf32>
    %c0_37 = arith.constant 0 : index
    %c0_38 = arith.constant 0 : index
    %c0_39 = arith.constant 0 : index
    %70 = vector.load %arg12[%c0_37, %c0_38, %c0_39] : memref<1x8x32xf32, #tpu.memory_space<vmem>>, vector<1x8x32xf32>
    %71 = vector.shape_cast %70 : vector<1x8x32xf32> to vector<8x32xf32>
    %72 = math.exp %71 : vector<8x32xf32>
    %cst_40 = arith.constant 0.000000e+00 : f32
    %73 = vector.broadcast %cst_40 : f32 to vector<8x32xf32>
    %74 = arith.subf %73, %72 : vector<8x32xf32>
    %75 = vector.shape_cast %66 : vector<48x32xf32> to vector<2x24x32xf32>
    %c0_41 = arith.constant 0 : index
    %c0_42 = arith.constant 0 : index
    %c0_43 = arith.constant 0 : index
    %76 = vector.load %arg22[%c0_41, %c0_42, %c0_43] : memref<2x24x32xf32, #tpu.memory_space<vmem>>, vector<2x24x32xf32>
    tpu.vector_store %arg22[%c0_41, %c0_42, %c0_43], %75 {strides = array<i32>} : memref<2x24x32xf32, #tpu.memory_space<vmem>>, vector<2x24x32xf32>,
    %77 = arith.mulf %66, %48 : vector<48x32xf32>
    %78 = vector.shape_cast %77 : vector<48x32xf32> to vector<2x24x32xf32>
    %c0_44 = arith.constant 0 : index
    %c0_45 = arith.constant 0 : index
    %c0_46 = arith.constant 0 : index
    %79 = vector.load %arg23[%c0_44, %c0_45, %c0_46] : memref<2x24x32xf32, #tpu.memory_space<vmem>>, vector<2x24x32xf32>
    tpu.vector_store %arg23[%c0_44, %c0_45, %c0_46], %78 {strides = array<i32>} : memref<2x24x32xf32, #tpu.memory_space<vmem>>, vector<2x24x32xf32>,
    %80 = vector.shape_cast %69 : vector<48x16xf32> to vector<2x24x16xf32>
    %c0_47 = arith.constant 0 : index
    %c0_48 = arith.constant 0 : index
    %c0_49 = arith.constant 0 : index
    %81 = vector.load %arg24[%c0_47, %c0_48, %c0_49] : memref<2x24x16xf32, #tpu.memory_space<vmem>>, vector<2x24x16xf32>
    tpu.vector_store %arg24[%c0_47, %c0_48, %c0_49], %80 {strides = array<i32>} : memref<2x24x16xf32, #tpu.memory_space<vmem>>, vector<2x24x16xf32>,
    %cst_50 = arith.constant 0.000000e+00 : f32
    %82 = vector.broadcast %cst_50 : f32 to vector<2x8x32xf32>
    %c0_i32_51 = arith.constant 0 : i32
    %c3_i32 = arith.constant 3 : i32
    %83 = arith.addi %c0_i32_51, %c3_i32 : i32
    %c1_i32 = arith.constant 1 : i32
    %84 = scf.for %arg26 = %c0_i32_51 to %83 step %c1_i32 iter_args(%arg27 = %82) -> (vector<2x8x32xf32>)  : i32 {
      %c8_i32 = arith.constant 8 : i32
      %115 = arith.muli %arg26, %c8_i32 : i32
      %116 = tpu.assume_multiple %115, 8 : i32
      %c0_73 = arith.constant 0 : index
      %117 = arith.index_cast %116 : i32 to index
      %c0_74 = arith.constant 0 : index
      %118 = vector.load %arg22[%c0_73, %117, %c0_74] : memref<2x24x32xf32, #tpu.memory_space<vmem>>, vector<2x8x32xf32>
      %c0_75 = arith.constant 0 : index
      %119 = arith.index_cast %116 : i32 to index
      %c0_76 = arith.constant 0 : index
      %120 = vector.load %arg23[%c0_75, %119, %c0_76] : memref<2x24x32xf32, #tpu.memory_space<vmem>>, vector<2x8x32xf32>
      %c0_77 = arith.constant 0 : index
      %121 = arith.index_cast %116 : i32 to index
      %c0_78 = arith.constant 0 : index
      %122 = vector.load %arg24[%c0_77, %121, %c0_78] : memref<2x24x16xf32, #tpu.memory_space<vmem>>, vector<2x8x16xf32>
      %123 = vector.shape_cast %118 : vector<2x8x32xf32> to vector<2x8x1x32xf32>
      %124 = vector.shape_cast %74 : vector<8x32xf32> to vector<1x1x8x32xf32>
      %125 = vector.broadcast %123 : vector<2x8x1x32xf32> to vector<2x8x8x32xf32>
      %126 = vector.broadcast %124 : vector<1x1x8x32xf32> to vector<2x8x8x32xf32>
      %127 = arith.mulf %125, %126 : vector<2x8x8x32xf32>
      %128 = math.exp %127 : vector<2x8x8x32xf32>
      %129 = vector.shape_cast %120 : vector<2x8x32xf32> to vector<2x8x1x32xf32>
      %130 = vector.extract_strided_slice %122 {offsets = [0, 0, 0], sizes = [2, 8, 8], strides = [1, 1, 1]} : vector<2x8x16xf32> to vector<2x8x8xf32>
      %131 = vector.shape_cast %130 : vector<2x8x8xf32> to vector<2x8x8x1xf32>
      %132 = vector.broadcast %129 : vector<2x8x1x32xf32> to vector<2x8x8x32xf32>
      %133 = vector.broadcast %131 : vector<2x8x8x1xf32> to vector<2x8x8x32xf32>
      %134 = arith.mulf %132, %133 : vector<2x8x8x32xf32>
      %135 = vector.extract_strided_slice %128 {offsets = [0, 0, 0, 0], sizes = [2, 1, 8, 32], strides = [1, 1, 1, 1]} : vector<2x8x8x32xf32> to vector<2x1x8x32xf32>
      %136 = vector.shape_cast %135 : vector<2x1x8x32xf32> to vector<2x8x32xf32>
      %137 = arith.mulf %136, %arg27 : vector<2x8x32xf32>
      %138 = vector.extract_strided_slice %134 {offsets = [0, 0, 0, 0], sizes = [2, 1, 8, 32], strides = [1, 1, 1, 1]} : vector<2x8x8x32xf32> to vector<2x1x8x32xf32>
      %139 = vector.shape_cast %138 : vector<2x1x8x32xf32> to vector<2x8x32xf32>
      %140 = arith.addf %137, %139 : vector<2x8x32xf32>
      %141 = vector.extract_strided_slice %122 {offsets = [0, 0, 8], sizes = [2, 1, 8], strides = [1, 1, 1]} : vector<2x8x16xf32> to vector<2x1x8xf32>
      %142 = vector.shape_cast %141 : vector<2x1x8xf32> to vector<2x8xf32>
      %143 = vector.shape_cast %142 : vector<2x8xf32> to vector<2x8x1xf32>
      %144 = vector.broadcast %143 : vector<2x8x1xf32> to vector<2x8x32xf32>
      %145 = arith.mulf %140, %144 : vector<2x8x32xf32>
      %cst_79 = arith.constant dense<0.000000e+00> : vector<2x32xf32>
      %146 = vector.multi_reduction <add>, %145, %cst_79 [1] : vector<2x8x32xf32> to vector<2x32xf32>
      %147 = vector.extract_strided_slice %128 {offsets = [0, 1, 0, 0], sizes = [2, 1, 8, 32], strides = [1, 1, 1, 1]} : vector<2x8x8x32xf32> to vector<2x1x8x32xf32>
      %148 = vector.shape_cast %147 : vector<2x1x8x32xf32> to vector<2x8x32xf32>
      %149 = arith.mulf %148, %140 : vector<2x8x32xf32>
      %150 = vector.extract_strided_slice %134 {offsets = [0, 1, 0, 0], sizes = [2, 1, 8, 32], strides = [1, 1, 1, 1]} : vector<2x8x8x32xf32> to vector<2x1x8x32xf32>
      %151 = vector.shape_cast %150 : vector<2x1x8x32xf32> to vector<2x8x32xf32>
      %152 = arith.addf %149, %151 : vector<2x8x32xf32>
      %153 = vector.extract_strided_slice %122 {offsets = [0, 1, 8], sizes = [2, 1, 8], strides = [1, 1, 1]} : vector<2x8x16xf32> to vector<2x1x8xf32>
      %154 = vector.shape_cast %153 : vector<2x1x8xf32> to vector<2x8xf32>
      %155 = vector.shape_cast %154 : vector<2x8xf32> to vector<2x8x1xf32>
      %156 = vector.broadcast %155 : vector<2x8x1xf32> to vector<2x8x32xf32>
      %157 = arith.mulf %152, %156 : vector<2x8x32xf32>
      %cst_80 = arith.constant dense<0.000000e+00> : vector<2x32xf32>
      %158 = vector.multi_reduction <add>, %157, %cst_80 [1] : vector<2x8x32xf32> to vector<2x32xf32>
      %159 = vector.extract_strided_slice %128 {offsets = [0, 2, 0, 0], sizes = [2, 1, 8, 32], strides = [1, 1, 1, 1]} : vector<2x8x8x32xf32> to vector<2x1x8x32xf32>
      %160 = vector.shape_cast %159 : vector<2x1x8x32xf32> to vector<2x8x32xf32>
      %161 = arith.mulf %160, %152 : vector<2x8x32xf32>
      %162 = vector.extract_strided_slice %134 {offsets = [0, 2, 0, 0], sizes = [2, 1, 8, 32], strides = [1, 1, 1, 1]} : vector<2x8x8x32xf32> to vector<2x1x8x32xf32>
      %163 = vector.shape_cast %162 : vector<2x1x8x32xf32> to vector<2x8x32xf32>
      %164 = arith.addf %161, %163 : vector<2x8x32xf32>
      %165 = vector.extract_strided_slice %122 {offsets = [0, 2, 8], sizes = [2, 1, 8], strides = [1, 1, 1]} : vector<2x8x16xf32> to vector<2x1x8xf32>
      %166 = vector.shape_cast %165 : vector<2x1x8xf32> to vector<2x8xf32>
      %167 = vector.shape_cast %166 : vector<2x8xf32> to vector<2x8x1xf32>
      %168 = vector.broadcast %167 : vector<2x8x1xf32> to vector<2x8x32xf32>
      %169 = arith.mulf %164, %168 : vector<2x8x32xf32>
      %cst_81 = arith.constant dense<0.000000e+00> : vector<2x32xf32>
      %170 = vector.multi_reduction <add>, %169, %cst_81 [1] : vector<2x8x32xf32> to vector<2x32xf32>
      %171 = vector.extract_strided_slice %128 {offsets = [0, 3, 0, 0], sizes = [2, 1, 8, 32], strides = [1, 1, 1, 1]} : vector<2x8x8x32xf32> to vector<2x1x8x32xf32>
      %172 = vector.shape_cast %171 : vector<2x1x8x32xf32> to vector<2x8x32xf32>
      %173 = arith.mulf %172, %164 : vector<2x8x32xf32>
      %174 = vector.extract_strided_slice %134 {offsets = [0, 3, 0, 0], sizes = [2, 1, 8, 32], strides = [1, 1, 1, 1]} : vector<2x8x8x32xf32> to vector<2x1x8x32xf32>
      %175 = vector.shape_cast %174 : vector<2x1x8x32xf32> to vector<2x8x32xf32>
      %176 = arith.addf %173, %175 : vector<2x8x32xf32>
      %177 = vector.extract_strided_slice %122 {offsets = [0, 3, 8], sizes = [2, 1, 8], strides = [1, 1, 1]} : vector<2x8x16xf32> to vector<2x1x8xf32>
      %178 = vector.shape_cast %177 : vector<2x1x8xf32> to vector<2x8xf32>
      %179 = vector.shape_cast %178 : vector<2x8xf32> to vector<2x8x1xf32>
      %180 = vector.broadcast %179 : vector<2x8x1xf32> to vector<2x8x32xf32>
      %181 = arith.mulf %176, %180 : vector<2x8x32xf32>
      %cst_82 = arith.constant dense<0.000000e+00> : vector<2x32xf32>
      %182 = vector.multi_reduction <add>, %181, %cst_82 [1] : vector<2x8x32xf32> to vector<2x32xf32>
      %183 = vector.extract_strided_slice %128 {offsets = [0, 4, 0, 0], sizes = [2, 1, 8, 32], strides = [1, 1, 1, 1]} : vector<2x8x8x32xf32> to vector<2x1x8x32xf32>
      %184 = vector.shape_cast %183 : vector<2x1x8x32xf32> to vector<2x8x32xf32>
      %185 = arith.mulf %184, %176 : vector<2x8x32xf32>
      %186 = vector.extract_strided_slice %134 {offsets = [0, 4, 0, 0], sizes = [2, 1, 8, 32], strides = [1, 1, 1, 1]} : vector<2x8x8x32xf32> to vector<2x1x8x32xf32>
      %187 = vector.shape_cast %186 : vector<2x1x8x32xf32> to vector<2x8x32xf32>
      %188 = arith.addf %185, %187 : vector<2x8x32xf32>
      %189 = vector.extract_strided_slice %122 {offsets = [0, 4, 8], sizes = [2, 1, 8], strides = [1, 1, 1]} : vector<2x8x16xf32> to vector<2x1x8xf32>
      %190 = vector.shape_cast %189 : vector<2x1x8xf32> to vector<2x8xf32>
      %191 = vector.shape_cast %190 : vector<2x8xf32> to vector<2x8x1xf32>
      %192 = vector.broadcast %191 : vector<2x8x1xf32> to vector<2x8x32xf32>
      %193 = arith.mulf %188, %192 : vector<2x8x32xf32>
      %cst_83 = arith.constant dense<0.000000e+00> : vector<2x32xf32>
      %194 = vector.multi_reduction <add>, %193, %cst_83 [1] : vector<2x8x32xf32> to vector<2x32xf32>
      %195 = vector.extract_strided_slice %128 {offsets = [0, 5, 0, 0], sizes = [2, 1, 8, 32], strides = [1, 1, 1, 1]} : vector<2x8x8x32xf32> to vector<2x1x8x32xf32>
      %196 = vector.shape_cast %195 : vector<2x1x8x32xf32> to vector<2x8x32xf32>
      %197 = arith.mulf %196, %188 : vector<2x8x32xf32>
      %198 = vector.extract_strided_slice %134 {offsets = [0, 5, 0, 0], sizes = [2, 1, 8, 32], strides = [1, 1, 1, 1]} : vector<2x8x8x32xf32> to vector<2x1x8x32xf32>
      %199 = vector.shape_cast %198 : vector<2x1x8x32xf32> to vector<2x8x32xf32>
      %200 = arith.addf %197, %199 : vector<2x8x32xf32>
      %201 = vector.extract_strided_slice %122 {offsets = [0, 5, 8], sizes = [2, 1, 8], strides = [1, 1, 1]} : vector<2x8x16xf32> to vector<2x1x8xf32>
      %202 = vector.shape_cast %201 : vector<2x1x8xf32> to vector<2x8xf32>
      %203 = vector.shape_cast %202 : vector<2x8xf32> to vector<2x8x1xf32>
      %204 = vector.broadcast %203 : vector<2x8x1xf32> to vector<2x8x32xf32>
      %205 = arith.mulf %200, %204 : vector<2x8x32xf32>
      %cst_84 = arith.constant dense<0.000000e+00> : vector<2x32xf32>
      %206 = vector.multi_reduction <add>, %205, %cst_84 [1] : vector<2x8x32xf32> to vector<2x32xf32>
      %207 = vector.extract_strided_slice %128 {offsets = [0, 6, 0, 0], sizes = [2, 1, 8, 32], strides = [1, 1, 1, 1]} : vector<2x8x8x32xf32> to vector<2x1x8x32xf32>
      %208 = vector.shape_cast %207 : vector<2x1x8x32xf32> to vector<2x8x32xf32>
      %209 = arith.mulf %208, %200 : vector<2x8x32xf32>
      %210 = vector.extract_strided_slice %134 {offsets = [0, 6, 0, 0], sizes = [2, 1, 8, 32], strides = [1, 1, 1, 1]} : vector<2x8x8x32xf32> to vector<2x1x8x32xf32>
      %211 = vector.shape_cast %210 : vector<2x1x8x32xf32> to vector<2x8x32xf32>
      %212 = arith.addf %209, %211 : vector<2x8x32xf32>
      %213 = vector.extract_strided_slice %122 {offsets = [0, 6, 8], sizes = [2, 1, 8], strides = [1, 1, 1]} : vector<2x8x16xf32> to vector<2x1x8xf32>
      %214 = vector.shape_cast %213 : vector<2x1x8xf32> to vector<2x8xf32>
      %215 = vector.shape_cast %214 : vector<2x8xf32> to vector<2x8x1xf32>
      %216 = vector.broadcast %215 : vector<2x8x1xf32> to vector<2x8x32xf32>
      %217 = arith.mulf %212, %216 : vector<2x8x32xf32>
      %cst_85 = arith.constant dense<0.000000e+00> : vector<2x32xf32>
      %218 = vector.multi_reduction <add>, %217, %cst_85 [1] : vector<2x8x32xf32> to vector<2x32xf32>
      %219 = vector.extract_strided_slice %128 {offsets = [0, 7, 0, 0], sizes = [2, 1, 8, 32], strides = [1, 1, 1, 1]} : vector<2x8x8x32xf32> to vector<2x1x8x32xf32>
      %220 = vector.shape_cast %219 : vector<2x1x8x32xf32> to vector<2x8x32xf32>
      %221 = arith.mulf %220, %212 : vector<2x8x32xf32>
      %222 = vector.extract_strided_slice %134 {offsets = [0, 7, 0, 0], sizes = [2, 1, 8, 32], strides = [1, 1, 1, 1]} : vector<2x8x8x32xf32> to vector<2x1x8x32xf32>
      %223 = vector.shape_cast %222 : vector<2x1x8x32xf32> to vector<2x8x32xf32>
      %224 = arith.addf %221, %223 : vector<2x8x32xf32>
      %225 = vector.extract_strided_slice %122 {offsets = [0, 7, 8], sizes = [2, 1, 8], strides = [1, 1, 1]} : vector<2x8x16xf32> to vector<2x1x8xf32>
      %226 = vector.shape_cast %225 : vector<2x1x8xf32> to vector<2x8xf32>
      %227 = vector.shape_cast %226 : vector<2x8xf32> to vector<2x8x1xf32>
      %228 = vector.broadcast %227 : vector<2x8x1xf32> to vector<2x8x32xf32>
      %229 = arith.mulf %224, %228 : vector<2x8x32xf32>
      %cst_86 = arith.constant dense<0.000000e+00> : vector<2x32xf32>
      %230 = vector.multi_reduction <add>, %229, %cst_86 [1] : vector<2x8x32xf32> to vector<2x32xf32>
      %231 = vector.shape_cast %146 : vector<2x32xf32> to vector<2x1x32xf32>
      %232 = vector.shape_cast %158 : vector<2x32xf32> to vector<2x1x32xf32>
      %233 = vector.shape_cast %170 : vector<2x32xf32> to vector<2x1x32xf32>
      %234 = vector.shape_cast %182 : vector<2x32xf32> to vector<2x1x32xf32>
      %235 = vector.shape_cast %194 : vector<2x32xf32> to vector<2x1x32xf32>
      %236 = vector.shape_cast %206 : vector<2x32xf32> to vector<2x1x32xf32>
      %237 = vector.shape_cast %218 : vector<2x32xf32> to vector<2x1x32xf32>
      %238 = vector.shape_cast %230 : vector<2x32xf32> to vector<2x1x32xf32>
      %239 = tpu.concatenate %231, %232, %233, %234, %235, %236, %237, %238 in 1 : vector<2x1x32xf32>, vector<2x1x32xf32>, vector<2x1x32xf32>, vector<2x1x32xf32>, vector<2x1x32xf32>, vector<2x1x32xf32>, vector<2x1x32xf32>, vector<2x1x32xf32> -> vector<2x8x32xf32>
      %c0_87 = arith.constant 0 : index
      %240 = arith.index_cast %116 : i32 to index
      %c0_88 = arith.constant 0 : index
      %241 = vector.load %arg25[%c0_87, %240, %c0_88] : memref<2x24x32xf32, #tpu.memory_space<vmem>>, vector<2x8x32xf32>
      tpu.vector_store %arg25[%c0_87, %240, %c0_88], %239 {strides = array<i32>} : memref<2x24x32xf32, #tpu.memory_space<vmem>>, vector<2x8x32xf32>,
      scf.yield %224 : vector<2x8x32xf32>
    }
    %c3_i32_52 = arith.constant 3 : i32
    %c0_53 = arith.constant 0 : index
    %c0_54 = arith.constant 0 : index
    %c0_55 = arith.constant 0 : index
    %85 = vector.load %arg25[%c0_53, %c0_54, %c0_55] : memref<2x24x32xf32, #tpu.memory_space<vmem>>, vector<2x24x32xf32>
    %86 = vector.shape_cast %85 : vector<2x24x32xf32> to vector<48x32xf32>
    %c0_56 = arith.constant 0 : index
    %c0_57 = arith.constant 0 : index
    %c0_58 = arith.constant 0 : index
    %87 = vector.load %arg13[%c0_56, %c0_57, %c0_58] : memref<1x1x32xf32, #tpu.memory_space<vmem>>, vector<1x1x32xf32>
    %88 = vector.shape_cast %87 : vector<1x1x32xf32> to vector<1x32xf32>
    %89 = vector.broadcast %88 : vector<1x32xf32> to vector<48x32xf32>
    %90 = arith.mulf %48, %89 : vector<48x32xf32>
    %91 = arith.addf %86, %90 : vector<48x32xf32>
    %cst_59 = arith.constant 0.000000e+00 : f32
    %92 = vector.broadcast %cst_59 : f32 to vector<48x32xf32>
    %93 = arith.subf %92, %40 : vector<48x32xf32>
    %94 = math.exp %93 : vector<48x32xf32>
    %cst_60 = arith.constant 1.000000e+00 : f32
    %95 = vector.broadcast %cst_60 : f32 to vector<48x32xf32>
    %96 = arith.addf %95, %94 : vector<48x32xf32>
    %cst_61 = arith.constant 1.000000e+00 : f32
    %97 = vector.broadcast %cst_61 : f32 to vector<48x32xf32>
    %98 = arith.divf %97, %96 : vector<48x32xf32>
    %99 = arith.mulf %40, %98 : vector<48x32xf32>
    %100 = arith.mulf %91, %99 : vector<48x32xf32>
    %101 = arith.truncf %100 : vector<48x32xf32> to vector<48x32xbf16>
    %c0_62 = arith.constant 0 : index
    %c0_63 = arith.constant 0 : index
    %c0_64 = arith.constant 0 : index
    %102 = vector.load %arg14[%c0_62, %c0_63, %c0_64] : memref<1x32x32xbf16, #tpu.memory_space<vmem>>, vector<1x32x32xbf16>
    %103 = vector.shape_cast %102 : vector<1x32x32xbf16> to vector<32x32xbf16>
    %cst_65 = arith.constant dense<0.000000e+00> : vector<48x32xf32>
    %104 = tpu.matmul %101, %103, %cst_65 {dimension_numbers = #tpu.dot_dimension_numbers<[1], [0], [0], [1], [0, 0, 1, 1], [], []>} : vector<48x32xbf16>, vector<32x32xbf16>, vector<48x32xf32> -> vector<48x32xf32>
    %105 = arith.addf %4, %104 : vector<48x32xf32>
    %c0_66 = arith.constant 0 : index
    %c0_67 = arith.constant 0 : index
    %c0_68 = arith.constant 0 : index
    %106 = vector.load %arg15[%c0_66, %c0_67, %c0_68] : memref<1x1x32xf32, #tpu.memory_space<vmem>>, vector<1x1x32xf32>
    %107 = vector.shape_cast %106 : vector<1x1x32xf32> to vector<1x32xf32>
    %108 = vector.broadcast %107 : vector<1x32xf32> to vector<48x32xf32>
    %109 = arith.addf %105, %108 : vector<48x32xf32>
    %110 = vector.shape_cast %109 : vector<48x32xf32> to vector<2x24x32xf32>
    %c0_69 = arith.constant 0 : index
    %c0_70 = arith.constant 0 : index
    %c0_71 = arith.constant 0 : index
    %111 = vector.load %arg21[%c0_69, %c0_70, %c0_71] : memref<2x24x32xf32, #tpu.memory_space<vmem>>, vector<2x24x32xf32>
    tpu.vector_store %arg21[%c0_69, %c0_70, %c0_71], %110 {strides = array<i32>} : memref<2x24x32xf32, #tpu.memory_space<vmem>>, vector<2x24x32xf32>,
    %c2_i32 = arith.constant 2 : i32
    %112 = arith.cmpi eq, %arg1, %c2_i32 : i32
    %113 = arith.extui %112 : i1 to i32
    %c0_i32_72 = arith.constant 0 : i32
    %114 = arith.cmpi ne, %113, %c0_i32_72 : i32
    scf.if %114 {
      %c0_73 = arith.constant 0 : index
      %c0_74 = arith.constant 0 : index
      %115 = vector.load %arg16[%c0_73, %c0_74] : memref<1x32xf32, #tpu.memory_space<vmem>>, vector<1x32xf32>
      %c0_75 = arith.constant 0 : index
      %c0_76 = arith.constant 0 : index
      %116 = vector.load %arg17[%c0_75, %c0_76] : memref<1x32xf32, #tpu.memory_space<vmem>>, vector<1x32xf32>
      %cst_77 = arith.constant dense<0.000000e+00> : vector<48xf32>
      %117 = vector.multi_reduction <add>, %109, %cst_77 [1] : vector<48x32xf32> to vector<48xf32>
      %118 = vector.shape_cast %117 : vector<48xf32> to vector<48x1xf32>
      %cst_78 = arith.constant 3.200000e+01 : f32
      %119 = vector.broadcast %cst_78 : f32 to vector<48x1xf32>
      %120 = arith.divf %118, %119 : vector<48x1xf32>
      %121 = vector.broadcast %120 : vector<48x1xf32> to vector<48x32xf32>
      %122 = arith.subf %109, %121 : vector<48x32xf32>
      %123 = arith.mulf %122, %122 : vector<48x32xf32>
      %cst_79 = arith.constant dense<0.000000e+00> : vector<48xf32>
      %124 = vector.multi_reduction <add>, %123, %cst_79 [1] : vector<48x32xf32> to vector<48xf32>
      %125 = vector.shape_cast %124 : vector<48xf32> to vector<48x1xf32>
      %cst_80 = arith.constant 3.200000e+01 : f32
      %126 = vector.broadcast %cst_80 : f32 to vector<48x1xf32>
      %127 = arith.divf %125, %126 : vector<48x1xf32>
      %128 = vector.broadcast %120 : vector<48x1xf32> to vector<48x32xf32>
      %129 = arith.subf %109, %128 : vector<48x32xf32>
      %cst_81 = arith.constant 9.99999974E-6 : f32
      %130 = vector.broadcast %cst_81 : f32 to vector<48x1xf32>
      %131 = arith.addf %127, %130 : vector<48x1xf32>
      %132 = math.rsqrt %131 : vector<48x1xf32>
      %133 = vector.broadcast %132 : vector<48x1xf32> to vector<48x32xf32>
      %134 = arith.mulf %129, %133 : vector<48x32xf32>
      %135 = vector.broadcast %115 : vector<1x32xf32> to vector<48x32xf32>
      %136 = arith.mulf %134, %135 : vector<48x32xf32>
      %137 = vector.broadcast %116 : vector<1x32xf32> to vector<48x32xf32>
      %138 = arith.addf %136, %137 : vector<48x32xf32>
      %139 = vector.shape_cast %138 : vector<48x32xf32> to vector<2x24x32xf32>
      %140 = tpu.iota {dimensions = array<i32: 0>} : vector<24x1xi32>
      %c1_i32_82 = arith.constant 1 : i32
      %141 = vector.broadcast %c1_i32_82 : i32 to vector<24x1xi32>
      %142 = arith.cmpi sge, %140, %141 : vector<24x1xi32>
      %c17_i32 = arith.constant 17 : i32
      %143 = vector.broadcast %c17_i32 : i32 to vector<24x1xi32>
      %144 = arith.cmpi slt, %140, %143 : vector<24x1xi32>
      %145 = arith.andi %142, %144 : vector<24x1xi1>
      %146 = arith.extui %145 : vector<24x1xi1> to vector<24x1xi32>
      %147 = arith.sitofp %146 : vector<24x1xi32> to vector<24x1xf32>
      %148 = vector.shape_cast %147 : vector<24x1xf32> to vector<1x24x1xf32>
      %149 = vector.broadcast %148 : vector<1x24x1xf32> to vector<2x24x32xf32>
      %150 = arith.mulf %139, %149 : vector<2x24x32xf32>
      %cst_83 = arith.constant dense<0.000000e+00> : vector<2x32xf32>
      %151 = vector.multi_reduction <add>, %150, %cst_83 [1] : vector<2x24x32xf32> to vector<2x32xf32>
      %cst_84 = arith.constant 1.600000e+01 : f32
      %152 = vector.broadcast %cst_84 : f32 to vector<2x32xf32>
      %153 = arith.divf %151, %152 : vector<2x32xf32>
      %154 = arith.truncf %153 : vector<2x32xf32> to vector<2x32xbf16>
      %c0_85 = arith.constant 0 : index
      %c0_86 = arith.constant 0 : index
      %155 = vector.load %arg18[%c0_85, %c0_86] : memref<32x128xbf16, #tpu.memory_space<vmem>>, vector<32x128xbf16>
      %cst_87 = arith.constant dense<0.000000e+00> : vector<2x128xf32>
      %156 = tpu.matmul %154, %155, %cst_87 {dimension_numbers = #tpu.dot_dimension_numbers<[1], [0], [0], [1], [0, 0, 1, 1], [], []>} : vector<2x32xbf16>, vector<32x128xbf16>, vector<2x128xf32> -> vector<2x128xf32>
      %c0_88 = arith.constant 0 : index
      %c0_89 = arith.constant 0 : index
      %157 = vector.load %arg19[%c0_88, %c0_89] : memref<1x128xf32, #tpu.memory_space<vmem>>, vector<1x128xf32>
      %158 = vector.broadcast %157 : vector<1x128xf32> to vector<2x128xf32>
      %159 = arith.addf %156, %158 : vector<2x128xf32>
      %cst_90 = arith.constant 0.000000e+00 : f32
      %160 = vector.broadcast %cst_90 : f32 to vector<2x128xf32>
      %161 = arith.subf %160, %159 : vector<2x128xf32>
      %162 = math.exp %161 : vector<2x128xf32>
      %cst_91 = arith.constant 1.000000e+00 : f32
      %163 = vector.broadcast %cst_91 : f32 to vector<2x128xf32>
      %164 = arith.addf %163, %162 : vector<2x128xf32>
      %cst_92 = arith.constant 1.000000e+00 : f32
      %165 = vector.broadcast %cst_92 : f32 to vector<2x128xf32>
      %166 = arith.divf %165, %164 : vector<2x128xf32>
      %167 = vector.shape_cast %166 : vector<2x128xf32> to vector<2x1x128xf32>
      %c0_93 = arith.constant 0 : index
      %c0_94 = arith.constant 0 : index
      %c0_95 = arith.constant 0 : index
      %168 = vector.load %arg20[%c0_93, %c0_94, %c0_95] : memref<2x1x128xf32, #tpu.memory_space<vmem>>, vector<2x1x128xf32>
      tpu.vector_store %arg20[%c0_93, %c0_94, %c0_95], %167 {strides = array<i32>} : memref<2x1x128xf32, #tpu.memory_space<vmem>>, vector<2x1x128xf32>,
    } else {
    }
    return
  }
  func.func @transform_0(%arg0: i32, %arg1: i32) -> (i32, i32, i32) {
    %c0_i32 = arith.constant 0 : i32
    %c0_i32_0 = arith.constant 0 : i32
    %c0_i32_1 = arith.constant 0 : i32
    return %arg0, %c0_i32, %c0_i32_0 : i32, i32, i32
  }
  func.func @transform_1(%arg0: i32, %arg1: i32) -> (i32, i32, i32) {
    %c0_i32 = arith.constant 0 : i32
    %c0_i32_0 = arith.constant 0 : i32
    %c0_i32_1 = arith.constant 0 : i32
    %c0_i32_2 = arith.constant 0 : i32
    return %c0_i32, %c0_i32_0, %c0_i32_1 : i32, i32, i32
  }
  func.func @transform_2(%arg0: i32, %arg1: i32) -> (i32, i32, i32) {
    %c0_i32 = arith.constant 0 : i32
    %c0_i32_0 = arith.constant 0 : i32
    %c0_i32_1 = arith.constant 0 : i32
    %c0_i32_2 = arith.constant 0 : i32
    return %c0_i32, %c0_i32_0, %c0_i32_1 : i32, i32, i32
  }
  func.func @transform_3(%arg0: i32, %arg1: i32) -> (i32, i32, i32) {
    %c0_i32 = arith.constant 0 : i32
    %c0_i32_0 = arith.constant 0 : i32
    %c0_i32_1 = arith.constant 0 : i32
    return %arg1, %c0_i32, %c0_i32_0 : i32, i32, i32
  }
  func.func @transform_4(%arg0: i32, %arg1: i32) -> (i32, i32, i32) {
    %c0_i32 = arith.constant 0 : i32
    %c0_i32_0 = arith.constant 0 : i32
    %c0_i32_1 = arith.constant 0 : i32
    return %arg1, %c0_i32, %c0_i32_0 : i32, i32, i32
  }
  func.func @transform_5(%arg0: i32, %arg1: i32) -> (i32, i32, i32) {
    %c0_i32 = arith.constant 0 : i32
    %c0_i32_0 = arith.constant 0 : i32
    %c0_i32_1 = arith.constant 0 : i32
    return %arg1, %c0_i32, %c0_i32_0 : i32, i32, i32
  }
  func.func @transform_6(%arg0: i32, %arg1: i32) -> (i32, i32, i32) {
    %c0_i32 = arith.constant 0 : i32
    %c0_i32_0 = arith.constant 0 : i32
    %c0_i32_1 = arith.constant 0 : i32
    return %arg1, %c0_i32, %c0_i32_0 : i32, i32, i32
  }
  func.func @transform_7(%arg0: i32, %arg1: i32) -> (i32, i32, i32) {
    %c0_i32 = arith.constant 0 : i32
    %c0_i32_0 = arith.constant 0 : i32
    %c0_i32_1 = arith.constant 0 : i32
    return %arg1, %c0_i32, %c0_i32_0 : i32, i32, i32
  }
  func.func @transform_8(%arg0: i32, %arg1: i32) -> (i32, i32, i32) {
    %c0_i32 = arith.constant 0 : i32
    %c0_i32_0 = arith.constant 0 : i32
    %c0_i32_1 = arith.constant 0 : i32
    return %arg1, %c0_i32, %c0_i32_0 : i32, i32, i32
  }
  func.func @transform_9(%arg0: i32, %arg1: i32) -> (i32, i32, i32) {
    %c0_i32 = arith.constant 0 : i32
    %c0_i32_0 = arith.constant 0 : i32
    %c0_i32_1 = arith.constant 0 : i32
    return %arg1, %c0_i32, %c0_i32_0 : i32, i32, i32
  }
  func.func @transform_10(%arg0: i32, %arg1: i32) -> (i32, i32, i32) {
    %c0_i32 = arith.constant 0 : i32
    %c0_i32_0 = arith.constant 0 : i32
    %c0_i32_1 = arith.constant 0 : i32
    return %arg1, %c0_i32, %c0_i32_0 : i32, i32, i32
  }
  func.func @transform_11(%arg0: i32, %arg1: i32) -> (i32, i32, i32) {
    %c0_i32 = arith.constant 0 : i32
    %c0_i32_0 = arith.constant 0 : i32
    %c0_i32_1 = arith.constant 0 : i32
    return %arg1, %c0_i32, %c0_i32_0 : i32, i32, i32
  }
  func.func @transform_12(%arg0: i32, %arg1: i32) -> (i32, i32, i32) {
    %c0_i32 = arith.constant 0 : i32
    %c0_i32_0 = arith.constant 0 : i32
    %c0_i32_1 = arith.constant 0 : i32
    return %arg1, %c0_i32, %c0_i32_0 : i32, i32, i32
  }
  func.func @transform_13(%arg0: i32, %arg1: i32) -> (i32, i32, i32) {
    %c0_i32 = arith.constant 0 : i32
    %c0_i32_0 = arith.constant 0 : i32
    %c0_i32_1 = arith.constant 0 : i32
    return %arg1, %c0_i32, %c0_i32_0 : i32, i32, i32
  }
  func.func @transform_14(%arg0: i32, %arg1: i32) -> (i32, i32) {
    %c0_i32 = arith.constant 0 : i32
    %c0_i32_0 = arith.constant 0 : i32
    %c0_i32_1 = arith.constant 0 : i32
    return %c0_i32, %c0_i32_0 : i32, i32
  }
  func.func @transform_15(%arg0: i32, %arg1: i32) -> (i32, i32) {
    %c0_i32 = arith.constant 0 : i32
    %c0_i32_0 = arith.constant 0 : i32
    %c0_i32_1 = arith.constant 0 : i32
    return %c0_i32, %c0_i32_0 : i32, i32
  }
  func.func @transform_16(%arg0: i32, %arg1: i32) -> (i32, i32) {
    %c0_i32 = arith.constant 0 : i32
    %c0_i32_0 = arith.constant 0 : i32
    %c0_i32_1 = arith.constant 0 : i32
    return %c0_i32, %c0_i32_0 : i32, i32
  }
  func.func @transform_17(%arg0: i32, %arg1: i32) -> (i32, i32) {
    %c0_i32 = arith.constant 0 : i32
    %c0_i32_0 = arith.constant 0 : i32
    %c0_i32_1 = arith.constant 0 : i32
    return %c0_i32, %c0_i32_0 : i32, i32
  }
  func.func @transform_18(%arg0: i32, %arg1: i32) -> (i32, i32, i32) {
    %c0_i32 = arith.constant 0 : i32
    %c0_i32_0 = arith.constant 0 : i32
    %c0_i32_1 = arith.constant 0 : i32
    return %arg0, %c0_i32, %c0_i32_0 : i32, i32, i32
  }
}

</mosaic_0001>

<llo_original>
// kernel: masking_net_forward.1
$region0: #{masking_net_forward.1}
  #allocation0 [shape = 'u32[]', space=smem, size = 0x4, offset = 0x4, fixed_abs, tag = 'smem constant byte address 0x4 - core index']
  #allocation1 [shape = 'u32[72,128]{1,0:T(1,128)}', space=vmem, size = 0x9000, scoped, tag = 'internal scratch']
  #allocation2 [shape = 'f32[2,24,32]{2,1,0:T(8,128)}', space=vmem, size = 0x6000, scoped, tag = 'scratch operand']
  #allocation3 [shape = 'f32[2,24,32]{2,1,0:T(8,128)}', space=vmem, size = 0x6000, scoped, tag = 'scratch operand']
  #allocation4 [shape = 'f32[2,24,32]{2,1,0:T(8,128)}', space=vmem, size = 0x6000, scoped, tag = 'scratch operand']
  #allocation5 [shape = 'f32[2,24,16]{2,1,0:T(8,128)}', space=vmem, size = 0x6000, scoped, tag = 'scratch operand']
  #allocation6 [shape = 'f32[2,24,32]{2,1,0:T(8,128)}', space=vmem, size = 0x6000, scoped, tag = 'scratch operand']
  %s0 = inlined_call_operand.vmem [shape: f32[4,16,32], index: 0, kind: input, shape index: {}]
  %s1 = inlined_call_operand.vmem [shape: f32[1,1,32], index: 1, kind: input, shape index: {}]
  %s2 = inlined_call_operand.vmem [shape: f32[1,17,32], index: 2, kind: input, shape index: {}]
  %s3 = inlined_call_operand.vmem [shape: f32[3,1,32], index: 3, kind: input, shape index: {}]
  %s4 = inlined_call_operand.vmem [shape: f32[3,1,32], index: 4, kind: input, shape index: {}]
  %s5 = inlined_call_operand.hbm [shape: bf16[3,32,64], index: 5, kind: input, shape index: {}]
  %s6 = inlined_call_operand.vmem [shape: f32[3,1,64], index: 6, kind: input, shape index: {}]
  %s7 = inlined_call_operand.hbm [shape: bf16[3,32,32], index: 7, kind: input, shape index: {}]
  %s8 = inlined_call_operand.vmem [shape: f32[3,1,32], index: 8, kind: input, shape index: {}]
  %s9 = inlined_call_operand.vmem [shape: bf16[3,32,16], index: 9, kind: input, shape index: {}]
  %s10 = inlined_call_operand.vmem [shape: f32[3,8,32], index: 10, kind: input, shape index: {}]
  %s11 = inlined_call_operand.vmem [shape: f32[3,1,32], index: 11, kind: input, shape index: {}]
  %s12 = inlined_call_operand.hbm [shape: bf16[3,32,32], index: 12, kind: input, shape index: {}]
  %s13 = inlined_call_operand.vmem [shape: f32[3,1,32], index: 13, kind: input, shape index: {}]
  %s14 = inlined_call_operand.vmem [shape: f32[1,32], index: 14, kind: input, shape index: {}]
  %s15 = inlined_call_operand.vmem [shape: f32[1,32], index: 15, kind: input, shape index: {}]
  %s16 = inlined_call_operand.vmem [shape: bf16[32,128], index: 16, kind: input, shape index: {}]
  %s17 = inlined_call_operand.vmem [shape: f32[1,128], index: 17, kind: input, shape index: {}]
  %s18 = inlined_call_operand.hbm [shape: f32[4,1,128], index: 18, kind: output, shape index: {}]
  %s19 = sld [smem:[#allocation0]]
  $region132: #{masking_net_forward.1} parent=0
    _
  %s21 = ssub.s32 1, %s19
  %s22 = scalar_select 0, %s21, %s19
  $region1: #{masking_net_forward.1} parent=0
    #allocation7 [shape = 'u8[16384]{0}', space=vmem, size = 0x4000, scoped, tag = 'input window, operand 5']
    #allocation8 [shape = 's32[2]{0}', space=sflag, size = 0x8, scoped, tag = 'scoped memory for masking_net_forward.1']
    #allocation9 [shape = 's32[2]{0}', space=sflag, size = 0x8, scoped, tag = 'scoped memory for masking_net_forward.1']
    #allocation10 [shape = 'u8[16384]{0}', space=vmem, size = 0x4000, scoped, tag = 'input window, operand 7']
    #allocation11 [shape = 's32[2]{0}', space=sflag, size = 0x8, scoped, tag = 'scoped memory for masking_net_forward.1']
    #allocation12 [shape = 'u8[16384]{0}', space=vmem, size = 0x4000, scoped, tag = 'input window, operand 12']
    #allocation13 [shape = 'u8[2048]{0}', space=vmem, size = 0x800, scoped, tag = 'output window, operand 0']
    %23 = vsyncpa [#allocation8], 0
    %s24 = scalar_lea.sflag [#allocation8], 1
    %25 = vsyncpa %s24, 0
    %26 = vsyncpa [#allocation11], 0
    %s27 = scalar_lea.sflag [#allocation11], 1
    %28 = vsyncpa %s27, 0
    %29 = vsyncpa [#allocation9], 0
    %s30 = scalar_lea.sflag [#allocation9], 1
    %31 = vsyncpa %s30, 0
    loop: start=0, step=1, limit=8
    $region2: #{masking_net_forward.1} parent=1 // loop_pre_header
      _
    $region3: #{masking_net_forward.1} parent=1 // loop_header
      %s33 = sphi 0, %s37
      %p34 = scmp.ge.s32.totalorder %s33, 8
      %s40 = sphi 0, %s52
      %s41 = sphi 0, %s48
      %s42 = sphi 0, %s40
      %s43 = sphi 0, %s41
      %s44 = sphi 0, %s42
      %s45 = sphi 0, %s43
      %s55 = sphi 0, %s57
      %s58 = sphi 0, %s55
      %s59 = sphi 0, %s58
      %s75 = sphi 0, %s59
      %s79 = sphi 0, %s79
      %s81 = sphi 0, %s79
      %s82 = sphi 0, %s81
      %s96 = sphi 0, %s82
      %s100 = sphi 0, %s100
      %s102 = sphi 0, %s100
      %s103 = sphi 0, %s102
      %s117 = sphi 0, %s103
      %s123 = sphi 0, %s125
      %s126 = sphi 0, %s123
      %s127 = sphi 0, %s126
      %s143 = sphi 0, %s127
      %s149 = sphi 0, %s151
      %s152 = sphi 0, %s149
      %s153 = sphi 0, %s152
      %s169 = sphi 0, %s153
      %s175 = sphi 0, %s177
      %s178 = sphi 0, %s175
      %s179 = sphi 0, %s178
      %s195 = sphi 0, %s179
      %s201 = sphi 0, %s203
      %s204 = sphi 0, %s201
      %s205 = sphi 0, %s204
      %s221 = sphi 0, %s205
      %s227 = sphi 0, %s229
      %s230 = sphi 0, %s227
      %s231 = sphi 0, %s230
      %s247 = sphi 0, %s231
      %s253 = sphi 0, %s255
      %s256 = sphi 0, %s253
      %s257 = sphi 0, %s256
      %s273 = sphi 0, %s257
      %s279 = sphi 0, %s281
      %s282 = sphi 0, %s279
      %s283 = sphi 0, %s282
      %s299 = sphi 0, %s283
      %s305 = sphi 0, %s307
      %s308 = sphi 0, %s305
      %s309 = sphi 0, %s308
      %s325 = sphi 0, %s309
      %s331 = sphi 0, %s333
      %s334 = sphi 0, %s331
      %s335 = sphi 0, %s334
      %s351 = sphi 0, %s335
      %s357 = sphi 0, %s359
      %s360 = sphi 0, %s357
      %s361 = sphi 0, %s360
      %s377 = sphi 0, %s361
      %s383 = sphi 0, %s385
      %s386 = sphi 0, %s383
      %s387 = sphi 0, %s386
      %s403 = sphi 0, %s387
      %s407 = sphi 0, %s407
      %s409 = sphi 0, %s407
      %s410 = sphi 0, %s409
      %s424 = sphi 0, %s410
      %s428 = sphi 0, %s428
      %s430 = sphi 0, %s428
      %s431 = sphi 0, %s430
      %s445 = sphi 0, %s431
      %s449 = sphi 0, %s449
      %s451 = sphi 0, %s449
      %s452 = sphi 0, %s451
      %s466 = sphi 0, %s452
      %s470 = sphi 0, %s470
      %s472 = sphi 0, %s470
      %s473 = sphi 0, %s472
      %s487 = sphi 0, %s473
      %s493 = sphi 0, %s495
      %s496 = sphi 0, %s493
      %s497 = sphi 0, %s496
      %s513 = sphi 0, %s497
    $region4: #{masking_net_forward.1} parent=1 // loop_header_branch
      %36 = sbr.rel (%p34) target = $region8
    $region5: #{masking_net_forward.1} parent=1 // loop_body
      %s38 = ssub.s32 %s33, 1
      %s39 = ssub.s32 %s33, 2
      %s46 = sadd.s32 1, %s41
      %p47 = scmp.ge.s32.totalorder %s46, 3
      %s48 = scalar_select %p47, 0, %s46
      %s49 = sadd.s32 1, %s40
      %s50 = scalar_select %p47, %s49, %s40
      %p51 = scmp.ge.s32.totalorder %s50, 2
      %s52 = scalar_select %p51, 0, %s50
      %s53 = ssub.s32 %s40, %s52
      %p54 = scmp.eq.s32.totalorder %s53, 0
      %s56 = sadd.s32 %s55, 1
      %s57 = scalar_select %p54, %s55, %s56
      %p60 = pneg %p54
      %p61 = scmp.eq.s32.totalorder %s33, 5
      %p62 = por %p60, %p61
      %p63 = scmp.ne.s32.totalorder %s55, %s58
      %p64 = scmp.eq.s32.totalorder %s33, 0
      %p65 = por %p63, %p64
      %p66 = scmp.ne.s32.totalorder %s55, %s58
      %p67 = scmp.eq.s32.totalorder %s38, 5
      %p68 = por %p66, %p67
      %p69 = scmp.ne.s32.totalorder %s58, %s59
      %p70 = scmp.eq.s32.totalorder %s38, 0
      %p71 = por %p69, %p70
      %p72 = scmp.ne.s32.totalorder %s58, %s59
      %p73 = scmp.eq.s32.totalorder %s39, 5
      %p74 = por %p72, %p73
      %p76 = scmp.ne.s32.totalorder %s59, %s75
      %p77 = scmp.eq.s32.totalorder %s39, 0
      %p78 = por %p76, %p77
      %s80 = sadd.s32 %s79, 1
      %p83 = scmp.eq.s32.totalorder %s33, 5
      %p84 = scmp.ne.s32.totalorder %s79, %s81
      %p85 = scmp.eq.s32.totalorder %s33, 0
      %p86 = por %p84, %p85
      %p87 = scmp.ne.s32.totalorder %s79, %s81
      %p88 = scmp.eq.s32.totalorder %s38, 5
      %p89 = por %p87, %p88
      %p90 = scmp.ne.s32.totalorder %s81, %s82
      %p91 = scmp.eq.s32.totalorder %s38, 0
      %p92 = por %p90, %p91
      %p93 = scmp.ne.s32.totalorder %s81, %s82
      %p94 = scmp.eq.s32.totalorder %s39, 5
      %p95 = por %p93, %p94
      %p97 = scmp.ne.s32.totalorder %s82, %s96
      %p98 = scmp.eq.s32.totalorder %s39, 0
      %p99 = por %p97, %p98
      %s101 = sadd.s32 %s100, 1
      %p104 = scmp.eq.s32.totalorder %s33, 5
      %p105 = scmp.ne.s32.totalorder %s100, %s102
      %p106 = scmp.eq.s32.totalorder %s33, 0
      %p107 = por %p105, %p106
      %p108 = scmp.ne.s32.totalorder %s100, %s102
      %p109 = scmp.eq.s32.totalorder %s38, 5
      %p110 = por %p108, %p109
      %p111 = scmp.ne.s32.totalorder %s102, %s103
      %p112 = scmp.eq.s32.totalorder %s38, 0
      %p113 = por %p111, %p112
      %p114 = scmp.ne.s32.totalorder %s102, %s103
      %p115 = scmp.eq.s32.totalorder %s39, 5
      %p116 = por %p114, %p115
      %p118 = scmp.ne.s32.totalorder %s103, %s117
      %p119 = scmp.eq.s32.totalorder %s39, 0
      %p120 = por %p118, %p119
      %s121 = ssub.s32 %s41, %s48
      %p122 = scmp.eq.s32.totalorder %s121, 0
      %s124 = sadd.s32 %s123, 1
      %s125 = scalar_select %p122, %s123, %s124
      %p128 = pneg %p122
      %p129 = scmp.eq.s32.totalorder %s33, 5
      %p130 = por %p128, %p129
      %p131 = scmp.ne.s32.totalorder %s123, %s126
      %p132 = scmp.eq.s32.totalorder %s33, 0
      %p133 = por %p131, %p132
      %p134 = scmp.ne.s32.totalorder %s123, %s126
      %p135 = scmp.eq.s32.totalorder %s38, 5
      %p136 = por %p134, %p135
      %p137 = scmp.ne.s32.totalorder %s126, %s127
      %p138 = scmp.eq.s32.totalorder %s38, 0
      %p139 = por %p137, %p138
      %p140 = scmp.ne.s32.totalorder %s126, %s127
      %p141 = scmp.eq.s32.totalorder %s39, 5
      %p142 = por %p140, %p141
      %p144 = scmp.ne.s32.totalorder %s127, %s143
      %p145 = scmp.eq.s32.totalorder %s39, 0
      %p146 = por %p144, %p145
      %s147 = ssub.s32 %s41, %s48
      %p148 = scmp.eq.s32.totalorder %s147, 0
      %s150 = sadd.s32 %s149, 1
      %s151 = scalar_select %p148, %s149, %s150
      %p154 = pneg %p148
      %p155 = scmp.eq.s32.totalorder %s33, 5
      %p156 = por %p154, %p155
      %p157 = scmp.ne.s32.totalorder %s149, %s152
      %p158 = scmp.eq.s32.totalorder %s33, 0
      %p159 = por %p157, %p158
      %p160 = scmp.ne.s32.totalorder %s149, %s152
      %p161 = scmp.eq.s32.totalorder %s38, 5
      %p162 = por %p160, %p161
      %p163 = scmp.ne.s32.totalorder %s152, %s153
      %p164 = scmp.eq.s32.totalorder %s38, 0
      %p165 = por %p163, %p164
      %p166 = scmp.ne.s32.totalorder %s152, %s153
      %p167 = scmp.eq.s32.totalorder %s39, 5
      %p168 = por %p166, %p167
      %p170 = scmp.ne.s32.totalorder %s153, %s169
      %p171 = scmp.eq.s32.totalorder %s39, 0
      %p172 = por %p170, %p171
      %s173 = ssub.s32 %s41, %s48
      %p174 = scmp.eq.s32.totalorder %s173, 0
      %s176 = sadd.s32 %s175, 1
      %s177 = scalar_select %p174, %s175, %s176
      %p180 = pneg %p174
      %p181 = scmp.eq.s32.totalorder %s33, 5
      %p182 = por %p180, %p181
      %p183 = scmp.ne.s32.totalorder %s175, %s178
      %p184 = scmp.eq.s32.totalorder %s33, 0
      %p185 = por %p183, %p184
      %p186 = scmp.ne.s32.totalorder %s175, %s178
      %p187 = scmp.eq.s32.totalorder %s38, 5
      %p188 = por %p186, %p187
      %p189 = scmp.ne.s32.totalorder %s178, %s179
      %p190 = scmp.eq.s32.totalorder %s38, 0
      %p191 = por %p189, %p190
      %p192 = scmp.ne.s32.totalorder %s178, %s179
      %p193 = scmp.eq.s32.totalorder %s39, 5
      %p194 = por %p192, %p193
      %p196 = scmp.ne.s32.totalorder %s179, %s195
      %p197 = scmp.eq.s32.totalorder %s39, 0
      %p198 = por %p196, %p197
      %s199 = ssub.s32 %s41, %s48
      %p200 = scmp.eq.s32.totalorder %s199, 0
      %s202 = sadd.s32 %s201, 1
      %s203 = scalar_select %p200, %s201, %s202
      %p206 = pneg %p200
      %p207 = scmp.eq.s32.totalorder %s33, 5
      %p208 = por %p206, %p207
      %p209 = scmp.ne.s32.totalorder %s201, %s204
      %p210 = scmp.eq.s32.totalorder %s33, 0
      %p211 = por %p209, %p210
      %p212 = scmp.ne.s32.totalorder %s201, %s204
      %p213 = scmp.eq.s32.totalorder %s38, 5
      %p214 = por %p212, %p213
      %p215 = scmp.ne.s32.totalorder %s204, %s205
      %p216 = scmp.eq.s32.totalorder %s38, 0
      %p217 = por %p215, %p216
      %p218 = scmp.ne.s32.totalorder %s204, %s205
      %p219 = scmp.eq.s32.totalorder %s39, 5
      %p220 = por %p218, %p219
      %p222 = scmp.ne.s32.totalorder %s205, %s221
      %p223 = scmp.eq.s32.totalorder %s39, 0
      %p224 = por %p222, %p223
      %s225 = ssub.s32 %s41, %s48
      %p226 = scmp.eq.s32.totalorder %s225, 0
      %s228 = sadd.s32 %s227, 1
      %s229 = scalar_select %p226, %s227, %s228
      %p232 = pneg %p226
      %p233 = scmp.eq.s32.totalorder %s33, 5
      %p234 = por %p232, %p233
      %p235 = scmp.ne.s32.totalorder %s227, %s230
      %p236 = scmp.eq.s32.totalorder %s33, 0
      %p237 = por %p235, %p236
      %p238 = scmp.ne.s32.totalorder %s227, %s230
      %p239 = scmp.eq.s32.totalorder %s38, 5
      %p240 = por %p238, %p239
      %p241 = scmp.ne.s32.totalorder %s230, %s231
      %p242 = scmp.eq.s32.totalorder %s38, 0
      %p243 = por %p241, %p242
      %p244 = scmp.ne.s32.totalorder %s230, %s231
      %p245 = scmp.eq.s32.totalorder %s39, 5
      %p246 = por %p244, %p245
      %p248 = scmp.ne.s32.totalorder %s231, %s247
      %p249 = scmp.eq.s32.totalorder %s39, 0
      %p250 = por %p248, %p249
      %s251 = ssub.s32 %s41, %s48
      %p252 = scmp.eq.s32.totalorder %s251, 0
      %s254 = sadd.s32 %s253, 1
      %s255 = scalar_select %p252, %s253, %s254
      %p258 = pneg %p252
      %p259 = scmp.eq.s32.totalorder %s33, 5
      %p260 = por %p258, %p259
      %p261 = scmp.ne.s32.totalorder %s253, %s256
      %p262 = scmp.eq.s32.totalorder %s33, 0
      %p263 = por %p261, %p262
      %p264 = scmp.ne.s32.totalorder %s253, %s256
      %p265 = scmp.eq.s32.totalorder %s38, 5
      %p266 = por %p264, %p265
      %p267 = scmp.ne.s32.totalorder %s256, %s257
      %p268 = scmp.eq.s32.totalorder %s38, 0
      %p269 = por %p267, %p268
      %p270 = scmp.ne.s32.totalorder %s256, %s257
      %p271 = scmp.eq.s32.totalorder %s39, 5
      %p272 = por %p270, %p271
      %p274 = scmp.ne.s32.totalorder %s257, %s273
      %p275 = scmp.eq.s32.totalorder %s39, 0
      %p276 = por %p274, %p275
      %s277 = ssub.s32 %s41, %s48
      %p278 = scmp.eq.s32.totalorder %s277, 0
      %s280 = sadd.s32 %s279, 1
      %s281 = scalar_select %p278, %s279, %s280
      %p284 = pneg %p278
      %p285 = scmp.eq.s32.totalorder %s33, 5
      %p286 = por %p284, %p285
      %p287 = scmp.ne.s32.totalorder %s279, %s282
      %p288 = scmp.eq.s32.totalorder %s33, 0
      %p289 = por %p287, %p288
      %p290 = scmp.ne.s32.totalorder %s279, %s282
      %p291 = scmp.eq.s32.totalorder %s38, 5
      %p292 = por %p290, %p291
      %p293 = scmp.ne.s32.totalorder %s282, %s283
      %p294 = scmp.eq.s32.totalorder %s38, 0
      %p295 = por %p293, %p294
      %p296 = scmp.ne.s32.totalorder %s282, %s283
      %p297 = scmp.eq.s32.totalorder %s39, 5
      %p298 = por %p296, %p297
      %p300 = scmp.ne.s32.totalorder %s283, %s299
      %p301 = scmp.eq.s32.totalorder %s39, 0
      %p302 = por %p300, %p301
      %s303 = ssub.s32 %s41, %s48
      %p304 = scmp.eq.s32.totalorder %s303, 0
      %s306 = sadd.s32 %s305, 1
      %s307 = scalar_select %p304, %s305, %s306
      %p310 = pneg %p304
      %p311 = scmp.eq.s32.totalorder %s33, 5
      %p312 = por %p310, %p311
      %p313 = scmp.ne.s32.totalorder %s305, %s308
      %p314 = scmp.eq.s32.totalorder %s33, 0
      %p315 = por %p313, %p314
      %p316 = scmp.ne.s32.totalorder %s305, %s308
      %p317 = scmp.eq.s32.totalorder %s38, 5
      %p318 = por %p316, %p317
      %p319 = scmp.ne.s32.totalorder %s308, %s309
      %p320 = scmp.eq.s32.totalorder %s38, 0
      %p321 = por %p319, %p320
      %p322 = scmp.ne.s32.totalorder %s308, %s309
      %p323 = scmp.eq.s32.totalorder %s39, 5
      %p324 = por %p322, %p323
      %p326 = scmp.ne.s32.totalorder %s309, %s325
      %p327 = scmp.eq.s32.totalorder %s39, 0
      %p328 = por %p326, %p327
      %s329 = ssub.s32 %s41, %s48
      %p330 = scmp.eq.s32.totalorder %s329, 0
      %s332 = sadd.s32 %s331, 1
      %s333 = scalar_select %p330, %s331, %s332
      %p336 = pneg %p330
      %p337 = scmp.eq.s32.totalorder %s33, 5
      %p338 = por %p336, %p337
      %p339 = scmp.ne.s32.totalorder %s331, %s334
      %p340 = scmp.eq.s32.totalorder %s33, 0
      %p341 = por %p339, %p340
      %p342 = scmp.ne.s32.totalorder %s331, %s334
      %p343 = scmp.eq.s32.totalorder %s38, 5
      %p344 = por %p342, %p343
      %p345 = scmp.ne.s32.totalorder %s334, %s335
      %p346 = scmp.eq.s32.totalorder %s38, 0
      %p347 = por %p345, %p346
      %p348 = scmp.ne.s32.totalorder %s334, %s335
      %p349 = scmp.eq.s32.totalorder %s39, 5
      %p350 = por %p348, %p349
      %p352 = scmp.ne.s32.totalorder %s335, %s351
      %p353 = scmp.eq.s32.totalorder %s39, 0
      %p354 = por %p352, %p353
      %s355 = ssub.s32 %s41, %s48
      %p356 = scmp.eq.s32.totalorder %s355, 0
      %s358 = sadd.s32 %s357, 1
      %s359 = scalar_select %p356, %s357, %s358
      %p362 = pneg %p356
      %p363 = scmp.eq.s32.totalorder %s33, 5
      %p364 = por %p362, %p363
      %p365 = scmp.ne.s32.totalorder %s357, %s360
      %p366 = scmp.eq.s32.totalorder %s33, 0
      %p367 = por %p365, %p366
      %p368 = scmp.ne.s32.totalorder %s357, %s360
      %p369 = scmp.eq.s32.totalorder %s38, 5
      %p370 = por %p368, %p369
      %p371 = scmp.ne.s32.totalorder %s360, %s361
      %p372 = scmp.eq.s32.totalorder %s38, 0
      %p373 = por %p371, %p372
      %p374 = scmp.ne.s32.totalorder %s360, %s361
      %p375 = scmp.eq.s32.totalorder %s39, 5
      %p376 = por %p374, %p375
      %p378 = scmp.ne.s32.totalorder %s361, %s377
      %p379 = scmp.eq.s32.totalorder %s39, 0
      %p380 = por %p378, %p379
      %s381 = ssub.s32 %s41, %s48
      %p382 = scmp.eq.s32.totalorder %s381, 0
      %s384 = sadd.s32 %s383, 1
      %s385 = scalar_select %p382, %s383, %s384
      %p388 = pneg %p382
      %p389 = scmp.eq.s32.totalorder %s33, 5
      %p390 = por %p388, %p389
      %p391 = scmp.ne.s32.totalorder %s383, %s386
      %p392 = scmp.eq.s32.totalorder %s33, 0
      %p393 = por %p391, %p392
      %p394 = scmp.ne.s32.totalorder %s383, %s386
      %p395 = scmp.eq.s32.totalorder %s38, 5
      %p396 = por %p394, %p395
      %p397 = scmp.ne.s32.totalorder %s386, %s387
      %p398 = scmp.eq.s32.totalorder %s38, 0
      %p399 = por %p397, %p398
      %p400 = scmp.ne.s32.totalorder %s386, %s387
      %p401 = scmp.eq.s32.totalorder %s39, 5
      %p402 = por %p400, %p401
      %p404 = scmp.ne.s32.totalorder %s387, %s403
      %p405 = scmp.eq.s32.totalorder %s39, 0
      %p406 = por %p404, %p405
      %s408 = sadd.s32 %s407, 1
      %p411 = scmp.eq.s32.totalorder %s33, 5
      %p412 = scmp.ne.s32.totalorder %s407, %s409
      %p413 = scmp.eq.s32.totalorder %s33, 0
      %p414 = por %p412, %p413
      %p415 = scmp.ne.s32.totalorder %s407, %s409
      %p416 = scmp.eq.s32.totalorder %s38, 5
      %p417 = por %p415, %p416
      %p418 = scmp.ne.s32.totalorder %s409, %s410
      %p419 = scmp.eq.s32.totalorder %s38, 0
      %p420 = por %p418, %p419
      %p421 = scmp.ne.s32.totalorder %s409, %s410
      %p422 = scmp.eq.s32.totalorder %s39, 5
      %p423 = por %p421, %p422
      %p425 = scmp.ne.s32.totalorder %s410, %s424
      %p426 = scmp.eq.s32.totalorder %s39, 0
      %p427 = por %p425, %p426
      %s429 = sadd.s32 %s428, 1
      %p432 = scmp.eq.s32.totalorder %s33, 5
      %p433 = scmp.ne.s32.totalorder %s428, %s430
      %p434 = scmp.eq.s32.totalorder %s33, 0
      %p435 = por %p433, %p434
      %p436 = scmp.ne.s32.totalorder %s428, %s430
      %p437 = scmp.eq.s32.totalorder %s38, 5
      %p438 = por %p436, %p437
      %p439 = scmp.ne.s32.totalorder %s430, %s431
      %p440 = scmp.eq.s32.totalorder %s38, 0
      %p441 = por %p439, %p440
      %p442 = scmp.ne.s32.totalorder %s430, %s431
      %p443 = scmp.eq.s32.totalorder %s39, 5
      %p444 = por %p442, %p443
      %p446 = scmp.ne.s32.totalorder %s431, %s445
      %p447 = scmp.eq.s32.totalorder %s39, 0
      %p448 = por %p446, %p447
      %s450 = sadd.s32 %s449, 1
      %p453 = scmp.eq.s32.totalorder %s33, 5
      %p454 = scmp.ne.s32.totalorder %s449, %s451
      %p455 = scmp.eq.s32.totalorder %s33, 0
      %p456 = por %p454, %p455
      %p457 = scmp.ne.s32.totalorder %s449, %s451
      %p458 = scmp.eq.s32.totalorder %s38, 5
      %p459 = por %p457, %p458
      %p460 = scmp.ne.s32.totalorder %s451, %s452
      %p461 = scmp.eq.s32.totalorder %s38, 0
      %p462 = por %p460, %p461
      %p463 = scmp.ne.s32.totalorder %s451, %s452
      %p464 = scmp.eq.s32.totalorder %s39, 5
      %p465 = por %p463, %p464
      %p467 = scmp.ne.s32.totalorder %s452, %s466
      %p468 = scmp.eq.s32.totalorder %s39, 0
      %p469 = por %p467, %p468
      %s471 = sadd.s32 %s470, 1
      %p474 = scmp.eq.s32.totalorder %s33, 5
      %p475 = scmp.ne.s32.totalorder %s470, %s472
      %p476 = scmp.eq.s32.totalorder %s33, 0
      %p477 = por %p475, %p476
      %p478 = scmp.ne.s32.totalorder %s470, %s472
      %p479 = scmp.eq.s32.totalorder %s38, 5
      %p480 = por %p478, %p479
      %p481 = scmp.ne.s32.totalorder %s472, %s473
      %p482 = scmp.eq.s32.totalorder %s38, 0
      %p483 = por %p481, %p482
      %p484 = scmp.ne.s32.totalorder %s472, %s473
      %p485 = scmp.eq.s32.totalorder %s39, 5
      %p486 = por %p484, %p485
      %p488 = scmp.ne.s32.totalorder %s473, %s487
      %p489 = scmp.eq.s32.totalorder %s39, 0
      %p490 = por %p488, %p489
      %s491 = ssub.s32 %s40, %s52
      %p492 = scmp.eq.s32.totalorder %s491, 0
      %s494 = sadd.s32 %s493, 1
      %s495 = scalar_select %p492, %s493, %s494
      %p498 = pneg %p492
      %p499 = scmp.eq.s32.totalorder %s33, 5
      %p500 = por %p498, %p499
      %p501 = scmp.ne.s32.totalorder %s493, %s496
      %p502 = scmp.eq.s32.totalorder %s33, 0
      %p503 = por %p501, %p502
      %p504 = scmp.ne.s32.totalorder %s493, %s496
      %p505 = scmp.eq.s32.totalorder %s38, 5
      %p506 = por %p504, %p505
      %p507 = scmp.ne.s32.totalorder %s496, %s497
      %p508 = scmp.eq.s32.totalorder %s38, 0
      %p509 = por %p507, %p508
      %p510 = scmp.ne.s32.totalorder %s496, %s497
      %p511 = scmp.eq.s32.totalorder %s39, 5
      %p512 = por %p510, %p511
      %p514 = scmp.ne.s32.totalorder %s497, %s513
      %p515 = scmp.eq.s32.totalorder %s39, 0
      %p516 = por %p514, %p515
      %p517 = scmp.le.s32.totalorder 1, %s33
      %p518 = scmp.lt.s32.totalorder %s33, 7
      %p519 = pnand %p517, %p518
      %p520 = pneg %p519
      // Predicated region
      $region9: #{masking_net_forward.1} parent=5 // pred_check
        _
      $region10: #{masking_net_forward.1} parent=5 // pred_check_branch
        %522 = sbr.rel (%p519) target = $region12
      $region11: #{masking_net_forward.1} parent=5 // pred_region
        %s523 = ssub.s32 %s33, 1
        // Predicated region
        $region13: #{masking_net_forward.1} parent=11 // pred_check
          %p524 = pneg %p92
        $region14: #{masking_net_forward.1} parent=11 // pred_check_branch
          %526 = sbr.rel (%p524) target = $region16
        $region15: #{masking_net_forward.1} parent=11 // pred_region
          _
        $region16: #{masking_net_forward.1} parent=11 // pred_fallthru
          _
        // Predicated region
        $region17: #{masking_net_forward.1} parent=11 // pred_check
          %p527 = pneg %p113
        $region18: #{masking_net_forward.1} parent=11 // pred_check_branch
          %529 = sbr.rel (%p527) target = $region20
        $region19: #{masking_net_forward.1} parent=11 // pred_region
          _
        $region20: #{masking_net_forward.1} parent=11 // pred_fallthru
          _
        // Predicated region
        $region21: #{masking_net_forward.1} parent=11 // pred_check
          %p530 = pneg %p420
        $region22: #{masking_net_forward.1} parent=11 // pred_check_branch
          %532 = sbr.rel (%p530) target = $region24
        $region23: #{masking_net_forward.1} parent=11 // pred_region
          _
        $region24: #{masking_net_forward.1} parent=11 // pred_fallthru
          _
        // Predicated region
        $region25: #{masking_net_forward.1} parent=11 // pred_check
          %p533 = pneg %p441
        $region26: #{masking_net_forward.1} parent=11 // pred_check_branch
          %535 = sbr.rel (%p533) target = $region28
        $region27: #{masking_net_forward.1} parent=11 // pred_region
          _
        $region28: #{masking_net_forward.1} parent=11 // pred_fallthru
          _
        // Predicated region
        $region29: #{masking_net_forward.1} parent=11 // pred_check
          %p536 = pneg %p462
        $region30: #{masking_net_forward.1} parent=11 // pred_check_branch
          %538 = sbr.rel (%p536) target = $region32
        $region31: #{masking_net_forward.1} parent=11 // pred_region
          _
        $region32: #{masking_net_forward.1} parent=11 // pred_fallthru
          _
        // Predicated region
        $region33: #{masking_net_forward.1} parent=11 // pred_check
          %p539 = pneg %p483
        $region34: #{masking_net_forward.1} parent=11 // pred_check_branch
          %541 = sbr.rel (%p539) target = $region36
        $region35: #{masking_net_forward.1} parent=11 // pred_region
          _
        $region36: #{masking_net_forward.1} parent=11 // pred_fallthru
          _
      $region12: #{masking_net_forward.1} parent=5 // pred_fallthru
        _
      %p542 = scmp.lt.s32.totalorder %s33, 6
      // Predicated region
      $region37: #{masking_net_forward.1} parent=5 // pred_check
        %p543 = pneg %p542
      $region38: #{masking_net_forward.1} parent=5 // pred_check_branch
        %545 = sbr.rel (%p543) target = $region40
      $region39: #{masking_net_forward.1} parent=5 // pred_region
        // Predicated region
        $region41: #{masking_net_forward.1} parent=39 // pred_check
          %p546 = pneg %p65
        $region42: #{masking_net_forward.1} parent=39 // pred_check_branch
          %548 = sbr.rel (%p546) target = $region44
        $region43: #{masking_net_forward.1} parent=39 // pred_region
          %s549 = smul.u32 2, %s40
          %p550 = scmp.lt.s32.totalorder %s549, 3
          %s551 = scalar_select %p550, %s549, 3
          %s552 = smul.addr %s551, 2
          %s553 = smul.addr %s552, 8
          %s554 = scalar_lea.vmem %s0, %s553
          %s555 = smul.u32 2, %s40
        $region44: #{masking_net_forward.1} parent=39 // pred_fallthru
          _
        // Predicated region
        $region45: #{masking_net_forward.1} parent=39 // pred_check
          %p556 = pneg %p133
        $region46: #{masking_net_forward.1} parent=39 // pred_check_branch
          %558 = sbr.rel (%p556) target = $region48
        $region47: #{masking_net_forward.1} parent=39 // pred_region
          %p559 = scmp.lt.s32.totalorder %s41, 2
          %s560 = scalar_select %p559, %s41, 2
          %s561 = scalar_lea.vmem %s3, %s560
        $region48: #{masking_net_forward.1} parent=39 // pred_fallthru
          _
        // Predicated region
        $region49: #{masking_net_forward.1} parent=39 // pred_check
          %p562 = pneg %p159
        $region50: #{masking_net_forward.1} parent=39 // pred_check_branch
          %564 = sbr.rel (%p562) target = $region52
        $region51: #{masking_net_forward.1} parent=39 // pred_region
          %p565 = scmp.lt.s32.totalorder %s41, 2
          %s566 = scalar_select %p565, %s41, 2
          %s567 = scalar_lea.vmem %s4, %s566
        $region52: #{masking_net_forward.1} parent=39 // pred_fallthru
          _
        // Predicated region
        $region53: #{masking_net_forward.1} parent=39 // pred_check
          %p568 = pneg %p185
        $region54: #{masking_net_forward.1} parent=39 // pred_check_branch
          %570 = sbr.rel (%p568) target = $region56
        $region55: #{masking_net_forward.1} parent=39 // pred_region
          %s571 = sand.u32 %s175, 1
          %s572 = scalar_lea.sflag [#allocation8], %s571
          %s573 = sand.u32 %s175, 1
          %s574 = smul.addr %s573, 16
          %s575 = scalar_lea.vmem [#allocation7], %s574
          %577 = vsyncadd %s572, 0
          %s578 = smul.addr %s41, 4
          %s579 = smul.addr %s578, 4
          %s580 = scalar_lea.hbm %s5, %s579
          %s581 = sshll.u32 %s580, 4
          %s582 = int_to_ptr.hbm [resolvable:$true] %s581
          %s583 = sshll.u32 %s575, 4
          %s584 = int_to_ptr.vmem [resolvable:$true] %s583
          %589 = dma.hbm_to_vmem [thread:$0]  %s582, 256, %s584, %s572, 64, 64, 4
        $region56: #{masking_net_forward.1} parent=39 // pred_fallthru
          _
        // Predicated region
        $region57: #{masking_net_forward.1} parent=39 // pred_check
          %p590 = pneg %p211
        $region58: #{masking_net_forward.1} parent=39 // pred_check_branch
          %592 = sbr.rel (%p590) target = $region60
        $region59: #{masking_net_forward.1} parent=39 // pred_region
          %p593 = scmp.lt.s32.totalorder %s41, 2
          %s594 = scalar_select %p593, %s41, 2
          %s595 = scalar_lea.vmem %s6, %s594
        $region60: #{masking_net_forward.1} parent=39 // pred_fallthru
          _
        // Predicated region
        $region61: #{masking_net_forward.1} parent=39 // pred_check
          %p596 = pneg %p237
        $region62: #{masking_net_forward.1} parent=39 // pred_check_branch
          %598 = sbr.rel (%p596) target = $region64
        $region63: #{masking_net_forward.1} parent=39 // pred_region
          %s599 = sand.u32 %s33, 1
          %s600 = scalar_lea.sflag [#allocation11], %s599
          %s601 = sand.u32 %s227, 1
          %s602 = smul.addr %s601, 16
          %s603 = scalar_lea.vmem [#allocation10], %s602
          %605 = vsyncadd %s600, 0
          %s606 = smul.addr %s41, 4
          %s607 = smul.addr %s606, 4
          %s608 = scalar_lea.hbm %s7, %s607
          %s609 = sshll.u32 %s608, 4
          %s610 = int_to_ptr.hbm [resolvable:$true] %s609
          %s611 = sshll.u32 %s603, 4
          %s612 = int_to_ptr.vmem [resolvable:$true] %s611
          %617 = dma.hbm_to_vmem [thread:$0]  %s610, 256, %s612, %s600, 64, 64, 4
        $region64: #{masking_net_forward.1} parent=39 // pred_fallthru
          _
        // Predicated region
        $region65: #{masking_net_forward.1} parent=39 // pred_check
          %p618 = pneg %p263
        $region66: #{masking_net_forward.1} parent=39 // pred_check_branch
          %620 = sbr.rel (%p618) target = $region68
        $region67: #{masking_net_forward.1} parent=39 // pred_region
          %p621 = scmp.lt.s32.totalorder %s41, 2
          %s622 = scalar_select %p621, %s41, 2
          %s623 = scalar_lea.vmem %s8, %s622
        $region68: #{masking_net_forward.1} parent=39 // pred_fallthru
          _
        // Predicated region
        $region69: #{masking_net_forward.1} parent=39 // pred_check
          %p624 = pneg %p289
        $region70: #{masking_net_forward.1} parent=39 // pred_check_branch
          %626 = sbr.rel (%p624) target = $region72
        $region71: #{masking_net_forward.1} parent=39 // pred_region
          %p627 = scmp.lt.s32.totalorder %s41, 2
          %s628 = scalar_select %p627, %s41, 2
          %s629 = smul.addr %s628, 4
          %s630 = smul.addr %s629, 4
          %s631 = scalar_lea.vmem %s9, %s630
        $region72: #{masking_net_forward.1} parent=39 // pred_fallthru
          _
        // Predicated region
        $region73: #{masking_net_forward.1} parent=39 // pred_check
          %p632 = pneg %p315
        $region74: #{masking_net_forward.1} parent=39 // pred_check_branch
          %634 = sbr.rel (%p632) target = $region76
        $region75: #{masking_net_forward.1} parent=39 // pred_region
          %p635 = scmp.lt.s32.totalorder %s41, 2
          %s636 = scalar_select %p635, %s41, 2
          %s637 = smul.addr %s636, 8
          %s638 = scalar_lea.vmem %s10, %s637
        $region76: #{masking_net_forward.1} parent=39 // pred_fallthru
          _
        // Predicated region
        $region77: #{masking_net_forward.1} parent=39 // pred_check
          %p639 = pneg %p341
        $region78: #{masking_net_forward.1} parent=39 // pred_check_branch
          %641 = sbr.rel (%p639) target = $region80
        $region79: #{masking_net_forward.1} parent=39 // pred_region
          %p642 = scmp.lt.s32.totalorder %s41, 2
          %s643 = scalar_select %p642, %s41, 2
          %s644 = scalar_lea.vmem %s11, %s643
        $region80: #{masking_net_forward.1} parent=39 // pred_fallthru
          _
        // Predicated region
        $region81: #{masking_net_forward.1} parent=39 // pred_check
          %p645 = pneg %p367
        $region82: #{masking_net_forward.1} parent=39 // pred_check_branch
          %647 = sbr.rel (%p645) target = $region84
        $region83: #{masking_net_forward.1} parent=39 // pred_region
          %s648 = sand.u32 %s33, 1
          %s649 = scalar_lea.sflag [#allocation11], %s648
          %s650 = sand.u32 %s357, 1
          %s651 = smul.addr %s650, 16
          %s652 = scalar_lea.vmem [#allocation12], %s651
          %654 = vsyncadd %s649, 0
          %s655 = smul.addr %s41, 4
          %s656 = smul.addr %s655, 4
          %s657 = scalar_lea.hbm %s12, %s656
          %s658 = sshll.u32 %s657, 4
          %s659 = int_to_ptr.hbm [resolvable:$true] %s658
          %s660 = sshll.u32 %s652, 4
          %s661 = int_to_ptr.vmem [resolvable:$true] %s660
          %666 = dma.hbm_to_vmem [thread:$0]  %s659, 256, %s661, %s649, 64, 64, 4
        $region84: #{masking_net_forward.1} parent=39 // pred_fallthru
          _
        // Predicated region
        $region85: #{masking_net_forward.1} parent=39 // pred_check
          %p667 = pneg %p393
        $region86: #{masking_net_forward.1} parent=39 // pred_check_branch
          %669 = sbr.rel (%p667) target = $region88
        $region87: #{masking_net_forward.1} parent=39 // pred_region
          %p670 = scmp.lt.s32.totalorder %s41, 2
          %s671 = scalar_select %p670, %s41, 2
          %s672 = scalar_lea.vmem %s13, %s671
        $region88: #{masking_net_forward.1} parent=39 // pred_fallthru
          _
      $region40: #{masking_net_forward.1} parent=5 // pred_fallthru
        _
      %p673 = scmp.le.s32.totalorder 1, %s33
      %p674 = scmp.lt.s32.totalorder %s33, 7
      %p675 = pnand %p673, %p674
      %p676 = pneg %p675
      // Predicated region
      $region89: #{masking_net_forward.1} parent=5 // pred_check
        _
      $region90: #{masking_net_forward.1} parent=5 // pred_check_branch
        %678 = sbr.rel (%p675) target = $region92
      $region91: #{masking_net_forward.1} parent=5 // pred_region
        %s679 = ssub.s32 %s33, 1
        %s680 = sand.u32 %s178, 1
        %s681 = scalar_lea.sflag [#allocation8], %s680
        %s682 = sand.u32 %s178, 1
        %s683 = smul.addr %s682, 16
        %s684 = scalar_lea.vmem [#allocation7], %s683
        // Predicated region
        $region93: #{masking_net_forward.1} parent=91 // pred_check
          %p685 = pneg %p191
        $region94: #{masking_net_forward.1} parent=91 // pred_check_branch
          %687 = sbr.rel (%p685) target = $region96
        $region95: #{masking_net_forward.1} parent=91 // pred_region
          %689 = dma.done %s681, 256
        $region96: #{masking_net_forward.1} parent=91 // pred_fallthru
          _
        %s690 = sand.u32 %s38, 1
        %s691 = scalar_lea.sflag [#allocation11], %s690
        %s692 = sand.u32 %s230, 1
        %s693 = smul.addr %s692, 16
        %s694 = scalar_lea.vmem [#allocation10], %s693
        // Predicated region
        $region97: #{masking_net_forward.1} parent=91 // pred_check
          %p695 = pneg %p243
        $region98: #{masking_net_forward.1} parent=91 // pred_check_branch
          %697 = sbr.rel (%p695) target = $region100
        $region99: #{masking_net_forward.1} parent=91 // pred_region
          %699 = dma.done %s691, 256
        $region100: #{masking_net_forward.1} parent=91 // pred_fallthru
          _
        %s700 = sand.u32 %s38, 1
        %s701 = scalar_lea.sflag [#allocation11], %s700
        %s702 = sand.u32 %s360, 1
        %s703 = smul.addr %s702, 16
        %s704 = scalar_lea.vmem [#allocation12], %s703
        // Predicated region
        $region101: #{masking_net_forward.1} parent=91 // pred_check
          %p705 = pneg %p373
        $region102: #{masking_net_forward.1} parent=91 // pred_check_branch
          %707 = sbr.rel (%p705) target = $region104
        $region103: #{masking_net_forward.1} parent=91 // pred_region
          %709 = dma.done %s701, 256
        $region104: #{masking_net_forward.1} parent=91 // pred_fallthru
          _
        %s710 = smul.u32 2, %s42
        %p711 = scmp.lt.s32.totalorder %s710, 3
        %s712 = scalar_select %p711, %s710, 3
        %s713 = smul.addr %s712, 2
        %s714 = smul.addr %s713, 8
        %s715 = scalar_lea.vmem %s0, %s714
        %p716 = pneg %p71
        %p717 = pneg %p68
        %p718 = pneg %p92
        %p719 = pneg %p89
        %p720 = pneg %p113
        %p721 = pneg %p110
        %p722 = scmp.lt.s32.totalorder %s43, 2
        %s723 = scalar_select %p722, %s43, 2
        %s724 = scalar_lea.vmem %s3, %s723
        %p725 = pneg %p139
        %p726 = pneg %p136
        %p727 = scmp.lt.s32.totalorder %s43, 2
        %s728 = scalar_select %p727, %s43, 2
        %s729 = scalar_lea.vmem %s4, %s728
        %p730 = pneg %p165
        %p731 = pneg %p162
        %s732 = sand.u32 %s178, 1
        %s733 = scalar_lea.sflag [#allocation8], %s732
        %s734 = sand.u32 %s178, 1
        %s735 = smul.addr %s734, 16
        %s736 = scalar_lea.vmem [#allocation7], %s735
        %p737 = pneg %p191
        %p738 = pneg %p188
        %p739 = scmp.lt.s32.totalorder %s43, 2
        %s740 = scalar_select %p739, %s43, 2
        %s741 = scalar_lea.vmem %s6, %s740
        %p742 = pneg %p217
        %p743 = pneg %p214
        %s744 = sand.u32 %s38, 1
        %s745 = scalar_lea.sflag [#allocation11], %s744
        %s746 = sand.u32 %s230, 1
        %s747 = smul.addr %s746, 16
        %s748 = scalar_lea.vmem [#allocation10], %s747
        %p749 = pneg %p243
        %p750 = pneg %p240
        %p751 = scmp.lt.s32.totalorder %s43, 2
        %s752 = scalar_select %p751, %s43, 2
        %s753 = scalar_lea.vmem %s8, %s752
        %p754 = pneg %p269
        %p755 = pneg %p266
        %p756 = scmp.lt.s32.totalorder %s43, 2
        %s757 = scalar_select %p756, %s43, 2
        %s758 = smul.addr %s757, 4
        %s759 = smul.addr %s758, 4
        %s760 = scalar_lea.vmem %s9, %s759
        %p761 = pneg %p295
        %p762 = pneg %p292
        %p763 = scmp.lt.s32.totalorder %s43, 2
        %s764 = scalar_select %p763, %s43, 2
        %s765 = smul.addr %s764, 8
        %s766 = scalar_lea.vmem %s10, %s765
        %p767 = pneg %p321
        %p768 = pneg %p318
        %p769 = scmp.lt.s32.totalorder %s43, 2
        %s770 = scalar_select %p769, %s43, 2
        %s771 = scalar_lea.vmem %s11, %s770
        %p772 = pneg %p347
        %p773 = pneg %p344
        %s774 = sand.u32 %s38, 1
        %s775 = scalar_lea.sflag [#allocation11], %s774
        %s776 = sand.u32 %s360, 1
        %s777 = smul.addr %s776, 16
        %s778 = scalar_lea.vmem [#allocation12], %s777
        %p779 = pneg %p373
        %p780 = pneg %p370
        %p781 = scmp.lt.s32.totalorder %s43, 2
        %s782 = scalar_select %p781, %s43, 2
        %s783 = scalar_lea.vmem %s13, %s782
        %p784 = pneg %p399
        %p785 = pneg %p396
        %p786 = pneg %p420
        %p787 = pneg %p417
        %p788 = pneg %p441
        %p789 = pneg %p438
        %p790 = pneg %p462
        %p791 = pneg %p459
        %p792 = pneg %p483
        %p793 = pneg %p480
        %p794 = pneg %p509
        %p795 = pneg %p506
        %s796 = sand.u32 %s496, 1
        %s797 = scalar_lea.sflag [#allocation9], %s796
        %s798 = sand.u32 %s496, 1
        %s799 = smul.addr %s798, 2
        %s800 = scalar_lea.vmem [#allocation13], %s799
        %s801 = smul.u32 2, %s42
        %p802 = scmp.lt.s32.totalorder %s801, 3
        %s803 = scalar_select %p802, %s801, 3
        %s804 = smul.addr %s803, 2
        %s805 = smul.addr %s804, 8
        %s806 = scalar_lea.vmem %s0, %s805
        %s807 = smul.u32 2, %s42
        %p808 = scmp.lt.s32.totalorder %s43, 2
        %s809 = scalar_select %p808, %s43, 2
        %s810 = scalar_lea.vmem %s3, %s809
        %p811 = scmp.lt.s32.totalorder %s43, 2
        %s812 = scalar_select %p811, %s43, 2
        %s813 = scalar_lea.vmem %s4, %s812
        %p814 = scmp.lt.s32.totalorder %s43, 2
        %s815 = scalar_select %p814, %s43, 2
        %s816 = scalar_lea.vmem %s6, %s815
        %p817 = scmp.lt.s32.totalorder %s43, 2
        %s818 = scalar_select %p817, %s43, 2
        %s819 = scalar_lea.vmem %s8, %s818
        %p820 = scmp.lt.s32.totalorder %s43, 2
        %s821 = scalar_select %p820, %s43, 2
        %s822 = smul.addr %s821, 4
        %s823 = smul.addr %s822, 4
        %s824 = scalar_lea.vmem %s9, %s823
        %p825 = scmp.lt.s32.totalorder %s43, 2
        %s826 = scalar_select %p825, %s43, 2
        %s827 = smul.addr %s826, 8
        %s828 = scalar_lea.vmem %s10, %s827
        %p829 = scmp.lt.s32.totalorder %s43, 2
        %s830 = scalar_select %p829, %s43, 2
        %s831 = scalar_lea.vmem %s11, %s830
        %p832 = scmp.lt.s32.totalorder %s43, 2
        %s833 = scalar_select %p832, %s43, 2
        %s834 = scalar_lea.vmem %s13, %s833
        %s835 = smul.u32 2, %s42
        %p837 = scmp.eq.s32.totalorder %s43, 0
        // Predicated region
        $region105: #{masking_net_forward.1} parent=91 // pred_check
          %p838 = pneg %p837
        $region106: #{masking_net_forward.1} parent=91 // pred_check_branch
          %840 = sbr.rel (%p838) target = $region108
        $region107: #{masking_net_forward.1} parent=91 // pred_region
          %v841 = vld [vmem:[%s1] sm:$0x1]
          %v842 = vld [vmem:[%s2] sm:$0x1]
          %v843 = vadd.f32 %v841, %v842
          %v844 = vld [vmem:[%s806] sm:$0xff]
          %v845 = vld [vmem:[%s806 + $0x8] sm:$0xff]
          %v846 = vld [vmem:[%s806 + $0x10] sm:$0xff]
          %v847 = vld [vmem:[%s806 + $0x18] sm:$0xff]
          %v848 = vld [vmem:[%s2 + $0x1] sm:$0xff]
          %v849 = vld [vmem:[%s2 + $0x9] sm:$0xff]
          %v850 = vadd.f32 %v844, %v848
          %v851 = vadd.f32 %v845, %v849
          %v852 = vadd.f32 %v846, %v848
          %v853 = vadd.f32 %v847, %v849
          %vm858 = vcmask 1040384
          %v859 = vrot.slane %v850, 7
          %v860 = vrot.slane %v851, 7
          %v861 = vsel %vm858, %v859, %v860
          %v862 = vrot.slane %v852, 7
          %v863 = vrot.slane %v853, 7
          %v864 = vsel %vm858, %v862, %v863
          %v871 = vsel %vm858, %v843, %v859
          %v872 = vsel %vm858, %v843, %v862
          %v873 = vsel %vm858, %v860, 0.0
          %v874 = vsel %vm858, %v863, 0.0
          %vm875 = vcmask 261120
          %876 = vst.msk [vmem:[#allocation2] sm:$0xff] %vm875, %v871
          %877 = vst.msk [vmem:[#allocation2 + $0x8] sm:$0xff] %vm875, %v861
          %878 = vst.msk [vmem:[#allocation2 + $0x10] sm:$0xff] %vm875, %v873
          %879 = vst.msk [vmem:[#allocation2 + $0x18] sm:$0xff] %vm875, %v872
          %880 = vst.msk [vmem:[#allocation2 + $0x20] sm:$0xff] %vm875, %v864
          %881 = vst.msk [vmem:[#allocation2 + $0x28] sm:$0xff] %vm875, %v874
        $region108: #{masking_net_forward.1} parent=91 // pred_fallthru
          _
        %v882 = vld [vmem:[#allocation2] sm:$0xff]
        %v883 = vld [vmem:[#allocation2 + $0x8] sm:$0xff]
        %v884 = vld [vmem:[#allocation2 + $0x10] sm:$0xff]
        %v885 = vld [vmem:[#allocation2 + $0x18] sm:$0xff]
        %v886 = vld [vmem:[#allocation2 + $0x20] sm:$0xff]
        %v887 = vld [vmem:[#allocation2 + $0x28] sm:$0xff]
        %v888 = vld [vmem:[%s810] sm:$0x1]
        %v889 = vld [vmem:[%s813] sm:$0x1]
        %vm890 = vcmask 261120
        %v891 = vsel %vm890, %v882, 0.0
        %892 = vadd.xlane.f32.xlu0 %v891
        %v893 = vpop.xlane.xlu0 %892
        %v894 = vsel %vm890, %v883, 0.0
        %895 = vadd.xlane.f32.xlu0 %v894
        %v896 = vpop.xlane.xlu0 %895
        %v897 = vsel %vm890, %v884, 0.0
        %898 = vadd.xlane.f32.xlu0 %v897
        %v899 = vpop.xlane.xlu0 %898
        %v900 = vsel %vm890, %v885, 0.0
        %901 = vadd.xlane.f32.xlu0 %v900
        %v902 = vpop.xlane.xlu0 %901
        %v903 = vsel %vm890, %v886, 0.0
        %904 = vadd.xlane.f32.xlu0 %v903
        %v905 = vpop.xlane.xlu0 %904
        %v906 = vsel %vm890, %v887, 0.0
        %907 = vadd.xlane.f32.xlu0 %v906
        %v908 = vpop.xlane.xlu0 %907
        %v909 = vrcp.pop 32.0
        %v910 = vmul.f32 32.0, %v909
        %v911 = vsub.f32 1.0, %v910
        %v912 = vmul.f32 %v909, %v911
        %v913 = vadd.f32 %v909, %v912
        %vm914 = vweird.f32 %v909
        %v915 = vsel %vm914, %v909, %v913
        %v916 = vmul.f32 %v893, %v915
        %v917 = vmul.f32 %v896, %v915
        %v918 = vmul.f32 %v899, %v915
        %v919 = vmul.f32 %v902, %v915
        %v920 = vmul.f32 %v905, %v915
        %v921 = vmul.f32 %v908, %v915
        %v922 = vsub.f32 %v882, %v916
        %v923 = vsub.f32 %v883, %v917
        %v924 = vsub.f32 %v884, %v918
        %v925 = vsub.f32 %v885, %v919
        %v926 = vsub.f32 %v886, %v920
        %v927 = vsub.f32 %v887, %v921
        %v928 = vmul.f32 %v922, %v922
        %v929 = vmul.f32 %v923, %v923
        %v930 = vmul.f32 %v924, %v924
        %v931 = vmul.f32 %v925, %v925
        %v932 = vmul.f32 %v926, %v926
        %v933 = vmul.f32 %v927, %v927
        %v934 = vsel %vm890, %v928, 0.0
        %935 = vadd.xlane.f32.xlu0 %v934
        %v936 = vpop.xlane.xlu0 %935
        %v937 = vsel %vm890, %v929, 0.0
        %938 = vadd.xlane.f32.xlu0 %v937
        %v939 = vpop.xlane.xlu0 %938
        %v940 = vsel %vm890, %v930, 0.0
        %941 = vadd.xlane.f32.xlu0 %v940
        %v942 = vpop.xlane.xlu0 %941
        %v943 = vsel %vm890, %v931, 0.0
        %944 = vadd.xlane.f32.xlu0 %v943
        %v945 = vpop.xlane.xlu0 %944
        %v946 = vsel %vm890, %v932, 0.0
        %947 = vadd.xlane.f32.xlu0 %v946
        %v948 = vpop.xlane.xlu0 %947
        %v949 = vsel %vm890, %v933, 0.0
        %950 = vadd.xlane.f32.xlu0 %v949
        %v951 = vpop.xlane.xlu0 %950
        %v952 = vmul.f32 %v936, %v915
        %v953 = vmul.f32 %v939, %v915
        %v954 = vmul.f32 %v942, %v915
        %v955 = vmul.f32 %v945, %v915
        %v956 = vmul.f32 %v948, %v915
        %v957 = vmul.f32 %v951, %v915
        %v958 = vadd.f32 %v952, 1e-05
        %v959 = vadd.f32 %v953, 1e-05
        %v960 = vadd.f32 %v954, 1e-05
        %v961 = vadd.f32 %v955, 1e-05
        %v962 = vadd.f32 %v956, 1e-05
        %v963 = vadd.f32 %v957, 1e-05
        %v964 = vrsqrt.pop %v958
        %v965 = vmul.f32 %v964, %v958
        %v966 = vmul.f32 %v965, %v964
        %v967 = vmul.f32 0.5, %v966
        %v968 = vsub.f32 1.5, %v967
        %v969 = vmul.f32 %v964, %v968
        %vm970 = vweird.f32 %v958
        %vm971 = vweird.f32 %v964
        %vm972 = vmor %vm970, %vm971
        %v973 = vsel %vm972, %v964, %v969
        %v974 = vrsqrt.pop %v959
        %v975 = vmul.f32 %v974, %v959
        %v976 = vmul.f32 %v975, %v974
        %v977 = vmul.f32 0.5, %v976
        %v978 = vsub.f32 1.5, %v977
        %v979 = vmul.f32 %v974, %v978
        %vm980 = vweird.f32 %v959
        %vm981 = vweird.f32 %v974
        %vm982 = vmor %vm980, %vm981
        %v983 = vsel %vm982, %v974, %v979
        %v984 = vrsqrt.pop %v960
        %v985 = vmul.f32 %v984, %v960
        %v986 = vmul.f32 %v985, %v984
        %v987 = vmul.f32 0.5, %v986
        %v988 = vsub.f32 1.5, %v987
        %v989 = vmul.f32 %v984, %v988
        %vm990 = vweird.f32 %v960
        %vm991 = vweird.f32 %v984
        %vm992 = vmor %vm990, %vm991
        %v993 = vsel %vm992, %v984, %v989
        %v994 = vrsqrt.pop %v961
        %v995 = vmul.f32 %v994, %v961
        %v996 = vmul.f32 %v995, %v994
        %v997 = vmul.f32 0.5, %v996
        %v998 = vsub.f32 1.5, %v997
        %v999 = vmul.f32 %v994, %v998
        %vm1000 = vweird.f32 %v961
        %vm1001 = vweird.f32 %v994
        %vm1002 = vmor %vm1000, %vm1001
        %v1003 = vsel %vm1002, %v994, %v999
        %v1004 = vrsqrt.pop %v962
        %v1005 = vmul.f32 %v1004, %v962
        %v1006 = vmul.f32 %v1005, %v1004
        %v1007 = vmul.f32 0.5, %v1006
        %v1008 = vsub.f32 1.5, %v1007
        %v1009 = vmul.f32 %v1004, %v1008
        %vm1010 = vweird.f32 %v962
        %vm1011 = vweird.f32 %v1004
        %vm1012 = vmor %vm1010, %vm1011
        %v1013 = vsel %vm1012, %v1004, %v1009
        %v1014 = vrsqrt.pop %v963
        %v1015 = vmul.f32 %v1014, %v963
        %v1016 = vmul.f32 %v1015, %v1014
        %v1017 = vmul.f32 0.5, %v1016
        %v1018 = vsub.f32 1.5, %v1017
        %v1019 = vmul.f32 %v1014, %v1018
        %vm1020 = vweird.f32 %v963
        %vm1021 = vweird.f32 %v1014
        %vm1022 = vmor %vm1020, %vm1021
        %v1023 = vsel %vm1022, %v1014, %v1019
        %v1024 = vmul.f32 %v922, %v973
        %v1025 = vmul.f32 %v923, %v983
        %v1026 = vmul.f32 %v924, %v993
        %v1027 = vmul.f32 %v925, %v1003
        %v1028 = vmul.f32 %v926, %v1013
        %v1029 = vmul.f32 %v927, %v1023
        %v1031 = vperm.slane %v888, 0
        %v1033 = vmul.f32 %v1024, %v1031
        %v1034 = vmul.f32 %v1025, %v1031
        %v1035 = vmul.f32 %v1026, %v1031
        %v1036 = vmul.f32 %v1027, %v1031
        %v1037 = vmul.f32 %v1028, %v1031
        %v1038 = vmul.f32 %v1029, %v1031
        %v1040 = vperm.slane %v889, 0
        %v1042 = vadd.f32 %v1033, %v1040
        %v1043 = vadd.f32 %v1034, %v1040
        %v1044 = vadd.f32 %v1035, %v1040
        %v1045 = vadd.f32 %v1036, %v1040
        %v1046 = vadd.f32 %v1037, %v1040
        %v1047 = vadd.f32 %v1038, %v1040
        %v1048 = vpack.c.bf16 %v1043, %v1042
        %v1049 = vpack.c.bf16 %v1045, %v1044
        %v1050 = vpack.c.bf16 %v1047, %v1046
        %v1051 = vld [vmem:[%s684] sm:$0xf]
        %v1052 = vld [vmem:[%s684 + $0x4] sm:$0xf]
        %v1053 = vld [vmem:[%s684 + $0x8] sm:$0xf]
        %v1054 = vld [vmem:[%s684 + $0xc] sm:$0xf]
        %v1055 = vld [vmem:[%s816] sm:$0x1]
        %v1057 = vperm.slane %v1055, 0
        %v1063 = vunpack.c.l.b16 %v1051
        %v1064 = vunpack.c.l.b16 %v1052
        %v1065 = vunpack.c.l.b16 %v1053
        %v1066 = vunpack.c.l.b16 %v1054
        %v1067 = vpack.c.b16 %v1064, %v1063
        %v1068 = vpack.c.b16 %v1066, %v1065
        %v1072 = vsel %vm890, %v1048, 0
        %v1075 = vsel %vm890, %v1049, 0
        %v1078 = vsel %vm890, %v1050, 0
        %1080 = vmatpush.bf16.msra.mxu0 0
        %1081 = vmatpush.bf16.msra.mxu0 0
        %1082 = vmatpush.bf16.msra.mxu0 0
        %1083 = vmatpush.bf16.msra.mxu0 0
        %1084 = vmatpush.bf16.msra.mxu0 0
        %1085 = vmatpush.bf16.msra.mxu0 0
        %1086 = vmatpush.bf16.msra.mxu0 %v1068
        %1087 = vmatpush.bf16.msra.mxu0 %v1067
        %1088 = vmatmul.bf16.gmra.mxu0 %v1072
        %v1089 = vpop.f32.mrf.mxu0
        %v1090 = vadd.f32 %v1057, %v1089
        %v1091 = vpop.f32.mrf.mxu0
        %v1092 = vadd.f32 %v1057, %v1091
        %1093 = vmatmul.bf16.gmra.mxu0 %v1075
        %v1094 = vpop.f32.mrf.mxu0
        %v1095 = vadd.f32 %v1057, %v1094
        %v1096 = vpop.f32.mrf.mxu0
        %v1097 = vadd.f32 %v1057, %v1096
        %1098 = vmatmul.bf16.gmra.mxu0 %v1078
        %v1099 = vpop.f32.mrf.mxu0
        %v1100 = vadd.f32 %v1057, %v1099
        %v1101 = vpop.f32.mrf.mxu0
        %v1102 = vadd.f32 %v1057, %v1101
        %1103 = vdwg.mxu0
        %v1104 = vsub.f32 0.0, %v1090
        %v1105 = vsub.f32 0.0, %v1092
        %v1106 = vsub.f32 0.0, %v1095
        %v1107 = vsub.f32 0.0, %v1097
        %v1108 = vsub.f32 0.0, %v1100
        %v1109 = vsub.f32 0.0, %v1102
        %v1110 = vmul.f32 %v1104, 1.442695
        %v1111 = vpow.pop %v1110
        %v1112 = vmul.f32 %v1105, 1.442695
        %v1113 = vpow.pop %v1112
        %v1114 = vmul.f32 %v1106, 1.442695
        %v1115 = vpow.pop %v1114
        %v1116 = vmul.f32 %v1107, 1.442695
        %v1117 = vpow.pop %v1116
        %v1118 = vmul.f32 %v1108, 1.442695
        %v1119 = vpow.pop %v1118
        %v1120 = vmul.f32 %v1109, 1.442695
        %v1121 = vpow.pop %v1120
        %v1122 = vadd.f32 %v1111, 1.0
        %v1123 = vadd.f32 %v1113, 1.0
        %v1124 = vadd.f32 %v1115, 1.0
        %v1125 = vadd.f32 %v1117, 1.0
        %v1126 = vadd.f32 %v1119, 1.0
        %v1127 = vadd.f32 %v1121, 1.0
        %v1128 = vrcp.pop %v1122
        %v1129 = vmul.f32 %v1122, %v1128
        %v1130 = vsub.f32 1.0, %v1129
        %v1131 = vmul.f32 %v1128, %v1130
        %v1132 = vadd.f32 %v1128, %v1131
        %vm1133 = vweird.f32 %v1122
        %vm1134 = vweird.f32 %v1128
        %vm1135 = vmor %vm1133, %vm1134
        %v1136 = vsel %vm1135, %v1128, %v1132
        %v1137 = vand.u32 2147483647, %v1122
        %vm1138 = vcmp.eq.f32.partialorder %v1137, 8.507059e+37
        %v1139 = vand.u32 %v1122, 2147483648
        %v1140 = vor.u32 1.1754944e-38, %v1139
        %v1141 = vsel %vm1138, %v1140, %v1136
        %v1142 = vmul.f32 1.0, %v1141
        %v1143 = vrcp.pop %v1123
        %v1144 = vmul.f32 %v1123, %v1143
        %v1145 = vsub.f32 1.0, %v1144
        %v1146 = vmul.f32 %v1143, %v1145
        %v1147 = vadd.f32 %v1143, %v1146
        %vm1148 = vweird.f32 %v1123
        %vm1149 = vweird.f32 %v1143
        %vm1150 = vmor %vm1148, %vm1149
        %v1151 = vsel %vm1150, %v1143, %v1147
        %v1152 = vand.u32 2147483647, %v1123
        %vm1153 = vcmp.eq.f32.partialorder %v1152, 8.507059e+37
        %v1154 = vand.u32 %v1123, 2147483648
        %v1155 = vor.u32 1.1754944e-38, %v1154
        %v1156 = vsel %vm1153, %v1155, %v1151
        %v1157 = vmul.f32 1.0, %v1156
        %v1158 = vrcp.pop %v1124
        %v1159 = vmul.f32 %v1124, %v1158
        %v1160 = vsub.f32 1.0, %v1159
        %v1161 = vmul.f32 %v1158, %v1160
        %v1162 = vadd.f32 %v1158, %v1161
        %vm1163 = vweird.f32 %v1124
        %vm1164 = vweird.f32 %v1158
        %vm1165 = vmor %vm1163, %vm1164
        %v1166 = vsel %vm1165, %v1158, %v1162
        %v1167 = vand.u32 2147483647, %v1124
        %vm1168 = vcmp.eq.f32.partialorder %v1167, 8.507059e+37
        %v1169 = vand.u32 %v1124, 2147483648
        %v1170 = vor.u32 1.1754944e-38, %v1169
        %v1171 = vsel %vm1168, %v1170, %v1166
        %v1172 = vmul.f32 1.0, %v1171
        %v1173 = vrcp.pop %v1125
        %v1174 = vmul.f32 %v1125, %v1173
        %v1175 = vsub.f32 1.0, %v1174
        %v1176 = vmul.f32 %v1173, %v1175
        %v1177 = vadd.f32 %v1173, %v1176
        %vm1178 = vweird.f32 %v1125
        %vm1179 = vweird.f32 %v1173
        %vm1180 = vmor %vm1178, %vm1179
        %v1181 = vsel %vm1180, %v1173, %v1177
        %v1182 = vand.u32 2147483647, %v1125
        %vm1183 = vcmp.eq.f32.partialorder %v1182, 8.507059e+37
        %v1184 = vand.u32 %v1125, 2147483648
        %v1185 = vor.u32 1.1754944e-38, %v1184
        %v1186 = vsel %vm1183, %v1185, %v1181
        %v1187 = vmul.f32 1.0, %v1186
        %v1188 = vrcp.pop %v1126
        %v1189 = vmul.f32 %v1126, %v1188
        %v1190 = vsub.f32 1.0, %v1189
        %v1191 = vmul.f32 %v1188, %v1190
        %v1192 = vadd.f32 %v1188, %v1191
        %vm1193 = vweird.f32 %v1126
        %vm1194 = vweird.f32 %v1188
        %vm1195 = vmor %vm1193, %vm1194
        %v1196 = vsel %vm1195, %v1188, %v1192
        %v1197 = vand.u32 2147483647, %v1126
        %vm1198 = vcmp.eq.f32.partialorder %v1197, 8.507059e+37
        %v1199 = vand.u32 %v1126, 2147483648
        %v1200 = vor.u32 1.1754944e-38, %v1199
        %v1201 = vsel %vm1198, %v1200, %v1196
        %v1202 = vmul.f32 1.0, %v1201
        %v1203 = vrcp.pop %v1127
        %v1204 = vmul.f32 %v1127, %v1203
        %v1205 = vsub.f32 1.0, %v1204
        %v1206 = vmul.f32 %v1203, %v1205
        %v1207 = vadd.f32 %v1203, %v1206
        %vm1208 = vweird.f32 %v1127
        %vm1209 = vweird.f32 %v1203
        %vm1210 = vmor %vm1208, %vm1209
        %v1211 = vsel %vm1210, %v1203, %v1207
        %v1212 = vand.u32 2147483647, %v1127
        %vm1213 = vcmp.eq.f32.partialorder %v1212, 8.507059e+37
        %v1214 = vand.u32 %v1127, 2147483648
        %v1215 = vor.u32 1.1754944e-38, %v1214
        %v1216 = vsel %vm1213, %v1215, %v1211
        %v1217 = vmul.f32 1.0, %v1216
        %v1218 = vmul.f32 %v1090, %v1142
        %v1219 = vmul.f32 %v1092, %v1157
        %v1220 = vmul.f32 %v1095, %v1172
        %v1221 = vmul.f32 %v1097, %v1187
        %v1222 = vmul.f32 %v1100, %v1202
        %v1223 = vmul.f32 %v1102, %v1217
        %v1224 = vpack.c.bf16 %v1219, %v1218
        %v1225 = vpack.c.bf16 %v1221, %v1220
        %v1226 = vpack.c.bf16 %v1223, %v1222
        %v1227 = vld [vmem:[%s694] sm:$0xf]
        %v1228 = vld [vmem:[%s694 + $0x4] sm:$0xf]
        %v1229 = vld [vmem:[%s694 + $0x8] sm:$0xf]
        %v1230 = vld [vmem:[%s694 + $0xc] sm:$0xf]
        %v1231 = vld [vmem:[%s819] sm:$0x1]
        %v1233 = vperm.slane %v1231, 0
        %v1239 = vunpack.c.l.b16 %v1227
        %v1240 = vunpack.c.l.b16 %v1228
        %v1241 = vunpack.c.l.b16 %v1229
        %v1242 = vunpack.c.l.b16 %v1230
        %v1243 = vpack.c.b16 %v1240, %v1239
        %v1244 = vpack.c.b16 %v1242, %v1241
        %v1248 = vsel %vm890, %v1224, 0
        %v1251 = vsel %vm890, %v1225, 0
        %v1254 = vsel %vm890, %v1226, 0
        %1256 = vmatpush.bf16.msra.mxu0 0
        %1257 = vmatpush.bf16.msra.mxu0 0
        %1258 = vmatpush.bf16.msra.mxu0 0
        %1259 = vmatpush.bf16.msra.mxu0 0
        %1260 = vmatpush.bf16.msra.mxu0 0
        %1261 = vmatpush.bf16.msra.mxu0 0
        %1262 = vmatpush.bf16.msra.mxu0 %v1244
        %1263 = vmatpush.bf16.msra.mxu0 %v1243
        %1264 = vmatmul.bf16.gmra.mxu0 %v1248
        %v1265 = vpop.f32.mrf.mxu0
        %v1266 = vadd.f32 %v1233, %v1265
        %v1267 = vpop.f32.mrf.mxu0
        %v1268 = vadd.f32 %v1233, %v1267
        %1269 = vmatmul.bf16.gmra.mxu0 %v1251
        %v1270 = vpop.f32.mrf.mxu0
        %v1271 = vadd.f32 %v1233, %v1270
        %v1272 = vpop.f32.mrf.mxu0
        %v1273 = vadd.f32 %v1233, %v1272
        %1274 = vmatmul.bf16.gmra.mxu0 %v1254
        %v1275 = vpop.f32.mrf.mxu0
        %v1276 = vadd.f32 %v1233, %v1275
        %v1277 = vpop.f32.mrf.mxu0
        %v1278 = vadd.f32 %v1233, %v1277
        %1279 = vdwg.mxu0
        %v1280 = vmax.f32 %v1266, 0.0
        %v1281 = vmax.f32 %v1268, 0.0
        %v1282 = vmax.f32 %v1271, 0.0
        %v1283 = vmax.f32 %v1273, 0.0
        %v1284 = vmax.f32 %v1276, 0.0
        %v1285 = vmax.f32 %v1278, 0.0
        %v1286 = vand.u32 2147483647, %v1266
        %v1287 = vand.u32 2147483647, %v1268
        %v1288 = vand.u32 2147483647, %v1271
        %v1289 = vand.u32 2147483647, %v1273
        %v1290 = vand.u32 2147483647, %v1276
        %v1291 = vand.u32 2147483647, %v1278
        %v1292 = vsub.f32 0.0, %v1286
        %v1293 = vsub.f32 0.0, %v1287
        %v1294 = vsub.f32 0.0, %v1288
        %v1295 = vsub.f32 0.0, %v1289
        %v1296 = vsub.f32 0.0, %v1290
        %v1297 = vsub.f32 0.0, %v1291
        %v1298 = vmul.f32 %v1292, 1.442695
        %v1299 = vpow.pop %v1298
        %v1300 = vmul.f32 %v1293, 1.442695
        %v1301 = vpow.pop %v1300
        %v1302 = vmul.f32 %v1294, 1.442695
        %v1303 = vpow.pop %v1302
        %v1304 = vmul.f32 %v1295, 1.442695
        %v1305 = vpow.pop %v1304
        %v1306 = vmul.f32 %v1296, 1.442695
        %v1307 = vpow.pop %v1306
        %v1308 = vmul.f32 %v1297, 1.442695
        %v1309 = vpow.pop %v1308
        %v1310 = vadd.f32 %v1299, 1.0
        %v1311 = vadd.f32 %v1301, 1.0
        %v1312 = vadd.f32 %v1303, 1.0
        %v1313 = vadd.f32 %v1305, 1.0
        %v1314 = vadd.f32 %v1307, 1.0
        %v1315 = vadd.f32 %v1309, 1.0
        %v1316 = vlog2.pop %v1310
        %v1317 = vmul.f32 %v1316, 0.6931472
        %v1318 = vlog2.pop %v1311
        %v1319 = vmul.f32 %v1318, 0.6931472
        %v1320 = vlog2.pop %v1312
        %v1321 = vmul.f32 %v1320, 0.6931472
        %v1322 = vlog2.pop %v1313
        %v1323 = vmul.f32 %v1322, 0.6931472
        %v1324 = vlog2.pop %v1314
        %v1325 = vmul.f32 %v1324, 0.6931472
        %v1326 = vlog2.pop %v1315
        %v1327 = vmul.f32 %v1326, 0.6931472
        %v1328 = vadd.f32 %v1280, %v1317
        %v1329 = vadd.f32 %v1281, %v1319
        %v1330 = vadd.f32 %v1282, %v1321
        %v1331 = vadd.f32 %v1283, %v1323
        %v1332 = vadd.f32 %v1284, %v1325
        %v1333 = vadd.f32 %v1285, %v1327
        %v1334 = vld [vmem:[%s824] sm:$0xf]
        %v1335 = vld [vmem:[%s824 + $0x4] sm:$0xf]
        %v1336 = vld [vmem:[%s824 + $0x8] sm:$0xf]
        %v1337 = vld [vmem:[%s824 + $0xc] sm:$0xf]
        %v1342 = vunpack.c.l.b16 %v1334
        %v1343 = vunpack.c.l.b16 %v1335
        %v1344 = vunpack.c.l.b16 %v1336
        %v1345 = vunpack.c.l.b16 %v1337
        %v1346 = vpack.c.b16 %v1343, %v1342
        %v1347 = vpack.c.b16 %v1345, %v1344
        %1350 = vmatpush.bf16.msra.mxu0 0
        %1351 = vmatpush.bf16.msra.mxu0 0
        %1352 = vmatpush.bf16.msra.mxu0 0
        %1353 = vmatpush.bf16.msra.mxu0 0
        %1354 = vmatpush.bf16.msra.mxu0 0
        %1355 = vmatpush.bf16.msra.mxu0 0
        %1356 = vmatpush.bf16.msra.mxu0 %v1347
        %1357 = vmatpush.bf16.msra.mxu0 %v1346
        %1358 = vmatmul.bf16.gmra.mxu0 %v1072
        %v1359 = vpop.f32.mrf.mxu0
        %v1360 = vadd.f32 0.0, %v1359
        %v1361 = vpop.f32.mrf.mxu0
        %v1362 = vadd.f32 0.0, %v1361
        %1363 = vmatmul.bf16.gmra.mxu0 %v1075
        %v1364 = vpop.f32.mrf.mxu0
        %v1365 = vadd.f32 0.0, %v1364
        %v1366 = vpop.f32.mrf.mxu0
        %v1367 = vadd.f32 0.0, %v1366
        %1368 = vmatmul.bf16.gmra.mxu0 %v1078
        %v1369 = vpop.f32.mrf.mxu0
        %v1370 = vadd.f32 0.0, %v1369
        %v1371 = vpop.f32.mrf.mxu0
        %v1372 = vadd.f32 0.0, %v1371
        %1373 = vdwg.mxu0
        %v1374 = vld [vmem:[%s828] sm:$0xff]
        %v1375 = vmul.f32 %v1374, 1.442695
        %v1376 = vpow.pop %v1375
        %v1377 = vsub.f32 0.0, %v1376
        %1378 = vst.msk [vmem:[#allocation3] sm:$0xff] %vm890, %v1328
        %1379 = vst.msk [vmem:[#allocation3 + $0x8] sm:$0xff] %vm890, %v1329
        %1380 = vst.msk [vmem:[#allocation3 + $0x10] sm:$0xff] %vm890, %v1330
        %1381 = vst.msk [vmem:[#allocation3 + $0x18] sm:$0xff] %vm890, %v1331
        %1382 = vst.msk [vmem:[#allocation3 + $0x20] sm:$0xff] %vm890, %v1332
        %1383 = vst.msk [vmem:[#allocation3 + $0x28] sm:$0xff] %vm890, %v1333
        %v1384 = vmul.f32 %v1328, %v1218
        %v1385 = vmul.f32 %v1329, %v1219
        %v1386 = vmul.f32 %v1330, %v1220
        %v1387 = vmul.f32 %v1331, %v1221
        %v1388 = vmul.f32 %v1332, %v1222
        %v1389 = vmul.f32 %v1333, %v1223
        %1390 = vst.msk [vmem:[#allocation4] sm:$0xff] %vm890, %v1384
        %1391 = vst.msk [vmem:[#allocation4 + $0x8] sm:$0xff] %vm890, %v1385
        %1392 = vst.msk [vmem:[#allocation4 + $0x10] sm:$0xff] %vm890, %v1386
        %1393 = vst.msk [vmem:[#allocation4 + $0x18] sm:$0xff] %vm890, %v1387
        %1394 = vst.msk [vmem:[#allocation4 + $0x20] sm:$0xff] %vm890, %v1388
        %1395 = vst.msk [vmem:[#allocation4 + $0x28] sm:$0xff] %vm890, %v1389
        %vm1396 = vcmask 130048
        %1397 = vst.msk [vmem:[#allocation5] sm:$0xff] %vm1396, %v1360
        %1398 = vst.msk [vmem:[#allocation5 + $0x8] sm:$0xff] %vm1396, %v1362
        %1399 = vst.msk [vmem:[#allocation5 + $0x10] sm:$0xff] %vm1396, %v1365
        %1400 = vst.msk [vmem:[#allocation5 + $0x18] sm:$0xff] %vm1396, %v1367
        %1401 = vst.msk [vmem:[#allocation5 + $0x20] sm:$0xff] %vm1396, %v1370
        %1402 = vst.msk [vmem:[#allocation5 + $0x28] sm:$0xff] %vm1396, %v1372
        loop: start=0, step=1, limit=3
        $region109: #{masking_net_forward.1} parent=91 // loop_pre_header
          _
        $region110: #{masking_net_forward.1} parent=91 // loop_header
          %s1404 = sphi 0, %s1408
          %p1405 = scmp.ge.s32.totalorder %s1404, 3
          %v1409 = vphi 0.0, %v1919
          %v1410 = vphi 0.0, %v1920
        $region111: #{masking_net_forward.1} parent=91 // loop_header_branch
          %1407 = sbr.rel (%p1405) target = $region115
        $region112: #{masking_net_forward.1} parent=91 // loop_body
          %s1411 = smul.u32 %s1404, 8
          %s1412 = scalar_lea.vmem [#allocation3], %s1411
          %v1413 = vld [vmem:[%s1412] sm:$0xff]
          %v1414 = vld [vmem:[%s1412 + $0x18] sm:$0xff]
          %s1415 = scalar_lea.vmem [#allocation4], %s1411
          %v1416 = vld [vmem:[%s1415] sm:$0xff]
          %v1417 = vld [vmem:[%s1415 + $0x18] sm:$0xff]
          %s1418 = scalar_lea.vmem [#allocation5], %s1411
          %v1419 = vld [vmem:[%s1418] sm:$0xff]
          %v1420 = vld [vmem:[%s1418 + $0x18] sm:$0xff]
          %v1423 = vrot.slane %v1413, 1
          %v1424 = vrot.slane %v1413, 2
          %v1425 = vrot.slane %v1413, 3
          %v1426 = vrot.slane %v1413, 4
          %v1427 = vrot.slane %v1413, 5
          %v1428 = vrot.slane %v1413, 6
          %v1429 = vrot.slane %v1413, 7
          %v1430 = vrot.slane %v1414, 1
          %v1431 = vrot.slane %v1414, 2
          %v1432 = vrot.slane %v1414, 3
          %v1433 = vrot.slane %v1414, 4
          %v1434 = vrot.slane %v1414, 5
          %v1435 = vrot.slane %v1414, 6
          %v1436 = vrot.slane %v1414, 7
          %v1437 = vperm.slane %v1413, 0
          %v1438 = vperm.slane %v1423, 0
          %v1439 = vperm.slane %v1424, 0
          %v1440 = vperm.slane %v1425, 0
          %v1441 = vperm.slane %v1426, 0
          %v1442 = vperm.slane %v1427, 0
          %v1443 = vperm.slane %v1428, 0
          %v1444 = vperm.slane %v1429, 0
          %v1445 = vperm.slane %v1414, 0
          %v1446 = vperm.slane %v1430, 0
          %v1447 = vperm.slane %v1431, 0
          %v1448 = vperm.slane %v1432, 0
          %v1449 = vperm.slane %v1433, 0
          %v1450 = vperm.slane %v1434, 0
          %v1451 = vperm.slane %v1435, 0
          %v1452 = vperm.slane %v1436, 0
          %v1469 = vmul.f32 %v1437, %v1377
          %v1470 = vmul.f32 %v1438, %v1377
          %v1471 = vmul.f32 %v1439, %v1377
          %v1472 = vmul.f32 %v1440, %v1377
          %v1473 = vmul.f32 %v1441, %v1377
          %v1474 = vmul.f32 %v1442, %v1377
          %v1475 = vmul.f32 %v1443, %v1377
          %v1476 = vmul.f32 %v1444, %v1377
          %v1477 = vmul.f32 %v1445, %v1377
          %v1478 = vmul.f32 %v1446, %v1377
          %v1479 = vmul.f32 %v1447, %v1377
          %v1480 = vmul.f32 %v1448, %v1377
          %v1481 = vmul.f32 %v1449, %v1377
          %v1482 = vmul.f32 %v1450, %v1377
          %v1483 = vmul.f32 %v1451, %v1377
          %v1484 = vmul.f32 %v1452, %v1377
          %v1485 = vmul.f32 %v1469, 1.442695
          %v1486 = vpow.pop %v1485
          %v1487 = vmul.f32 %v1470, 1.442695
          %v1488 = vpow.pop %v1487
          %v1489 = vmul.f32 %v1471, 1.442695
          %v1490 = vpow.pop %v1489
          %v1491 = vmul.f32 %v1472, 1.442695
          %v1492 = vpow.pop %v1491
          %v1493 = vmul.f32 %v1473, 1.442695
          %v1494 = vpow.pop %v1493
          %v1495 = vmul.f32 %v1474, 1.442695
          %v1496 = vpow.pop %v1495
          %v1497 = vmul.f32 %v1475, 1.442695
          %v1498 = vpow.pop %v1497
          %v1499 = vmul.f32 %v1476, 1.442695
          %v1500 = vpow.pop %v1499
          %v1501 = vmul.f32 %v1477, 1.442695
          %v1502 = vpow.pop %v1501
          %v1503 = vmul.f32 %v1478, 1.442695
          %v1504 = vpow.pop %v1503
          %v1505 = vmul.f32 %v1479, 1.442695
          %v1506 = vpow.pop %v1505
          %v1507 = vmul.f32 %v1480, 1.442695
          %v1508 = vpow.pop %v1507
          %v1509 = vmul.f32 %v1481, 1.442695
          %v1510 = vpow.pop %v1509
          %v1511 = vmul.f32 %v1482, 1.442695
          %v1512 = vpow.pop %v1511
          %v1513 = vmul.f32 %v1483, 1.442695
          %v1514 = vpow.pop %v1513
          %v1515 = vmul.f32 %v1484, 1.442695
          %v1516 = vpow.pop %v1515
          %v1519 = vrot.slane %v1416, 1
          %v1520 = vrot.slane %v1416, 2
          %v1521 = vrot.slane %v1416, 3
          %v1522 = vrot.slane %v1416, 4
          %v1523 = vrot.slane %v1416, 5
          %v1524 = vrot.slane %v1416, 6
          %v1525 = vrot.slane %v1416, 7
          %v1526 = vrot.slane %v1417, 1
          %v1527 = vrot.slane %v1417, 2
          %v1528 = vrot.slane %v1417, 3
          %v1529 = vrot.slane %v1417, 4
          %v1530 = vrot.slane %v1417, 5
          %v1531 = vrot.slane %v1417, 6
          %v1532 = vrot.slane %v1417, 7
          %v1533 = vperm.slane %v1419, 0
          %v1534 = vlaneseq
          %v1535 = vshrl.u32 %v1534, 7
          %1537 = vset.pattern.permute.xlu0 %v1535
          %1538 = vperm.xlu0 %1537, %v1533
          %v1539 = vpop.permute.xlu0 %1538
          %v1540 = vperm.slane %v1419, 1
          %v1541 = vlaneseq
          %v1542 = vshrl.u32 %v1541, 7
          %1544 = vset.pattern.permute.xlu0 %v1542
          %1545 = vperm.xlu0 %1544, %v1540
          %v1546 = vpop.permute.xlu0 %1545
          %v1547 = vperm.slane %v1419, 2
          %v1548 = vlaneseq
          %v1549 = vshrl.u32 %v1548, 7
          %1551 = vset.pattern.permute.xlu0 %v1549
          %1552 = vperm.xlu0 %1551, %v1547
          %v1553 = vpop.permute.xlu0 %1552
          %v1554 = vperm.slane %v1419, 3
          %v1555 = vlaneseq
          %v1556 = vshrl.u32 %v1555, 7
          %1558 = vset.pattern.permute.xlu0 %v1556
          %1559 = vperm.xlu0 %1558, %v1554
          %v1560 = vpop.permute.xlu0 %1559
          %v1561 = vperm.slane %v1419, 4
          %v1562 = vlaneseq
          %v1563 = vshrl.u32 %v1562, 7
          %1565 = vset.pattern.permute.xlu0 %v1563
          %1566 = vperm.xlu0 %1565, %v1561
          %v1567 = vpop.permute.xlu0 %1566
          %v1568 = vperm.slane %v1419, 5
          %v1569 = vlaneseq
          %v1570 = vshrl.u32 %v1569, 7
          %1572 = vset.pattern.permute.xlu0 %v1570
          %1573 = vperm.xlu0 %1572, %v1568
          %v1574 = vpop.permute.xlu0 %1573
          %v1575 = vperm.slane %v1419, 6
          %v1576 = vlaneseq
          %v1577 = vshrl.u32 %v1576, 7
          %1579 = vset.pattern.permute.xlu0 %v1577
          %1580 = vperm.xlu0 %1579, %v1575
          %v1581 = vpop.permute.xlu0 %1580
          %v1582 = vperm.slane %v1419, 7
          %v1583 = vlaneseq
          %v1584 = vshrl.u32 %v1583, 7
          %1586 = vset.pattern.permute.xlu0 %v1584
          %1587 = vperm.xlu0 %1586, %v1582
          %v1588 = vpop.permute.xlu0 %1587
          %v1589 = vperm.slane %v1420, 0
          %v1590 = vlaneseq
          %v1591 = vshrl.u32 %v1590, 7
          %1593 = vset.pattern.permute.xlu0 %v1591
          %1594 = vperm.xlu0 %1593, %v1589
          %v1595 = vpop.permute.xlu0 %1594
          %v1596 = vperm.slane %v1420, 1
          %v1597 = vlaneseq
          %v1598 = vshrl.u32 %v1597, 7
          %1600 = vset.pattern.permute.xlu0 %v1598
          %1601 = vperm.xlu0 %1600, %v1596
          %v1602 = vpop.permute.xlu0 %1601
          %v1603 = vperm.slane %v1420, 2
          %v1604 = vlaneseq
          %v1605 = vshrl.u32 %v1604, 7
          %1607 = vset.pattern.permute.xlu0 %v1605
          %1608 = vperm.xlu0 %1607, %v1603
          %v1609 = vpop.permute.xlu0 %1608
          %v1610 = vperm.slane %v1420, 3
          %v1611 = vlaneseq
          %v1612 = vshrl.u32 %v1611, 7
          %1614 = vset.pattern.permute.xlu0 %v1612
          %1615 = vperm.xlu0 %1614, %v1610
          %v1616 = vpop.permute.xlu0 %1615
          %v1617 = vperm.slane %v1420, 4
          %v1618 = vlaneseq
          %v1619 = vshrl.u32 %v1618, 7
          %1621 = vset.pattern.permute.xlu0 %v1619
          %1622 = vperm.xlu0 %1621, %v1617
          %v1623 = vpop.permute.xlu0 %1622
          %v1624 = vperm.slane %v1420, 5
          %v1625 = vlaneseq
          %v1626 = vshrl.u32 %v1625, 7
          %1628 = vset.pattern.permute.xlu0 %v1626
          %1629 = vperm.xlu0 %1628, %v1624
          %v1630 = vpop.permute.xlu0 %1629
          %v1631 = vperm.slane %v1420, 6
          %v1632 = vlaneseq
          %v1633 = vshrl.u32 %v1632, 7
          %1635 = vset.pattern.permute.xlu0 %v1633
          %1636 = vperm.xlu0 %1635, %v1631
          %v1637 = vpop.permute.xlu0 %1636
          %v1638 = vperm.slane %v1420, 7
          %v1639 = vlaneseq
          %v1640 = vshrl.u32 %v1639, 7
          %1642 = vset.pattern.permute.xlu0 %v1640
          %1643 = vperm.xlu0 %1642, %v1638
          %v1644 = vpop.permute.xlu0 %1643
          %v1645 = vperm.slane %v1416, 0
          %v1646 = vperm.slane %v1519, 0
          %v1647 = vperm.slane %v1520, 0
          %v1648 = vperm.slane %v1521, 0
          %v1649 = vperm.slane %v1522, 0
          %v1650 = vperm.slane %v1523, 0
          %v1651 = vperm.slane %v1524, 0
          %v1652 = vperm.slane %v1525, 0
          %v1653 = vperm.slane %v1417, 0
          %v1654 = vperm.slane %v1526, 0
          %v1655 = vperm.slane %v1527, 0
          %v1656 = vperm.slane %v1528, 0
          %v1657 = vperm.slane %v1529, 0
          %v1658 = vperm.slane %v1530, 0
          %v1659 = vperm.slane %v1531, 0
          %v1660 = vperm.slane %v1532, 0
          %v1677 = vmul.f32 %v1645, %v1539
          %v1678 = vmul.f32 %v1646, %v1546
          %v1679 = vmul.f32 %v1647, %v1553
          %v1680 = vmul.f32 %v1648, %v1560
          %v1681 = vmul.f32 %v1649, %v1567
          %v1682 = vmul.f32 %v1650, %v1574
          %v1683 = vmul.f32 %v1651, %v1581
          %v1684 = vmul.f32 %v1652, %v1588
          %v1685 = vmul.f32 %v1653, %v1595
          %v1686 = vmul.f32 %v1654, %v1602
          %v1687 = vmul.f32 %v1655, %v1609
          %v1688 = vmul.f32 %v1656, %v1616
          %v1689 = vmul.f32 %v1657, %v1623
          %v1690 = vmul.f32 %v1658, %v1630
          %v1691 = vmul.f32 %v1659, %v1637
          %v1692 = vmul.f32 %v1660, %v1644
          %v1693 = vmul.f32 %v1486, %v1409
          %v1694 = vmul.f32 %v1502, %v1410
          %v1695 = vadd.f32 %v1693, %v1677
          %v1696 = vadd.f32 %v1694, %v1685
          %v1697 = vlaneseq
          %v1698 = vshrl.u32 %v1697, 7
          %v1699 = vadd.s32 %v1698, 8
          %1700 = vset.pattern.permute.xlu0 %v1699
          %1701 = vperm.xlu0 %1700, %v1533
          %v1702 = vpop.permute.xlu0 %1701
          %v1703 = vlaneseq
          %v1704 = vshrl.u32 %v1703, 7
          %v1705 = vadd.s32 %v1704, 8
          %1706 = vset.pattern.permute.xlu0 %v1705
          %1707 = vperm.xlu0 %1706, %v1589
          %v1708 = vpop.permute.xlu0 %1707
          %v1709 = vmul.f32 %v1695, %v1702
          %v1710 = vmul.f32 %v1696, %v1708
          %v1711 = vsel %vm890, %v1709, 0.0
          %v1712 = vrot.slane %v1711, 4
          %v1713 = vadd.f32 %v1711, %v1712
          %v1714 = vrot.slane %v1713, 2
          %v1715 = vadd.f32 %v1713, %v1714
          %v1716 = vrot.slane %v1715, 1
          %v1717 = vadd.f32 %v1715, %v1716
          %v1718 = vsel %vm890, %v1710, 0.0
          %v1719 = vrot.slane %v1718, 4
          %v1720 = vadd.f32 %v1718, %v1719
          %v1721 = vrot.slane %v1720, 2
          %v1722 = vadd.f32 %v1720, %v1721
          %v1723 = vrot.slane %v1722, 1
          %v1724 = vadd.f32 %v1722, %v1723
          %v1725 = vmul.f32 %v1488, %v1695
          %v1726 = vmul.f32 %v1504, %v1696
          %v1727 = vadd.f32 %v1725, %v1678
          %v1728 = vadd.f32 %v1726, %v1686
          %v1729 = vlaneseq
          %v1730 = vshrl.u32 %v1729, 7
          %v1731 = vadd.s32 %v1730, 8
          %1732 = vset.pattern.permute.xlu0 %v1731
          %1733 = vperm.xlu0 %1732, %v1540
          %v1734 = vpop.permute.xlu0 %1733
          %v1735 = vlaneseq
          %v1736 = vshrl.u32 %v1735, 7
          %v1737 = vadd.s32 %v1736, 8
          %1738 = vset.pattern.permute.xlu0 %v1737
          %1739 = vperm.xlu0 %1738, %v1596
          %v1740 = vpop.permute.xlu0 %1739
          %v1741 = vmul.f32 %v1727, %v1734
          %v1742 = vmul.f32 %v1728, %v1740
          %v1743 = vsel %vm890, %v1741, 0.0
          %v1744 = vrot.slane %v1743, 4
          %v1745 = vadd.f32 %v1743, %v1744
          %v1746 = vrot.slane %v1745, 2
          %v1747 = vadd.f32 %v1745, %v1746
          %v1748 = vrot.slane %v1747, 1
          %v1749 = vadd.f32 %v1747, %v1748
          %v1750 = vsel %vm890, %v1742, 0.0
          %v1751 = vrot.slane %v1750, 4
          %v1752 = vadd.f32 %v1750, %v1751
          %v1753 = vrot.slane %v1752, 2
          %v1754 = vadd.f32 %v1752, %v1753
          %v1755 = vrot.slane %v1754, 1
          %v1756 = vadd.f32 %v1754, %v1755
          %v1757 = vmul.f32 %v1490, %v1727
          %v1758 = vmul.f32 %v1506, %v1728
          %v1759 = vadd.f32 %v1757, %v1679
          %v1760 = vadd.f32 %v1758, %v1687
          %v1761 = vlaneseq
          %v1762 = vshrl.u32 %v1761, 7
          %v1763 = vadd.s32 %v1762, 8
          %1764 = vset.pattern.permute.xlu0 %v1763
          %1765 = vperm.xlu0 %1764, %v1547
          %v1766 = vpop.permute.xlu0 %1765
          %v1767 = vlaneseq
          %v1768 = vshrl.u32 %v1767, 7
          %v1769 = vadd.s32 %v1768, 8
          %1770 = vset.pattern.permute.xlu0 %v1769
          %1771 = vperm.xlu0 %1770, %v1603
          %v1772 = vpop.permute.xlu0 %1771
          %v1773 = vmul.f32 %v1759, %v1766
          %v1774 = vmul.f32 %v1760, %v1772
          %v1775 = vsel %vm890, %v1773, 0.0
          %v1776 = vrot.slane %v1775, 4
          %v1777 = vadd.f32 %v1775, %v1776
          %v1778 = vrot.slane %v1777, 2
          %v1779 = vadd.f32 %v1777, %v1778
          %v1780 = vrot.slane %v1779, 1
          %v1781 = vadd.f32 %v1779, %v1780
          %v1782 = vsel %vm890, %v1774, 0.0
          %v1783 = vrot.slane %v1782, 4
          %v1784 = vadd.f32 %v1782, %v1783
          %v1785 = vrot.slane %v1784, 2
          %v1786 = vadd.f32 %v1784, %v1785
          %v1787 = vrot.slane %v1786, 1
          %v1788 = vadd.f32 %v1786, %v1787
          %v1789 = vmul.f32 %v1492, %v1759
          %v1790 = vmul.f32 %v1508, %v1760
          %v1791 = vadd.f32 %v1789, %v1680
          %v1792 = vadd.f32 %v1790, %v1688
          %v1793 = vlaneseq
          %v1794 = vshrl.u32 %v1793, 7
          %v1795 = vadd.s32 %v1794, 8
          %1796 = vset.pattern.permute.xlu0 %v1795
          %1797 = vperm.xlu0 %1796, %v1554
          %v1798 = vpop.permute.xlu0 %1797
          %v1799 = vlaneseq
          %v1800 = vshrl.u32 %v1799, 7
          %v1801 = vadd.s32 %v1800, 8
          %1802 = vset.pattern.permute.xlu0 %v1801
          %1803 = vperm.xlu0 %1802, %v1610
          %v1804 = vpop.permute.xlu0 %1803
          %v1805 = vmul.f32 %v1791, %v1798
          %v1806 = vmul.f32 %v1792, %v1804
          %v1807 = vsel %vm890, %v1805, 0.0
          %v1808 = vrot.slane %v1807, 4
          %v1809 = vadd.f32 %v1807, %v1808
          %v1810 = vrot.slane %v1809, 2
          %v1811 = vadd.f32 %v1809, %v1810
          %v1812 = vrot.slane %v1811, 1
          %v1813 = vadd.f32 %v1811, %v1812
          %v1814 = vsel %vm890, %v1806, 0.0
          %v1815 = vrot.slane %v1814, 4
          %v1816 = vadd.f32 %v1814, %v1815
          %v1817 = vrot.slane %v1816, 2
          %v1818 = vadd.f32 %v1816, %v1817
          %v1819 = vrot.slane %v1818, 1
          %v1820 = vadd.f32 %v1818, %v1819
          %v1821 = vmul.f32 %v1494, %v1791
          %v1822 = vmul.f32 %v1510, %v1792
          %v1823 = vadd.f32 %v1821, %v1681
          %v1824 = vadd.f32 %v1822, %v1689
          %v1825 = vlaneseq
          %v1826 = vshrl.u32 %v1825, 7
          %v1827 = vadd.s32 %v1826, 8
          %1828 = vset.pattern.permute.xlu0 %v1827
          %1829 = vperm.xlu0 %1828, %v1561
          %v1830 = vpop.permute.xlu0 %1829
          %v1831 = vlaneseq
          %v1832 = vshrl.u32 %v1831, 7
          %v1833 = vadd.s32 %v1832, 8
          %1834 = vset.pattern.permute.xlu0 %v1833
          %1835 = vperm.xlu0 %1834, %v1617
          %v1836 = vpop.permute.xlu0 %1835
          %v1837 = vmul.f32 %v1823, %v1830
          %v1838 = vmul.f32 %v1824, %v1836
          %v1839 = vsel %vm890, %v1837, 0.0
          %v1840 = vrot.slane %v1839, 4
          %v1841 = vadd.f32 %v1839, %v1840
          %v1842 = vrot.slane %v1841, 2
          %v1843 = vadd.f32 %v1841, %v1842
          %v1844 = vrot.slane %v1843, 1
          %v1845 = vadd.f32 %v1843, %v1844
          %v1846 = vsel %vm890, %v1838, 0.0
          %v1847 = vrot.slane %v1846, 4
          %v1848 = vadd.f32 %v1846, %v1847
          %v1849 = vrot.slane %v1848, 2
          %v1850 = vadd.f32 %v1848, %v1849
          %v1851 = vrot.slane %v1850, 1
          %v1852 = vadd.f32 %v1850, %v1851
          %v1853 = vmul.f32 %v1496, %v1823
          %v1854 = vmul.f32 %v1512, %v1824
          %v1855 = vadd.f32 %v1853, %v1682
          %v1856 = vadd.f32 %v1854, %v1690
          %v1857 = vlaneseq
          %v1858 = vshrl.u32 %v1857, 7
          %v1859 = vadd.s32 %v1858, 8
          %1860 = vset.pattern.permute.xlu0 %v1859
          %1861 = vperm.xlu0 %1860, %v1568
          %v1862 = vpop.permute.xlu0 %1861
          %v1863 = vlaneseq
          %v1864 = vshrl.u32 %v1863, 7
          %v1865 = vadd.s32 %v1864, 8
          %1866 = vset.pattern.permute.xlu0 %v1865
          %1867 = vperm.xlu0 %1866, %v1624
          %v1868 = vpop.permute.xlu0 %1867
          %v1869 = vmul.f32 %v1855, %v1862
          %v1870 = vmul.f32 %v1856, %v1868
          %v1871 = vsel %vm890, %v1869, 0.0
          %v1872 = vrot.slane %v1871, 4
          %v1873 = vadd.f32 %v1871, %v1872
          %v1874 = vrot.slane %v1873, 2
          %v1875 = vadd.f32 %v1873, %v1874
          %v1876 = vrot.slane %v1875, 1
          %v1877 = vadd.f32 %v1875, %v1876
          %v1878 = vsel %vm890, %v1870, 0.0
          %v1879 = vrot.slane %v1878, 4
          %v1880 = vadd.f32 %v1878, %v1879
          %v1881 = vrot.slane %v1880, 2
          %v1882 = vadd.f32 %v1880, %v1881
          %v1883 = vrot.slane %v1882, 1
          %v1884 = vadd.f32 %v1882, %v1883
          %v1885 = vmul.f32 %v1498, %v1855
          %v1886 = vmul.f32 %v1514, %v1856
          %v1887 = vadd.f32 %v1885, %v1683
          %v1888 = vadd.f32 %v1886, %v1691
          %v1889 = vlaneseq
          %v1890 = vshrl.u32 %v1889, 7
          %v1891 = vadd.s32 %v1890, 8
          %1892 = vset.pattern.permute.xlu0 %v1891
          %1893 = vperm.xlu0 %1892, %v1575
          %v1894 = vpop.permute.xlu0 %1893
          %v1895 = vlaneseq
          %v1896 = vshrl.u32 %v1895, 7
          %v1897 = vadd.s32 %v1896, 8
          %1898 = vset.pattern.permute.xlu0 %v1897
          %1899 = vperm.xlu0 %1898, %v1631
          %v1900 = vpop.permute.xlu0 %1899
          %v1901 = vmul.f32 %v1887, %v1894
          %v1902 = vmul.f32 %v1888, %v1900
          %v1903 = vsel %vm890, %v1901, 0.0
          %v1904 = vrot.slane %v1903, 4
          %v1905 = vadd.f32 %v1903, %v1904
          %v1906 = vrot.slane %v1905, 2
          %v1907 = vadd.f32 %v1905, %v1906
          %v1908 = vrot.slane %v1907, 1
          %v1909 = vadd.f32 %v1907, %v1908
          %v1910 = vsel %vm890, %v1902, 0.0
          %v1911 = vrot.slane %v1910, 4
          %v1912 = vadd.f32 %v1910, %v1911
          %v1913 = vrot.slane %v1912, 2
          %v1914 = vadd.f32 %v1912, %v1913
          %v1915 = vrot.slane %v1914, 1
          %v1916 = vadd.f32 %v1914, %v1915
          %v1917 = vmul.f32 %v1500, %v1887
          %v1918 = vmul.f32 %v1516, %v1888
          %v1919 = vadd.f32 %v1917, %v1684
          %v1920 = vadd.f32 %v1918, %v1692
          %v1921 = vlaneseq
          %v1922 = vshrl.u32 %v1921, 7
          %v1923 = vadd.s32 %v1922, 8
          %1924 = vset.pattern.permute.xlu0 %v1923
          %1925 = vperm.xlu0 %1924, %v1582
          %v1926 = vpop.permute.xlu0 %1925
          %v1927 = vlaneseq
          %v1928 = vshrl.u32 %v1927, 7
          %v1929 = vadd.s32 %v1928, 8
          %1930 = vset.pattern.permute.xlu0 %v1929
          %1931 = vperm.xlu0 %1930, %v1638
          %v1932 = vpop.permute.xlu0 %1931
          %v1933 = vmul.f32 %v1919, %v1926
          %v1934 = vmul.f32 %v1920, %v1932
          %v1935 = vsel %vm890, %v1933, 0.0
          %v1936 = vrot.slane %v1935, 4
          %v1937 = vadd.f32 %v1935, %v1936
          %v1938 = vrot.slane %v1937, 2
          %v1939 = vadd.f32 %v1937, %v1938
          %v1940 = vrot.slane %v1939, 1
          %v1941 = vadd.f32 %v1939, %v1940
          %v1942 = vsel %vm890, %v1934, 0.0
          %v1943 = vrot.slane %v1942, 4
          %v1944 = vadd.f32 %v1942, %v1943
          %v1945 = vrot.slane %v1944, 2
          %v1946 = vadd.f32 %v1944, %v1945
          %v1947 = vrot.slane %v1946, 1
          %v1948 = vadd.f32 %v1946, %v1947
          %vm1949 = vcmask 1040384
          %v1950 = vsel %vm1949, %v1717, %v1749
          %v1951 = vsel %vm1949, %v1724, %v1756
          %vm1952 = vcmask 1041408
          %v1953 = vsel %vm1952, %v1950, %v1781
          %v1954 = vsel %vm1952, %v1951, %v1788
          %vm1955 = vcmask 1042432
          %v1956 = vsel %vm1955, %v1953, %v1813
          %v1957 = vsel %vm1955, %v1954, %v1820
          %vm1958 = vcmask 1043456
          %v1959 = vsel %vm1958, %v1956, %v1845
          %v1960 = vsel %vm1958, %v1957, %v1852
          %vm1961 = vcmask 1044480
          %v1962 = vsel %vm1961, %v1959, %v1877
          %v1963 = vsel %vm1961, %v1960, %v1884
          %vm1964 = vcmask 1045504
          %v1965 = vsel %vm1964, %v1962, %v1909
          %v1966 = vsel %vm1964, %v1963, %v1916
          %vm1967 = vcmask 1046528
          %v1968 = vsel %vm1967, %v1965, %v1941
          %v1969 = vsel %vm1967, %v1966, %v1948
          %s1970 = scalar_lea.vmem [#allocation6], %s1411
          %1971 = vst.msk [vmem:[%s1970] sm:$0xff] %vm890, %v1968
          %1972 = vst.msk [vmem:[%s1970 + $0x18] sm:$0xff] %vm890, %v1969
        $region113: #{masking_net_forward.1} parent=91 // loop_footer
          %s1408 = sadd.s32 1, %s1404
        $region114: #{masking_net_forward.1} parent=91 // loop_footer_branch
          %1403 = sbr.rel target = $region110
        $region115: #{masking_net_forward.1} parent=91 // loop_exit
          _
        %v1973 = vld [vmem:[#allocation6] sm:$0xff]
        %v1974 = vld [vmem:[#allocation6 + $0x8] sm:$0xff]
        %v1975 = vld [vmem:[#allocation6 + $0x10] sm:$0xff]
        %v1976 = vld [vmem:[#allocation6 + $0x18] sm:$0xff]
        %v1977 = vld [vmem:[#allocation6 + $0x20] sm:$0xff]
        %v1978 = vld [vmem:[#allocation6 + $0x28] sm:$0xff]
        %v1979 = vld [vmem:[%s831] sm:$0x1]
        %v1981 = vperm.slane %v1979, 0
        %v1983 = vmul.f32 %v1218, %v1981
        %v1984 = vmul.f32 %v1219, %v1981
        %v1985 = vmul.f32 %v1220, %v1981
        %v1986 = vmul.f32 %v1221, %v1981
        %v1987 = vmul.f32 %v1222, %v1981
        %v1988 = vmul.f32 %v1223, %v1981
        %v1989 = vadd.f32 %v1973, %v1983
        %v1990 = vadd.f32 %v1974, %v1984
        %v1991 = vadd.f32 %v1975, %v1985
        %v1992 = vadd.f32 %v1976, %v1986
        %v1993 = vadd.f32 %v1977, %v1987
        %v1994 = vadd.f32 %v1978, %v1988
        %2001 = vrot.lane.b32.xlu0 %v1218, 96
        %v2002 = vpop.permute.xlu0 %2001
        %2003 = vrot.lane.b32.xlu0 %v1219, 96
        %v2004 = vpop.permute.xlu0 %2003
        %2005 = vrot.lane.b32.xlu0 %v1220, 96
        %v2006 = vpop.permute.xlu0 %2005
        %2007 = vrot.lane.b32.xlu0 %v1221, 96
        %v2008 = vpop.permute.xlu0 %2007
        %2009 = vrot.lane.b32.xlu0 %v1222, 96
        %v2010 = vpop.permute.xlu0 %2009
        %2011 = vrot.lane.b32.xlu0 %v1223, 96
        %v2012 = vpop.permute.xlu0 %2011
        %v2019 = vmul.f32 %v1989, %v2002
        %v2020 = vmul.f32 %v1990, %v2004
        %v2021 = vmul.f32 %v1991, %v2006
        %v2022 = vmul.f32 %v1992, %v2008
        %v2023 = vmul.f32 %v1993, %v2010
        %v2024 = vmul.f32 %v1994, %v2012
        %v2025 = vpack.c.bf16 %v2020, %v2019
        %v2026 = vpack.c.bf16 %v2022, %v2021
        %v2027 = vpack.c.bf16 %v2024, %v2023
        %v2028 = vld [vmem:[%s704] sm:$0xf]
        %v2029 = vld [vmem:[%s704 + $0x4] sm:$0xf]
        %v2030 = vld [vmem:[%s704 + $0x8] sm:$0xf]
        %v2031 = vld [vmem:[%s704 + $0xc] sm:$0xf]
        %v2036 = vunpack.c.l.b16 %v2028
        %v2037 = vunpack.c.l.b16 %v2029
        %v2038 = vunpack.c.l.b16 %v2030
        %v2039 = vunpack.c.l.b16 %v2031
        %v2040 = vpack.c.b16 %v2037, %v2036
        %v2041 = vpack.c.b16 %v2039, %v2038
        %v2045 = vsel %vm890, %v2025, 0
        %v2048 = vsel %vm890, %v2026, 0
        %v2051 = vsel %vm890, %v2027, 0
        %2053 = vmatpush.bf16.msra.mxu0 0
        %2054 = vmatpush.bf16.msra.mxu0 0
        %2055 = vmatpush.bf16.msra.mxu0 0
        %2056 = vmatpush.bf16.msra.mxu0 0
        %2057 = vmatpush.bf16.msra.mxu0 0
        %2058 = vmatpush.bf16.msra.mxu0 0
        %2059 = vmatpush.bf16.msra.mxu0 %v2041
        %2060 = vmatpush.bf16.msra.mxu0 %v2040
        %2061 = vmatmul.bf16.gmra.mxu0 %v2045
        %v2062 = vpop.f32.mrf.mxu0
        %v2063 = vadd.f32 0.0, %v2062
        %v2064 = vpop.f32.mrf.mxu0
        %v2065 = vadd.f32 0.0, %v2064
        %2066 = vmatmul.bf16.gmra.mxu0 %v2048
        %v2067 = vpop.f32.mrf.mxu0
        %v2068 = vadd.f32 0.0, %v2067
        %v2069 = vpop.f32.mrf.mxu0
        %v2070 = vadd.f32 0.0, %v2069
        %2071 = vmatmul.bf16.gmra.mxu0 %v2051
        %v2072 = vpop.f32.mrf.mxu0
        %v2073 = vadd.f32 0.0, %v2072
        %v2074 = vpop.f32.mrf.mxu0
        %v2075 = vadd.f32 0.0, %v2074
        %2076 = vdwg.mxu0
        %v2077 = vadd.f32 %v882, %v2063
        %v2078 = vadd.f32 %v883, %v2065
        %v2079 = vadd.f32 %v884, %v2068
        %v2080 = vadd.f32 %v885, %v2070
        %v2081 = vadd.f32 %v886, %v2073
        %v2082 = vadd.f32 %v887, %v2075
        %v2083 = vld [vmem:[%s834] sm:$0x1]
        %v2085 = vperm.slane %v2083, 0
        %v2087 = vadd.f32 %v2077, %v2085
        %v2088 = vadd.f32 %v2078, %v2085
        %v2089 = vadd.f32 %v2079, %v2085
        %v2090 = vadd.f32 %v2080, %v2085
        %v2091 = vadd.f32 %v2081, %v2085
        %v2092 = vadd.f32 %v2082, %v2085
        %2093 = vst.msk [vmem:[#allocation2] sm:$0xff] %vm890, %v2087
        %2094 = vst.msk [vmem:[#allocation2 + $0x8] sm:$0xff] %vm890, %v2088
        %2095 = vst.msk [vmem:[#allocation2 + $0x10] sm:$0xff] %vm890, %v2089
        %2096 = vst.msk [vmem:[#allocation2 + $0x18] sm:$0xff] %vm890, %v2090
        %2097 = vst.msk [vmem:[#allocation2 + $0x20] sm:$0xff] %vm890, %v2091
        %2098 = vst.msk [vmem:[#allocation2 + $0x28] sm:$0xff] %vm890, %v2092
        %p2099 = scmp.eq.s32.totalorder %s43, 2
        // Predicated region
        $region116: #{masking_net_forward.1} parent=91 // pred_check
          %p2100 = pneg %p2099
        $region117: #{masking_net_forward.1} parent=91 // pred_check_branch
          %2102 = sbr.rel (%p2100) target = $region119
        $region118: #{masking_net_forward.1} parent=91 // pred_region
          %v2103 = vld [vmem:[%s14] sm:$0x1]
          %v2104 = vld [vmem:[%s15] sm:$0x1]
          %v2105 = vsel %vm890, %v2087, 0.0
          %2106 = vadd.xlane.f32.xlu0 %v2105
          %v2107 = vpop.xlane.xlu0 %2106
          %v2108 = vsel %vm890, %v2088, 0.0
          %2109 = vadd.xlane.f32.xlu0 %v2108
          %v2110 = vpop.xlane.xlu0 %2109
          %v2111 = vsel %vm890, %v2089, 0.0
          %2112 = vadd.xlane.f32.xlu0 %v2111
          %v2113 = vpop.xlane.xlu0 %2112
          %v2114 = vsel %vm890, %v2090, 0.0
          %2115 = vadd.xlane.f32.xlu0 %v2114
          %v2116 = vpop.xlane.xlu0 %2115
          %v2117 = vsel %vm890, %v2091, 0.0
          %2118 = vadd.xlane.f32.xlu0 %v2117
          %v2119 = vpop.xlane.xlu0 %2118
          %v2120 = vsel %vm890, %v2092, 0.0
          %2121 = vadd.xlane.f32.xlu0 %v2120
          %v2122 = vpop.xlane.xlu0 %2121
          %v2123 = vmul.f32 %v2107, %v915
          %v2124 = vmul.f32 %v2110, %v915
          %v2125 = vmul.f32 %v2113, %v915
          %v2126 = vmul.f32 %v2116, %v915
          %v2127 = vmul.f32 %v2119, %v915
          %v2128 = vmul.f32 %v2122, %v915
          %v2129 = vsub.f32 %v2087, %v2123
          %v2130 = vsub.f32 %v2088, %v2124
          %v2131 = vsub.f32 %v2089, %v2125
          %v2132 = vsub.f32 %v2090, %v2126
          %v2133 = vsub.f32 %v2091, %v2127
          %v2134 = vsub.f32 %v2092, %v2128
          %v2135 = vmul.f32 %v2129, %v2129
          %v2136 = vmul.f32 %v2130, %v2130
          %v2137 = vmul.f32 %v2131, %v2131
          %v2138 = vmul.f32 %v2132, %v2132
          %v2139 = vmul.f32 %v2133, %v2133
          %v2140 = vmul.f32 %v2134, %v2134
          %v2141 = vsel %vm890, %v2135, 0.0
          %2142 = vadd.xlane.f32.xlu0 %v2141
          %v2143 = vpop.xlane.xlu0 %2142
          %v2144 = vsel %vm890, %v2136, 0.0
          %2145 = vadd.xlane.f32.xlu0 %v2144
          %v2146 = vpop.xlane.xlu0 %2145
          %v2147 = vsel %vm890, %v2137, 0.0
          %2148 = vadd.xlane.f32.xlu0 %v2147
          %v2149 = vpop.xlane.xlu0 %2148
          %v2150 = vsel %vm890, %v2138, 0.0
          %2151 = vadd.xlane.f32.xlu0 %v2150
          %v2152 = vpop.xlane.xlu0 %2151
          %v2153 = vsel %vm890, %v2139, 0.0
          %2154 = vadd.xlane.f32.xlu0 %v2153
          %v2155 = vpop.xlane.xlu0 %2154
          %v2156 = vsel %vm890, %v2140, 0.0
          %2157 = vadd.xlane.f32.xlu0 %v2156
          %v2158 = vpop.xlane.xlu0 %2157
          %v2159 = vmul.f32 %v2143, %v915
          %v2160 = vmul.f32 %v2146, %v915
          %v2161 = vmul.f32 %v2149, %v915
          %v2162 = vmul.f32 %v2152, %v915
          %v2163 = vmul.f32 %v2155, %v915
          %v2164 = vmul.f32 %v2158, %v915
          %v2165 = vadd.f32 %v2159, 1e-05
          %v2166 = vadd.f32 %v2160, 1e-05
          %v2167 = vadd.f32 %v2161, 1e-05
          %v2168 = vadd.f32 %v2162, 1e-05
          %v2169 = vadd.f32 %v2163, 1e-05
          %v2170 = vadd.f32 %v2164, 1e-05
          %v2171 = vrsqrt.pop %v2165
          %v2172 = vmul.f32 %v2171, %v2165
          %v2173 = vmul.f32 %v2172, %v2171
          %v2174 = vmul.f32 0.5, %v2173
          %v2175 = vsub.f32 1.5, %v2174
          %v2176 = vmul.f32 %v2171, %v2175
          %vm2177 = vweird.f32 %v2165
          %vm2178 = vweird.f32 %v2171
          %vm2179 = vmor %vm2177, %vm2178
          %v2180 = vsel %vm2179, %v2171, %v2176
          %v2181 = vrsqrt.pop %v2166
          %v2182 = vmul.f32 %v2181, %v2166
          %v2183 = vmul.f32 %v2182, %v2181
          %v2184 = vmul.f32 0.5, %v2183
          %v2185 = vsub.f32 1.5, %v2184
          %v2186 = vmul.f32 %v2181, %v2185
          %vm2187 = vweird.f32 %v2166
          %vm2188 = vweird.f32 %v2181
          %vm2189 = vmor %vm2187, %vm2188
          %v2190 = vsel %vm2189, %v2181, %v2186
          %v2191 = vrsqrt.pop %v2167
          %v2192 = vmul.f32 %v2191, %v2167
          %v2193 = vmul.f32 %v2192, %v2191
          %v2194 = vmul.f32 0.5, %v2193
          %v2195 = vsub.f32 1.5, %v2194
          %v2196 = vmul.f32 %v2191, %v2195
          %vm2197 = vweird.f32 %v2167
          %vm2198 = vweird.f32 %v2191
          %vm2199 = vmor %vm2197, %vm2198
          %v2200 = vsel %vm2199, %v2191, %v2196
          %v2201 = vrsqrt.pop %v2168
          %v2202 = vmul.f32 %v2201, %v2168
          %v2203 = vmul.f32 %v2202, %v2201
          %v2204 = vmul.f32 0.5, %v2203
          %v2205 = vsub.f32 1.5, %v2204
          %v2206 = vmul.f32 %v2201, %v2205
          %vm2207 = vweird.f32 %v2168
          %vm2208 = vweird.f32 %v2201
          %vm2209 = vmor %vm2207, %vm2208
          %v2210 = vsel %vm2209, %v2201, %v2206
          %v2211 = vrsqrt.pop %v2169
          %v2212 = vmul.f32 %v2211, %v2169
          %v2213 = vmul.f32 %v2212, %v2211
          %v2214 = vmul.f32 0.5, %v2213
          %v2215 = vsub.f32 1.5, %v2214
          %v2216 = vmul.f32 %v2211, %v2215
          %vm2217 = vweird.f32 %v2169
          %vm2218 = vweird.f32 %v2211
          %vm2219 = vmor %vm2217, %vm2218
          %v2220 = vsel %vm2219, %v2211, %v2216
          %v2221 = vrsqrt.pop %v2170
          %v2222 = vmul.f32 %v2221, %v2170
          %v2223 = vmul.f32 %v2222, %v2221
          %v2224 = vmul.f32 0.5, %v2223
          %v2225 = vsub.f32 1.5, %v2224
          %v2226 = vmul.f32 %v2221, %v2225
          %vm2227 = vweird.f32 %v2170
          %vm2228 = vweird.f32 %v2221
          %vm2229 = vmor %vm2227, %vm2228
          %v2230 = vsel %vm2229, %v2221, %v2226
          %v2231 = vmul.f32 %v2129, %v2180
          %v2232 = vmul.f32 %v2130, %v2190
          %v2233 = vmul.f32 %v2131, %v2200
          %v2234 = vmul.f32 %v2132, %v2210
          %v2235 = vmul.f32 %v2133, %v2220
          %v2236 = vmul.f32 %v2134, %v2230
          %v2238 = vperm.slane %v2103, 0
          %v2240 = vmul.f32 %v2231, %v2238
          %v2241 = vmul.f32 %v2232, %v2238
          %v2242 = vmul.f32 %v2233, %v2238
          %v2243 = vmul.f32 %v2234, %v2238
          %v2244 = vmul.f32 %v2235, %v2238
          %v2245 = vmul.f32 %v2236, %v2238
          %v2247 = vperm.slane %v2104, 0
          %v2249 = vadd.f32 %v2240, %v2247
          %v2250 = vadd.f32 %v2241, %v2247
          %v2251 = vadd.f32 %v2242, %v2247
          %v2252 = vadd.f32 %v2243, %v2247
          %v2253 = vadd.f32 %v2244, %v2247
          %v2254 = vadd.f32 %v2245, %v2247
          %v2255 = vlaneseq
          %v2256 = vshrl.u32 %v2255, 7
          %v2257 = vadd.s32 %v2256, 8
          %v2258 = vadd.s32 %v2256, 16
          %vm2259 = vcmp.ge.s32.totalorder %v2256, 1
          %vm2260 = vcmp.ge.s32.totalorder %v2257, 1
          %vm2261 = vcmp.ge.s32.totalorder %v2258, 1
          %vm2262 = vcmp.lt.s32.totalorder %v2256, 17
          %vm2263 = vcmp.lt.s32.totalorder %v2257, 17
          %vm2264 = vcmp.lt.s32.totalorder %v2258, 17
          %vm2265 = vmand %vm2259, %vm2262
          %vm2266 = vmand %vm2260, %vm2263
          %vm2267 = vmand %vm2261, %vm2264
          %v2268 = vsel %vm2265, 1, 0
          %v2269 = vsel %vm2266, 1, 0
          %v2270 = vsel %vm2267, 1, 0
          %v2271 = vcvt.s32.f32 %v2268
          %v2272 = vcvt.s32.f32 %v2269
          %v2273 = vcvt.s32.f32 %v2270
          %v2274 = vmul.f32 %v2249, %v2271
          %v2275 = vmul.f32 %v2250, %v2272
          %v2276 = vmul.f32 %v2251, %v2273
          %v2277 = vmul.f32 %v2252, %v2271
          %v2278 = vmul.f32 %v2253, %v2272
          %v2279 = vmul.f32 %v2254, %v2273
          %v2280 = vsel %vm890, %v2274, 0.0
          %v2281 = vsel %vm890, %v2275, 0.0
          %v2282 = vadd.f32 %v2280, %v2281
          %v2283 = vsel %vm890, %v2276, 0.0
          %v2284 = vadd.f32 %v2282, %v2283
          %v2285 = vrot.slane %v2284, 4
          %v2286 = vadd.f32 %v2284, %v2285
          %v2287 = vrot.slane %v2286, 2
          %v2288 = vadd.f32 %v2286, %v2287
          %v2289 = vrot.slane %v2288, 1
          %v2290 = vadd.f32 %v2288, %v2289
          %v2291 = vsel %vm890, %v2277, 0.0
          %v2292 = vsel %vm890, %v2278, 0.0
          %v2293 = vadd.f32 %v2291, %v2292
          %v2294 = vsel %vm890, %v2279, 0.0
          %v2295 = vadd.f32 %v2293, %v2294
          %v2296 = vrot.slane %v2295, 4
          %v2297 = vadd.f32 %v2295, %v2296
          %v2298 = vrot.slane %v2297, 2
          %v2299 = vadd.f32 %v2297, %v2298
          %v2300 = vrot.slane %v2299, 1
          %v2301 = vadd.f32 %v2299, %v2300
          %v2302 = vrcp.pop 16.0
          %v2303 = vmul.f32 16.0, %v2302
          %v2304 = vsub.f32 1.0, %v2303
          %v2305 = vmul.f32 %v2302, %v2304
          %v2306 = vadd.f32 %v2302, %v2305
          %vm2307 = vweird.f32 %v2302
          %v2308 = vsel %vm2307, %v2302, %v2306
          %v2309 = vmul.f32 %v2290, %v2308
          %v2310 = vmul.f32 %v2301, %v2308
          %v2311 = vpack.c.bf16 %v2309, %v2309
          %v2312 = vpack.c.bf16 %v2310, %v2310
          %v2313 = vld [vmem:[%s16] sm:$0xf]
          %v2314 = vld [vmem:[%s16 + $0x4] sm:$0xf]
          %v2315 = vld [vmem:[%s16 + $0x8] sm:$0xf]
          %v2316 = vld [vmem:[%s16 + $0xc] sm:$0xf]
          %v2317 = vld [vmem:[%s17] sm:$0x1]
          %v2319 = vperm.slane %v2317, 0
          %v2323 = vunpack.c.l.b16 %v2311
          %v2324 = vunpack.c.l.b16 %v2312
          %vm2325 = vcmask 1041409
          %v2326 = vsel %vm2325, %v2324, %v2323
          %v2327 = vpack.c.b16 %v2326, %v2326
          %v2332 = vunpack.c.l.b16 %v2313
          %v2333 = vunpack.c.l.b16 %v2314
          %v2334 = vunpack.c.l.b16 %v2315
          %v2335 = vunpack.c.l.b16 %v2316
          %v2336 = vpack.c.b16 %v2333, %v2332
          %v2337 = vpack.c.b16 %v2335, %v2334
          %v2341 = vsel %vm890, %v2327, 0
          %2343 = vmatpush.bf16.msra.mxu0 0
          %2344 = vmatpush.bf16.msra.mxu0 0
          %2345 = vmatpush.bf16.msra.mxu0 0
          %2346 = vmatpush.bf16.msra.mxu0 0
          %2347 = vmatpush.bf16.msra.mxu0 0
          %2348 = vmatpush.bf16.msra.mxu0 0
          %2349 = vmatpush.bf16.msra.mxu0 %v2337
          %2350 = vmatpush.bf16.msra.mxu0 %v2336
          %2351 = vmatmul.bf16.gmra.mxu0 %v2341
          %v2352 = vpop.f32.mrf.mxu0
          %v2353 = vadd.f32 %v2319, %v2352
          %v2354 = vpop.f32.mrf.mxu0
          %2355 = vdwg.mxu0
          %v2356 = vsub.f32 0.0, %v2353
          %v2357 = vmul.f32 %v2356, 1.442695
          %v2358 = vpow.pop %v2357
          %v2359 = vadd.f32 %v2358, 1.0
          %v2360 = vrcp.pop %v2359
          %v2361 = vmul.f32 %v2359, %v2360
          %v2362 = vsub.f32 1.0, %v2361
          %v2363 = vmul.f32 %v2360, %v2362
          %v2364 = vadd.f32 %v2360, %v2363
          %vm2365 = vweird.f32 %v2359
          %vm2366 = vweird.f32 %v2360
          %vm2367 = vmor %vm2365, %vm2366
          %v2368 = vsel %vm2367, %v2360, %v2364
          %v2369 = vand.u32 2147483647, %v2359
          %vm2370 = vcmp.eq.f32.partialorder %v2369, 8.507059e+37
          %v2371 = vand.u32 %v2359, 2147483648
          %v2372 = vor.u32 1.1754944e-38, %v2371
          %v2373 = vsel %vm2370, %v2372, %v2368
          %v2374 = vmul.f32 1.0, %v2373
          %v2376 = vrot.slane %v2374, 1
          %2378 = vst [vmem:[%s800] sm:$0x1] %v2374
          %2379 = vst [vmem:[%s800 + $0x1] sm:$0x1] %v2376
        $region119: #{masking_net_forward.1} parent=91 // pred_fallthru
          _
        %s2380 = sand.u32 %s496, 1
        %s2381 = scalar_lea.sflag [#allocation9], %s2380
        %s2382 = sand.u32 %s496, 1
        %s2383 = smul.addr %s2382, 2
        %s2384 = scalar_lea.vmem [#allocation13], %s2383
        // Predicated region
        $region120: #{masking_net_forward.1} parent=91 // pred_check
          %p2385 = pneg %p506
        $region121: #{masking_net_forward.1} parent=91 // pred_check_branch
          %2387 = sbr.rel (%p2385) target = $region123
        $region122: #{masking_net_forward.1} parent=91 // pred_region
          %s2388 = smul.u32 2, %s42
          %2390 = vsyncadd %s2381, 0
          %s2391 = scalar_lea.hbm %s18, %s2388
          %s2392 = sshll.u32 %s2384, 4
          %s2393 = int_to_ptr.vmem [resolvable:$true] %s2392
          %s2394 = sshll.u32 %s2391, 4
          %s2395 = int_to_ptr.hbm [resolvable:$true] %s2394
          %2400 = dma.vmem_to_hbm [thread:$0]  %s2393, 32, %s2395, %s2381, 16, 16, 1
        $region123: #{masking_net_forward.1} parent=91 // pred_fallthru
          _
      $region92: #{masking_net_forward.1} parent=5 // pred_fallthru
        _
      %p2401 = scmp.le.s32.totalorder 2, %s33
      // Predicated region
      $region124: #{masking_net_forward.1} parent=5 // pred_check
        %p2402 = pneg %p2401
      $region125: #{masking_net_forward.1} parent=5 // pred_check_branch
        %2404 = sbr.rel (%p2402) target = $region127
      $region126: #{masking_net_forward.1} parent=5 // pred_region
        %s2405 = ssub.s32 %s33, 2
        // Predicated region
        $region128: #{masking_net_forward.1} parent=126 // pred_check
          %p2406 = pneg %p512
        $region129: #{masking_net_forward.1} parent=126 // pred_check_branch
          %2408 = sbr.rel (%p2406) target = $region131
        $region130: #{masking_net_forward.1} parent=126 // pred_region
          %s2409 = sand.u32 %s497, 1
          %s2410 = scalar_lea.sflag [#allocation9], %s2409
          %s2411 = sand.u32 %s497, 1
          %s2412 = smul.addr %s2411, 2
          %s2413 = scalar_lea.vmem [#allocation13], %s2412
          %2415 = dma.done %s2410, 32
        $region131: #{masking_net_forward.1} parent=126 // pred_fallthru
          _
      $region127: #{masking_net_forward.1} parent=5 // pred_fallthru
        _
    $region6: #{masking_net_forward.1} parent=1 // loop_footer
      %s37 = sadd.s32 1, %s33
    $region7: #{masking_net_forward.1} parent=1 // loop_footer_branch
      %32 = sbr.rel target = $region3
    $region8: #{masking_net_forward.1} parent=1 // loop_exit
      _
    %2416 = vsyncpa [#allocation8], 1
    %s2417 = scalar_lea.sflag [#allocation8], 1
    %2418 = vsyncpa %s2417, 1
    %2419 = vsyncpa [#allocation11], 1
    %s2420 = scalar_lea.sflag [#allocation11], 1
    %2421 = vsyncpa %s2420, 1
    %2422 = vsyncpa [#allocation9], 1
    %s2423 = scalar_lea.sflag [#allocation9], 1
    %2424 = vsyncpa %s2423, 1

</llo_original>
